<compile_context>
chip_gen: v5e
topology: v5e:2x2
jax: 0.10.0
libtpu: 0.0.40
codegen_flags: <defaults>
</compile_context>

<pallas_src>
import functools
import math

import jax
import jax.numpy as jnp
from jax import lax
from jax.experimental import pallas as pl
from jax.experimental.pallas import tpu as pltpu

_MAX_BATCH_BLOCK = 32   # batch elements per grid step (VMEM use is tiny at n=m=8)


def _neural_rr_kernel(v_ref, u3_ref, p_ref, pi_ref, *,
                      softsort_tau, softsort_pow, srr_tau):
    f32 = jnp.float32
    KB, n, m = v_ref.shape

    V = v_ref[...]                      # (KB, n, m)
    U3 = u3_ref[...]                    # (KB, n, 3)  first 3 left singular vectors of V
    P = p_ref[...]                      # (8, 128)    packed MLP parameters

    # packed params: rows 0..4 = fcU1.weight.T, 5 = fcU1.bias, 6 = fcU2.weight, 7 = fcU2.bias
    w1 = [P[r:r + 1, 0:20][None] for r in range(5)]      # 5 x (1, 1, 20)
    b1 = P[5:6, 0:20][None]                              # (1, 1, 20)
    w2 = P[6:7, 0:20][None]                              # (1, 1, 20)
    b2 = P[7:8, 0:1][None]                               # (1, 1, 1)

    # ---- features  U = [max(V,1), min(V,1), U_svd[:, :3]]  (concat folded) --------
    vmax = jnp.max(V, axis=2, keepdims=True)             # (KB, n, 1)
    vmin = jnp.min(V, axis=2, keepdims=True)             # (KB, n, 1)

    # ---- score = fcU2(sigmoid(fcU1(U)))  -------------------------------------------
    h = (b1
         + vmax * w1[0]
         + vmin * w1[1]
         + U3[:, :, 0:1] * w1[2]
         + U3[:, :, 1:2] * w1[3]
         + U3[:, :, 2:3] * w1[4])                        # (KB, n, 20)
    sh = 1.0 / (1.0 + jnp.exp(-h))                       # sigmoid (EUP exp + divide)
    score = jnp.sum(sh * w2, axis=2, keepdims=True) + b2  # (KB, n, 1)

    # ---- row orientation of score (tiny masked-reduce "transpose") ------------------
    ii = lax.broadcasted_iota(jnp.int32, (1, n, n), 1)
    jj = lax.broadcasted_iota(jnp.int32, (1, n, n), 2)
    eye = (ii == jj).astype(f32)                         # (1, n, n)
    score_row = jnp.sum(score * eye, axis=1, keepdims=True)          # (KB, 1, n)

    # ---- ascending ranks (strict <). Exactly-equal scores tie — differs from
    # torch's index-based argsort(argsort) tie-breaking only on a measure-zero set.
    rank_row = jnp.sum((score < score_row).astype(jnp.int32),
                       axis=1, keepdims=True)            # (KB, 1, n)  i32
    rank_col = jnp.sum((score_row < score).astype(jnp.int32),
                       axis=2, keepdims=True)            # (KB, n, 1)  i32

    # ---- tie_break: x + argsort(argsort(x)) == x + ascending rank -------------------
    # (tie_break preserves ordering, so rank_row/rank_col are also ranks of score_tb)
    score_tb_row = score_row + rank_row.astype(f32)      # (KB, 1, n)
    score_tb_col = score + rank_col.astype(f32)          # (KB, n, 1)

    # ---- descending-sorted score_tb, both orientations (exact integer one-hots) -----
    i_sub = lax.broadcasted_iota(jnp.int32, (1, n, 1), 1)
    i_lane = lax.broadcasted_iota(jnp.int32, (1, 1, n), 2)
    onehot_c = (rank_row == (n - 1) - i_sub).astype(f32)             # (KB, n, n)
    onehot_r = (rank_col == (n - 1) - i_lane).astype(f32)            # (KB, n, n)
    sorted_col = jnp.sum(onehot_c * score_tb_row, axis=2, keepdims=True)  # (KB, n, 1)
    sorted_row = jnp.sum(onehot_r * score_tb_col, axis=1, keepdims=True)  # (KB, 1, n)

    # ---- SoftSort (Prillo & Eisenschlos 2020), soft / training mode -----------------
    # TODO(synk): eval-mode `hard=True` straight-through one-hot not implemented.
    def _softsort(delta, axis):
        if softsort_pow == 2.0:
            dist = delta * delta
        else:
            dist = jnp.abs(delta) ** softsort_pow
        logits = (-1.0 / softsort_tau) * dist
        logits = logits - jnp.max(logits, axis=axis, keepdims=True)
        e = jnp.exp(logits)
        return e / jnp.sum(e, axis=axis, keepdims=True)

    # P_hat and its transpose built directly from the two orientations (same math),
    # so no in-kernel transpose is ever needed.
    P_hat = _softsort(score_tb_row - sorted_col, axis=2)             # (KB, n, n)
    P_hat_T = _softsort(score_tb_col - sorted_row, axis=1)           # (KB, n, n) == P_hat^T

    # ---- V_hat = P_hat @ V  (contraction dim n<=8: unroll on VPU, skip MXU padding) -
    V_hat = jnp.zeros((KB, n, m), f32)
    for j in range(n):
        V_hat = V_hat + P_hat[:, :, j:j + 1] * V[:, j:j + 1, :]

    # ---- SoftRR: differentiable round-robin picking sequence ------------------------
    # TODO(synk): SoftRR class body was not provided with the module; this is a
    # softmax-relaxed round robin (agent t % n softly picks among remaining item mass).
    row_max = jnp.max(V_hat, axis=2, keepdims=True)                  # hoisted off the chain
    E = jnp.exp((V_hat - row_max) * (1.0 / srr_tau))                 # (KB, n, m), hoisted

    row_id = lax.broadcasted_iota(jnp.int32, (1, n, 1), 1)
    sel_cache = {}
    remaining = jnp.ones((KB, 1, m), f32)
    A = jnp.zeros((KB, n, m), f32)
    for t in range(m):                     # m is small & static
        a = t % n
        if a not in sel_cache:             # hoist the one-hot row selector per agent
            sel_cache[a] = (row_id == a).astype(f32)                 # (1, n, 1)
        ex = remaining * E[:, a:a + 1, :]                            # static row slice
        p = ex * pl.reciprocal(jnp.sum(ex, axis=2, keepdims=True) + 1e-30,
                               approx=True)                          # (KB, 1, m)
        A = A + sel_cache[a] * p
        remaining = remaining * (1.0 - p)

    # ---- pi = P_hat^T @ A, then exact column normalisation --------------------------
    pi = jnp.zeros((KB, n, m), f32)
    for i in range(n):
        pi = pi + P_hat_T[:, :, i:i + 1] * A[:, i:i + 1, :]
    pi = pi / jnp.sum(pi, axis=1, keepdims=True)
    pi_ref[...] = pi


def init_params(key):
    """Deterministic synthetic parameters mirroring nn.Linear(5,20), nn.Linear(20,1)."""
    k1, k2, k3, k4 = jax.random.split(key, 4)
    lim1 = 1.0 / math.sqrt(5.0)
    lim2 = 1.0 / math.sqrt(20.0)
    W1 = jax.random.uniform(k1, (5, 20), jnp.float32, -lim1, lim1)   # fcU1.weight.T
    b1 = jax.random.uniform(k2, (1, 20), jnp.float32, -lim1, lim1)   # fcU1.bias
    W2 = jax.random.uniform(k3, (1, 20), jnp.float32, -lim2, lim2)   # fcU2.weight
    b2 = jax.random.uniform(k4, (1, 1), jnp.float32, -lim2, lim2)    # fcU2.bias
    return W1, b1, W2, b2


def _pack_params(params):
    """Pack (W1, b1, W2, b2) into a single (8, 128) f32 block (one DMA per call)."""
    W1, b1, W2, b2 = params
    P = jnp.zeros((8, 128), jnp.float32)
    P = P.at[0:5, 0:20].set(W1.astype(jnp.float32))
    P = P.at[5:6, 0:20].set(b1.astype(jnp.float32))
    P = P.at[6:7, 0:20].set(W2.astype(jnp.float32))
    P = P.at[7:8, 0:1].set(b2.astype(jnp.float32))
    return P


def _forward_batched(V, params_packed, softsort_tau, softsort_pow, srr_tau):
    B, n, m = V.shape
    V = V.astype(jnp.float32)

    # Batched SVD once for the whole batch (plain JAX/XLA; no Pallas equivalent).
    # TODO(synk): left-singular-vector signs are implementation-defined, so U3
    # column signs may differ from torch.svd (true of any SVD implementation).
    U, _, _ = jnp.linalg.svd(V, full_matrices=False)
    U3 = U[..., :3].astype(jnp.float32)

    KB = min(B, _MAX_BATCH_BLOCK)
    B_pad = (-(-B // KB)) * KB
    if B_pad != B:
        pad = B_pad - B
        V = jnp.concatenate([V, jnp.broadcast_to(V[-1:], (pad, n, m))], axis=0)
        U3 = jnp.concatenate([U3, jnp.broadcast_to(U3[-1:], (pad, n, 3))], axis=0)

    kernel = functools.partial(_neural_rr_kernel,
                               softsort_tau=softsort_tau,
                               softsort_pow=softsort_pow,
                               srr_tau=srr_tau)

    out = pl.pallas_call(
        kernel,
        grid=(B_pad // KB,),
        in_specs=[
            pl.BlockSpec((KB, n, m), lambda i: (i, 0, 0)),
            pl.BlockSpec((KB, n, 3), lambda i: (i, 0, 0)),
            pl.BlockSpec((8, 128), lambda i: (0, 0)),
        ],
        out_specs=pl.BlockSpec((KB, n, m), lambda i: (i, 0, 0)),
        out_shape=jax.ShapeDtypeStruct((B_pad, n, m), jnp.float32),
        compiler_params=pltpu.CompilerParams(
            dimension_semantics=("parallel",)),   # shard batch blocks across cores
    )(V, U3, params_packed)
    return out[:B]


def neural_rr_forward(V, params, softsort_tau=1.0, softsort_pow=2.0, srr_tau=1.0):
    """Mirrors NeuralRR.forward (require_permutations=False, training mode)."""
    params_packed = _pack_params(params)
    if V.ndim == 2:
        return _forward_batched(V[None], params_packed,
                                softsort_tau, softsort_pow, srr_tau)[0]
    elif V.ndim == 3:
        return _forward_batched(V, params_packed,
                                softsort_tau, softsort_pow, srr_tau)
    else:
        raise AssertionError("V must be 2-D or 3-D")


if __name__ == "__main__":
    key = jax.random.PRNGKey(0)
    k_v, k_p = jax.random.split(key)
    # batch=2, n=8 rows (items/agents), m=8 value columns
    V = jax.random.normal(k_v, (2, 8, 8), jnp.float32)
    params = init_params(k_p)

    fwd = jax.jit(lambda v: neural_rr_forward(v, params))
    pi_hat = jax.block_until_ready(fwd(V))

    assert pi_hat.shape == (2, 8, 8)
    assert bool(jnp.all(jnp.isfinite(pi_hat)))
    # each column of each pi_hat sums to 1 (pi_hat / pi_hat.sum(dim=0))
    col_sums = jnp.sum(pi_hat, axis=1)
    assert bool(jnp.allclose(col_sums, 1.0, atol=1e-4))

    print("KERNEL_OK")
</pallas_src>

<mosaic_0001>
module attributes {stable_mosaic.version = 11 : i64} {
  func.func @_neural_rr_kernel(%arg0: i32, %arg1: memref<2x8x8xf32, #tpu.memory_space<vmem>>, %arg2: memref<2x8x3xf32, #tpu.memory_space<vmem>>, %arg3: memref<8x128xf32, #tpu.memory_space<vmem>>, %arg4: memref<2x8x8xf32, #tpu.memory_space<vmem>>) attributes {dimension_semantics = [#tpu.dimension_semantics<parallel>], iteration_bounds = array<i64: 1>, scalar_prefetch = 0 : i64, scratch_operands = 0 : i64, tpu.core_type = #tpu.core_type<tc>, window_params = [{transform_indices = @transform_0, window_bounds = array<i64: 2, 8, 8>}, {transform_indices = @transform_1, window_bounds = array<i64: 2, 8, 3>}, {pipeline_mode = #tpu.pipeline_mode<synchronous>, transform_indices = @transform_2, window_bounds = array<i64: 8, 128>}, {transform_indices = @transform_3, window_bounds = array<i64: 2, 8, 8>}]} {
    %c0 = arith.constant 0 : index
    %c0_0 = arith.constant 0 : index
    %c0_1 = arith.constant 0 : index
    %0 = vector.load %arg1[%c0, %c0_0, %c0_1] : memref<2x8x8xf32, #tpu.memory_space<vmem>>, vector<2x8x8xf32>
    %c0_2 = arith.constant 0 : index
    %c0_3 = arith.constant 0 : index
    %c0_4 = arith.constant 0 : index
    %1 = vector.load %arg2[%c0_2, %c0_3, %c0_4] : memref<2x8x3xf32, #tpu.memory_space<vmem>>, vector<2x8x3xf32>
    %c0_5 = arith.constant 0 : index
    %c0_6 = arith.constant 0 : index
    %2 = vector.load %arg3[%c0_5, %c0_6] : memref<8x128xf32, #tpu.memory_space<vmem>>, vector<8x128xf32>
    %3 = vector.extract_strided_slice %2 {offsets = [0, 0], sizes = [1, 20], strides = [1, 1]} : vector<8x128xf32> to vector<1x20xf32>
    %4 = vector.shape_cast %3 : vector<1x20xf32> to vector<1x1x20xf32>
    %5 = vector.extract_strided_slice %2 {offsets = [1, 0], sizes = [1, 20], strides = [1, 1]} : vector<8x128xf32> to vector<1x20xf32>
    %6 = vector.shape_cast %5 : vector<1x20xf32> to vector<1x1x20xf32>
    %7 = vector.extract_strided_slice %2 {offsets = [2, 0], sizes = [1, 20], strides = [1, 1]} : vector<8x128xf32> to vector<1x20xf32>
    %8 = vector.shape_cast %7 : vector<1x20xf32> to vector<1x1x20xf32>
    %9 = vector.extract_strided_slice %2 {offsets = [3, 0], sizes = [1, 20], strides = [1, 1]} : vector<8x128xf32> to vector<1x20xf32>
    %10 = vector.shape_cast %9 : vector<1x20xf32> to vector<1x1x20xf32>
    %11 = vector.extract_strided_slice %2 {offsets = [4, 0], sizes = [1, 20], strides = [1, 1]} : vector<8x128xf32> to vector<1x20xf32>
    %12 = vector.shape_cast %11 : vector<1x20xf32> to vector<1x1x20xf32>
    %13 = vector.extract_strided_slice %2 {offsets = [5, 0], sizes = [1, 20], strides = [1, 1]} : vector<8x128xf32> to vector<1x20xf32>
    %14 = vector.shape_cast %13 : vector<1x20xf32> to vector<1x1x20xf32>
    %15 = vector.extract_strided_slice %2 {offsets = [6, 0], sizes = [1, 20], strides = [1, 1]} : vector<8x128xf32> to vector<1x20xf32>
    %16 = vector.shape_cast %15 : vector<1x20xf32> to vector<1x1x20xf32>
    %17 = vector.extract_strided_slice %2 {offsets = [7, 0], sizes = [1, 1], strides = [1, 1]} : vector<8x128xf32> to vector<1x1xf32>
    %18 = vector.shape_cast %17 : vector<1x1xf32> to vector<1x1x1xf32>
    %cst = arith.constant dense<0xFF800000> : vector<2x8xf32>
    %19 = vector.multi_reduction <maximumf>, %0, %cst [2] : vector<2x8x8xf32> to vector<2x8xf32>
    %20 = vector.shape_cast %19 : vector<2x8xf32> to vector<2x8x1xf32>
    %cst_7 = arith.constant dense<0x7F800000> : vector<2x8xf32>
    %21 = vector.multi_reduction <minimumf>, %0, %cst_7 [2] : vector<2x8x8xf32> to vector<2x8xf32>
    %22 = vector.shape_cast %21 : vector<2x8xf32> to vector<2x8x1xf32>
    %23 = vector.broadcast %20 : vector<2x8x1xf32> to vector<2x8x20xf32>
    %24 = vector.broadcast %4 : vector<1x1x20xf32> to vector<2x8x20xf32>
    %25 = arith.mulf %23, %24 : vector<2x8x20xf32>
    %26 = vector.broadcast %14 : vector<1x1x20xf32> to vector<2x8x20xf32>
    %27 = arith.addf %26, %25 : vector<2x8x20xf32>
    %28 = vector.broadcast %22 : vector<2x8x1xf32> to vector<2x8x20xf32>
    %29 = vector.broadcast %6 : vector<1x1x20xf32> to vector<2x8x20xf32>
    %30 = arith.mulf %28, %29 : vector<2x8x20xf32>
    %31 = arith.addf %27, %30 : vector<2x8x20xf32>
    %32 = vector.extract_strided_slice %1 {offsets = [0, 0, 0], sizes = [2, 8, 1], strides = [1, 1, 1]} : vector<2x8x3xf32> to vector<2x8x1xf32>
    %33 = vector.broadcast %32 : vector<2x8x1xf32> to vector<2x8x20xf32>
    %34 = vector.broadcast %8 : vector<1x1x20xf32> to vector<2x8x20xf32>
    %35 = arith.mulf %33, %34 : vector<2x8x20xf32>
    %36 = arith.addf %31, %35 : vector<2x8x20xf32>
    %37 = vector.extract_strided_slice %1 {offsets = [0, 0, 1], sizes = [2, 8, 1], strides = [1, 1, 1]} : vector<2x8x3xf32> to vector<2x8x1xf32>
    %38 = vector.broadcast %37 : vector<2x8x1xf32> to vector<2x8x20xf32>
    %39 = vector.broadcast %10 : vector<1x1x20xf32> to vector<2x8x20xf32>
    %40 = arith.mulf %38, %39 : vector<2x8x20xf32>
    %41 = arith.addf %36, %40 : vector<2x8x20xf32>
    %42 = vector.extract_strided_slice %1 {offsets = [0, 0, 2], sizes = [2, 8, 1], strides = [1, 1, 1]} : vector<2x8x3xf32> to vector<2x8x1xf32>
    %43 = vector.broadcast %42 : vector<2x8x1xf32> to vector<2x8x20xf32>
    %44 = vector.broadcast %12 : vector<1x1x20xf32> to vector<2x8x20xf32>
    %45 = arith.mulf %43, %44 : vector<2x8x20xf32>
    %46 = arith.addf %41, %45 : vector<2x8x20xf32>
    %cst_8 = arith.constant 0.000000e+00 : f32
    %47 = vector.broadcast %cst_8 : f32 to vector<2x8x20xf32>
    %48 = arith.subf %47, %46 : vector<2x8x20xf32>
    %49 = math.exp %48 : vector<2x8x20xf32>
    %cst_9 = arith.constant 1.000000e+00 : f32
    %50 = vector.broadcast %cst_9 : f32 to vector<2x8x20xf32>
    %51 = arith.addf %50, %49 : vector<2x8x20xf32>
    %cst_10 = arith.constant 1.000000e+00 : f32
    %52 = vector.broadcast %cst_10 : f32 to vector<2x8x20xf32>
    %53 = arith.divf %52, %51 : vector<2x8x20xf32>
    %54 = vector.broadcast %16 : vector<1x1x20xf32> to vector<2x8x20xf32>
    %55 = arith.mulf %53, %54 : vector<2x8x20xf32>
    %cst_11 = arith.constant dense<0.000000e+00> : vector<2x8xf32>
    %56 = vector.multi_reduction <add>, %55, %cst_11 [2] : vector<2x8x20xf32> to vector<2x8xf32>
    %57 = vector.shape_cast %56 : vector<2x8xf32> to vector<2x8x1xf32>
    %58 = vector.broadcast %18 : vector<1x1x1xf32> to vector<2x8x1xf32>
    %59 = arith.addf %57, %58 : vector<2x8x1xf32>
    %60 = tpu.iota {dimensions = array<i32: 1>} : vector<1x8x8xi32>
    %61 = tpu.iota {dimensions = array<i32: 2>} : vector<1x8x8xi32>
    %62 = arith.cmpi eq, %60, %61 : vector<1x8x8xi32>
    %63 = arith.extui %62 : vector<1x8x8xi1> to vector<1x8x8xi32>
    %64 = arith.sitofp %63 : vector<1x8x8xi32> to vector<1x8x8xf32>
    %65 = vector.broadcast %59 : vector<2x8x1xf32> to vector<2x8x8xf32>
    %66 = vector.broadcast %64 : vector<1x8x8xf32> to vector<2x8x8xf32>
    %67 = arith.mulf %65, %66 : vector<2x8x8xf32>
    %cst_12 = arith.constant dense<0.000000e+00> : vector<2x8xf32>
    %68 = vector.multi_reduction <add>, %67, %cst_12 [1] : vector<2x8x8xf32> to vector<2x8xf32>
    %69 = vector.shape_cast %68 : vector<2x8xf32> to vector<2x1x8xf32>
    %70 = vector.broadcast %59 : vector<2x8x1xf32> to vector<2x8x8xf32>
    %71 = vector.broadcast %69 : vector<2x1x8xf32> to vector<2x8x8xf32>
    %72 = arith.cmpf olt, %70, %71 : vector<2x8x8xf32>
    %73 = arith.extui %72 : vector<2x8x8xi1> to vector<2x8x8xi32>
    %cst_13 = arith.constant dense<0> : vector<2x8xi32>
    %74 = vector.multi_reduction <add>, %73, %cst_13 [1] : vector<2x8x8xi32> to vector<2x8xi32>
    %75 = vector.shape_cast %74 : vector<2x8xi32> to vector<2x1x8xi32>
    %76 = vector.broadcast %69 : vector<2x1x8xf32> to vector<2x8x8xf32>
    %77 = vector.broadcast %59 : vector<2x8x1xf32> to vector<2x8x8xf32>
    %78 = arith.cmpf olt, %76, %77 : vector<2x8x8xf32>
    %79 = arith.extui %78 : vector<2x8x8xi1> to vector<2x8x8xi32>
    %cst_14 = arith.constant dense<0> : vector<2x8xi32>
    %80 = vector.multi_reduction <add>, %79, %cst_14 [2] : vector<2x8x8xi32> to vector<2x8xi32>
    %81 = vector.shape_cast %80 : vector<2x8xi32> to vector<2x8x1xi32>
    %82 = arith.sitofp %75 : vector<2x1x8xi32> to vector<2x1x8xf32>
    %83 = arith.addf %69, %82 : vector<2x1x8xf32>
    %84 = arith.sitofp %81 : vector<2x8x1xi32> to vector<2x8x1xf32>
    %85 = arith.addf %59, %84 : vector<2x8x1xf32>
    %86 = tpu.iota {dimensions = array<i32: 1>} : vector<1x8x1xi32>
    %87 = tpu.iota {dimensions = array<i32: 2>} : vector<1x1x8xi32>
    %c7_i32 = arith.constant 7 : i32
    %88 = vector.broadcast %c7_i32 : i32 to vector<1x8x1xi32>
    %89 = arith.subi %88, %86 : vector<1x8x1xi32>
    %90 = vector.broadcast %75 : vector<2x1x8xi32> to vector<2x8x8xi32>
    %91 = vector.broadcast %89 : vector<1x8x1xi32> to vector<2x8x8xi32>
    %92 = arith.cmpi eq, %90, %91 : vector<2x8x8xi32>
    %93 = arith.extui %92 : vector<2x8x8xi1> to vector<2x8x8xi32>
    %94 = arith.sitofp %93 : vector<2x8x8xi32> to vector<2x8x8xf32>
    %c7_i32_15 = arith.constant 7 : i32
    %95 = vector.broadcast %c7_i32_15 : i32 to vector<1x1x8xi32>
    %96 = arith.subi %95, %87 : vector<1x1x8xi32>
    %97 = vector.broadcast %81 : vector<2x8x1xi32> to vector<2x8x8xi32>
    %98 = vector.broadcast %96 : vector<1x1x8xi32> to vector<2x8x8xi32>
    %99 = arith.cmpi eq, %97, %98 : vector<2x8x8xi32>
    %100 = arith.extui %99 : vector<2x8x8xi1> to vector<2x8x8xi32>
    %101 = arith.sitofp %100 : vector<2x8x8xi32> to vector<2x8x8xf32>
    %102 = vector.broadcast %83 : vector<2x1x8xf32> to vector<2x8x8xf32>
    %103 = arith.mulf %94, %102 : vector<2x8x8xf32>
    %cst_16 = arith.constant dense<0.000000e+00> : vector<2x8xf32>
    %104 = vector.multi_reduction <add>, %103, %cst_16 [2] : vector<2x8x8xf32> to vector<2x8xf32>
    %105 = vector.shape_cast %104 : vector<2x8xf32> to vector<2x8x1xf32>
    %106 = vector.broadcast %85 : vector<2x8x1xf32> to vector<2x8x8xf32>
    %107 = arith.mulf %101, %106 : vector<2x8x8xf32>
    %cst_17 = arith.constant dense<0.000000e+00> : vector<2x8xf32>
    %108 = vector.multi_reduction <add>, %107, %cst_17 [1] : vector<2x8x8xf32> to vector<2x8xf32>
    %109 = vector.shape_cast %108 : vector<2x8xf32> to vector<2x1x8xf32>
    %110 = vector.broadcast %83 : vector<2x1x8xf32> to vector<2x8x8xf32>
    %111 = vector.broadcast %105 : vector<2x8x1xf32> to vector<2x8x8xf32>
    %112 = arith.subf %110, %111 : vector<2x8x8xf32>
    %113 = arith.mulf %112, %112 : vector<2x8x8xf32>
    %cst_18 = arith.constant -1.000000e+00 : f32
    %114 = vector.broadcast %cst_18 : f32 to vector<2x8x8xf32>
    %115 = arith.mulf %114, %113 : vector<2x8x8xf32>
    %cst_19 = arith.constant dense<0xFF800000> : vector<2x8xf32>
    %116 = vector.multi_reduction <maximumf>, %115, %cst_19 [2] : vector<2x8x8xf32> to vector<2x8xf32>
    %117 = vector.shape_cast %116 : vector<2x8xf32> to vector<2x8x1xf32>
    %118 = vector.broadcast %117 : vector<2x8x1xf32> to vector<2x8x8xf32>
    %119 = arith.subf %115, %118 : vector<2x8x8xf32>
    %120 = math.exp %119 : vector<2x8x8xf32>
    %cst_20 = arith.constant dense<0.000000e+00> : vector<2x8xf32>
    %121 = vector.multi_reduction <add>, %120, %cst_20 [2] : vector<2x8x8xf32> to vector<2x8xf32>
    %122 = vector.shape_cast %121 : vector<2x8xf32> to vector<2x8x1xf32>
    %123 = vector.broadcast %122 : vector<2x8x1xf32> to vector<2x8x8xf32>
    %124 = arith.divf %120, %123 : vector<2x8x8xf32>
    %125 = vector.broadcast %85 : vector<2x8x1xf32> to vector<2x8x8xf32>
    %126 = vector.broadcast %109 : vector<2x1x8xf32> to vector<2x8x8xf32>
    %127 = arith.subf %125, %126 : vector<2x8x8xf32>
    %128 = arith.mulf %127, %127 : vector<2x8x8xf32>
    %cst_21 = arith.constant -1.000000e+00 : f32
    %129 = vector.broadcast %cst_21 : f32 to vector<2x8x8xf32>
    %130 = arith.mulf %129, %128 : vector<2x8x8xf32>
    %cst_22 = arith.constant dense<0xFF800000> : vector<2x8xf32>
    %131 = vector.multi_reduction <maximumf>, %130, %cst_22 [1] : vector<2x8x8xf32> to vector<2x8xf32>
    %132 = vector.shape_cast %131 : vector<2x8xf32> to vector<2x1x8xf32>
    %133 = vector.broadcast %132 : vector<2x1x8xf32> to vector<2x8x8xf32>
    %134 = arith.subf %130, %133 : vector<2x8x8xf32>
    %135 = math.exp %134 : vector<2x8x8xf32>
    %cst_23 = arith.constant dense<0.000000e+00> : vector<2x8xf32>
    %136 = vector.multi_reduction <add>, %135, %cst_23 [1] : vector<2x8x8xf32> to vector<2x8xf32>
    %137 = vector.shape_cast %136 : vector<2x8xf32> to vector<2x1x8xf32>
    %138 = vector.broadcast %137 : vector<2x1x8xf32> to vector<2x8x8xf32>
    %139 = arith.divf %135, %138 : vector<2x8x8xf32>
    %cst_24 = arith.constant 0.000000e+00 : f32
    %140 = vector.broadcast %cst_24 : f32 to vector<2x8x8xf32>
    %141 = vector.extract_strided_slice %124 {offsets = [0, 0, 0], sizes = [2, 8, 1], strides = [1, 1, 1]} : vector<2x8x8xf32> to vector<2x8x1xf32>
    %142 = vector.extract_strided_slice %0 {offsets = [0, 0, 0], sizes = [2, 1, 8], strides = [1, 1, 1]} : vector<2x8x8xf32> to vector<2x1x8xf32>
    %143 = vector.broadcast %141 : vector<2x8x1xf32> to vector<2x8x8xf32>
    %144 = vector.broadcast %142 : vector<2x1x8xf32> to vector<2x8x8xf32>
    %145 = arith.mulf %143, %144 : vector<2x8x8xf32>
    %146 = arith.addf %140, %145 : vector<2x8x8xf32>
    %147 = vector.extract_strided_slice %124 {offsets = [0, 0, 1], sizes = [2, 8, 1], strides = [1, 1, 1]} : vector<2x8x8xf32> to vector<2x8x1xf32>
    %148 = vector.extract_strided_slice %0 {offsets = [0, 1, 0], sizes = [2, 1, 8], strides = [1, 1, 1]} : vector<2x8x8xf32> to vector<2x1x8xf32>
    %149 = vector.broadcast %147 : vector<2x8x1xf32> to vector<2x8x8xf32>
    %150 = vector.broadcast %148 : vector<2x1x8xf32> to vector<2x8x8xf32>
    %151 = arith.mulf %149, %150 : vector<2x8x8xf32>
    %152 = arith.addf %146, %151 : vector<2x8x8xf32>
    %153 = vector.extract_strided_slice %124 {offsets = [0, 0, 2], sizes = [2, 8, 1], strides = [1, 1, 1]} : vector<2x8x8xf32> to vector<2x8x1xf32>
    %154 = vector.extract_strided_slice %0 {offsets = [0, 2, 0], sizes = [2, 1, 8], strides = [1, 1, 1]} : vector<2x8x8xf32> to vector<2x1x8xf32>
    %155 = vector.broadcast %153 : vector<2x8x1xf32> to vector<2x8x8xf32>
    %156 = vector.broadcast %154 : vector<2x1x8xf32> to vector<2x8x8xf32>
    %157 = arith.mulf %155, %156 : vector<2x8x8xf32>
    %158 = arith.addf %152, %157 : vector<2x8x8xf32>
    %159 = vector.extract_strided_slice %124 {offsets = [0, 0, 3], sizes = [2, 8, 1], strides = [1, 1, 1]} : vector<2x8x8xf32> to vector<2x8x1xf32>
    %160 = vector.extract_strided_slice %0 {offsets = [0, 3, 0], sizes = [2, 1, 8], strides = [1, 1, 1]} : vector<2x8x8xf32> to vector<2x1x8xf32>
    %161 = vector.broadcast %159 : vector<2x8x1xf32> to vector<2x8x8xf32>
    %162 = vector.broadcast %160 : vector<2x1x8xf32> to vector<2x8x8xf32>
    %163 = arith.mulf %161, %162 : vector<2x8x8xf32>
    %164 = arith.addf %158, %163 : vector<2x8x8xf32>
    %165 = vector.extract_strided_slice %124 {offsets = [0, 0, 4], sizes = [2, 8, 1], strides = [1, 1, 1]} : vector<2x8x8xf32> to vector<2x8x1xf32>
    %166 = vector.extract_strided_slice %0 {offsets = [0, 4, 0], sizes = [2, 1, 8], strides = [1, 1, 1]} : vector<2x8x8xf32> to vector<2x1x8xf32>
    %167 = vector.broadcast %165 : vector<2x8x1xf32> to vector<2x8x8xf32>
    %168 = vector.broadcast %166 : vector<2x1x8xf32> to vector<2x8x8xf32>
    %169 = arith.mulf %167, %168 : vector<2x8x8xf32>
    %170 = arith.addf %164, %169 : vector<2x8x8xf32>
    %171 = vector.extract_strided_slice %124 {offsets = [0, 0, 5], sizes = [2, 8, 1], strides = [1, 1, 1]} : vector<2x8x8xf32> to vector<2x8x1xf32>
    %172 = vector.extract_strided_slice %0 {offsets = [0, 5, 0], sizes = [2, 1, 8], strides = [1, 1, 1]} : vector<2x8x8xf32> to vector<2x1x8xf32>
    %173 = vector.broadcast %171 : vector<2x8x1xf32> to vector<2x8x8xf32>
    %174 = vector.broadcast %172 : vector<2x1x8xf32> to vector<2x8x8xf32>
    %175 = arith.mulf %173, %174 : vector<2x8x8xf32>
    %176 = arith.addf %170, %175 : vector<2x8x8xf32>
    %177 = vector.extract_strided_slice %124 {offsets = [0, 0, 6], sizes = [2, 8, 1], strides = [1, 1, 1]} : vector<2x8x8xf32> to vector<2x8x1xf32>
    %178 = vector.extract_strided_slice %0 {offsets = [0, 6, 0], sizes = [2, 1, 8], strides = [1, 1, 1]} : vector<2x8x8xf32> to vector<2x1x8xf32>
    %179 = vector.broadcast %177 : vector<2x8x1xf32> to vector<2x8x8xf32>
    %180 = vector.broadcast %178 : vector<2x1x8xf32> to vector<2x8x8xf32>
    %181 = arith.mulf %179, %180 : vector<2x8x8xf32>
    %182 = arith.addf %176, %181 : vector<2x8x8xf32>
    %183 = vector.extract_strided_slice %124 {offsets = [0, 0, 7], sizes = [2, 8, 1], strides = [1, 1, 1]} : vector<2x8x8xf32> to vector<2x8x1xf32>
    %184 = vector.extract_strided_slice %0 {offsets = [0, 7, 0], sizes = [2, 1, 8], strides = [1, 1, 1]} : vector<2x8x8xf32> to vector<2x1x8xf32>
    %185 = vector.broadcast %183 : vector<2x8x1xf32> to vector<2x8x8xf32>
    %186 = vector.broadcast %184 : vector<2x1x8xf32> to vector<2x8x8xf32>
    %187 = arith.mulf %185, %186 : vector<2x8x8xf32>
    %188 = arith.addf %182, %187 : vector<2x8x8xf32>
    %cst_25 = arith.constant dense<0xFF800000> : vector<2x8xf32>
    %189 = vector.multi_reduction <maximumf>, %188, %cst_25 [2] : vector<2x8x8xf32> to vector<2x8xf32>
    %190 = vector.shape_cast %189 : vector<2x8xf32> to vector<2x8x1xf32>
    %191 = vector.broadcast %190 : vector<2x8x1xf32> to vector<2x8x8xf32>
    %192 = arith.subf %188, %191 : vector<2x8x8xf32>
    %cst_26 = arith.constant 1.000000e+00 : f32
    %193 = vector.broadcast %cst_26 : f32 to vector<2x8x8xf32>
    %194 = arith.mulf %192, %193 : vector<2x8x8xf32>
    %195 = math.exp %194 : vector<2x8x8xf32>
    %196 = tpu.iota {dimensions = array<i32: 1>} : vector<1x8x1xi32>
    %cst_27 = arith.constant 1.000000e+00 : f32
    %197 = vector.broadcast %cst_27 : f32 to vector<2x1x8xf32>
    %cst_28 = arith.constant 0.000000e+00 : f32
    %198 = vector.broadcast %cst_28 : f32 to vector<2x8x8xf32>
    %c0_i32 = arith.constant 0 : i32
    %199 = vector.broadcast %c0_i32 : i32 to vector<1x8x1xi32>
    %200 = arith.cmpi eq, %196, %199 : vector<1x8x1xi32>
    %201 = arith.extui %200 : vector<1x8x1xi1> to vector<1x8x1xi32>
    %202 = arith.sitofp %201 : vector<1x8x1xi32> to vector<1x8x1xf32>
    %203 = vector.extract_strided_slice %195 {offsets = [0, 0, 0], sizes = [2, 1, 8], strides = [1, 1, 1]} : vector<2x8x8xf32> to vector<2x1x8xf32>
    %204 = arith.mulf %197, %203 : vector<2x1x8xf32>
    %cst_29 = arith.constant dense<0.000000e+00> : vector<2x1xf32>
    %205 = vector.multi_reduction <add>, %204, %cst_29 [2] : vector<2x1x8xf32> to vector<2x1xf32>
    %206 = vector.shape_cast %205 : vector<2x1xf32> to vector<2x1x1xf32>
    %cst_30 = arith.constant 1.000000e-30 : f32
    %207 = vector.broadcast %cst_30 : f32 to vector<2x1x1xf32>
    %208 = arith.addf %206, %207 : vector<2x1x1xf32>
    %209 = tpu.reciprocal %208 {approx = true} : vector<2x1x1xf32> -> vector<2x1x1xf32>
    %210 = vector.broadcast %209 : vector<2x1x1xf32> to vector<2x1x8xf32>
    %211 = arith.mulf %204, %210 : vector<2x1x8xf32>
    %212 = vector.broadcast %202 : vector<1x8x1xf32> to vector<2x8x8xf32>
    %213 = vector.broadcast %211 : vector<2x1x8xf32> to vector<2x8x8xf32>
    %214 = arith.mulf %212, %213 : vector<2x8x8xf32>
    %215 = arith.addf %198, %214 : vector<2x8x8xf32>
    %cst_31 = arith.constant 1.000000e+00 : f32
    %216 = vector.broadcast %cst_31 : f32 to vector<2x1x8xf32>
    %217 = arith.subf %216, %211 : vector<2x1x8xf32>
    %218 = arith.mulf %197, %217 : vector<2x1x8xf32>
    %c1_i32 = arith.constant 1 : i32
    %219 = vector.broadcast %c1_i32 : i32 to vector<1x8x1xi32>
    %220 = arith.cmpi eq, %196, %219 : vector<1x8x1xi32>
    %221 = arith.extui %220 : vector<1x8x1xi1> to vector<1x8x1xi32>
    %222 = arith.sitofp %221 : vector<1x8x1xi32> to vector<1x8x1xf32>
    %223 = vector.extract_strided_slice %195 {offsets = [0, 1, 0], sizes = [2, 1, 8], strides = [1, 1, 1]} : vector<2x8x8xf32> to vector<2x1x8xf32>
    %224 = arith.mulf %218, %223 : vector<2x1x8xf32>
    %cst_32 = arith.constant dense<0.000000e+00> : vector<2x1xf32>
    %225 = vector.multi_reduction <add>, %224, %cst_32 [2] : vector<2x1x8xf32> to vector<2x1xf32>
    %226 = vector.shape_cast %225 : vector<2x1xf32> to vector<2x1x1xf32>
    %cst_33 = arith.constant 1.000000e-30 : f32
    %227 = vector.broadcast %cst_33 : f32 to vector<2x1x1xf32>
    %228 = arith.addf %226, %227 : vector<2x1x1xf32>
    %229 = tpu.reciprocal %228 {approx = true} : vector<2x1x1xf32> -> vector<2x1x1xf32>
    %230 = vector.broadcast %229 : vector<2x1x1xf32> to vector<2x1x8xf32>
    %231 = arith.mulf %224, %230 : vector<2x1x8xf32>
    %232 = vector.broadcast %222 : vector<1x8x1xf32> to vector<2x8x8xf32>
    %233 = vector.broadcast %231 : vector<2x1x8xf32> to vector<2x8x8xf32>
    %234 = arith.mulf %232, %233 : vector<2x8x8xf32>
    %235 = arith.addf %215, %234 : vector<2x8x8xf32>
    %cst_34 = arith.constant 1.000000e+00 : f32
    %236 = vector.broadcast %cst_34 : f32 to vector<2x1x8xf32>
    %237 = arith.subf %236, %231 : vector<2x1x8xf32>
    %238 = arith.mulf %218, %237 : vector<2x1x8xf32>
    %c2_i32 = arith.constant 2 : i32
    %239 = vector.broadcast %c2_i32 : i32 to vector<1x8x1xi32>
    %240 = arith.cmpi eq, %196, %239 : vector<1x8x1xi32>
    %241 = arith.extui %240 : vector<1x8x1xi1> to vector<1x8x1xi32>
    %242 = arith.sitofp %241 : vector<1x8x1xi32> to vector<1x8x1xf32>
    %243 = vector.extract_strided_slice %195 {offsets = [0, 2, 0], sizes = [2, 1, 8], strides = [1, 1, 1]} : vector<2x8x8xf32> to vector<2x1x8xf32>
    %244 = arith.mulf %238, %243 : vector<2x1x8xf32>
    %cst_35 = arith.constant dense<0.000000e+00> : vector<2x1xf32>
    %245 = vector.multi_reduction <add>, %244, %cst_35 [2] : vector<2x1x8xf32> to vector<2x1xf32>
    %246 = vector.shape_cast %245 : vector<2x1xf32> to vector<2x1x1xf32>
    %cst_36 = arith.constant 1.000000e-30 : f32
    %247 = vector.broadcast %cst_36 : f32 to vector<2x1x1xf32>
    %248 = arith.addf %246, %247 : vector<2x1x1xf32>
    %249 = tpu.reciprocal %248 {approx = true} : vector<2x1x1xf32> -> vector<2x1x1xf32>
    %250 = vector.broadcast %249 : vector<2x1x1xf32> to vector<2x1x8xf32>
    %251 = arith.mulf %244, %250 : vector<2x1x8xf32>
    %252 = vector.broadcast %242 : vector<1x8x1xf32> to vector<2x8x8xf32>
    %253 = vector.broadcast %251 : vector<2x1x8xf32> to vector<2x8x8xf32>
    %254 = arith.mulf %252, %253 : vector<2x8x8xf32>
    %255 = arith.addf %235, %254 : vector<2x8x8xf32>
    %cst_37 = arith.constant 1.000000e+00 : f32
    %256 = vector.broadcast %cst_37 : f32 to vector<2x1x8xf32>
    %257 = arith.subf %256, %251 : vector<2x1x8xf32>
    %258 = arith.mulf %238, %257 : vector<2x1x8xf32>
    %c3_i32 = arith.constant 3 : i32
    %259 = vector.broadcast %c3_i32 : i32 to vector<1x8x1xi32>
    %260 = arith.cmpi eq, %196, %259 : vector<1x8x1xi32>
    %261 = arith.extui %260 : vector<1x8x1xi1> to vector<1x8x1xi32>
    %262 = arith.sitofp %261 : vector<1x8x1xi32> to vector<1x8x1xf32>
    %263 = vector.extract_strided_slice %195 {offsets = [0, 3, 0], sizes = [2, 1, 8], strides = [1, 1, 1]} : vector<2x8x8xf32> to vector<2x1x8xf32>
    %264 = arith.mulf %258, %263 : vector<2x1x8xf32>
    %cst_38 = arith.constant dense<0.000000e+00> : vector<2x1xf32>
    %265 = vector.multi_reduction <add>, %264, %cst_38 [2] : vector<2x1x8xf32> to vector<2x1xf32>
    %266 = vector.shape_cast %265 : vector<2x1xf32> to vector<2x1x1xf32>
    %cst_39 = arith.constant 1.000000e-30 : f32
    %267 = vector.broadcast %cst_39 : f32 to vector<2x1x1xf32>
    %268 = arith.addf %266, %267 : vector<2x1x1xf32>
    %269 = tpu.reciprocal %268 {approx = true} : vector<2x1x1xf32> -> vector<2x1x1xf32>
    %270 = vector.broadcast %269 : vector<2x1x1xf32> to vector<2x1x8xf32>
    %271 = arith.mulf %264, %270 : vector<2x1x8xf32>
    %272 = vector.broadcast %262 : vector<1x8x1xf32> to vector<2x8x8xf32>
    %273 = vector.broadcast %271 : vector<2x1x8xf32> to vector<2x8x8xf32>
    %274 = arith.mulf %272, %273 : vector<2x8x8xf32>
    %275 = arith.addf %255, %274 : vector<2x8x8xf32>
    %cst_40 = arith.constant 1.000000e+00 : f32
    %276 = vector.broadcast %cst_40 : f32 to vector<2x1x8xf32>
    %277 = arith.subf %276, %271 : vector<2x1x8xf32>
    %278 = arith.mulf %258, %277 : vector<2x1x8xf32>
    %c4_i32 = arith.constant 4 : i32
    %279 = vector.broadcast %c4_i32 : i32 to vector<1x8x1xi32>
    %280 = arith.cmpi eq, %196, %279 : vector<1x8x1xi32>
    %281 = arith.extui %280 : vector<1x8x1xi1> to vector<1x8x1xi32>
    %282 = arith.sitofp %281 : vector<1x8x1xi32> to vector<1x8x1xf32>
    %283 = vector.extract_strided_slice %195 {offsets = [0, 4, 0], sizes = [2, 1, 8], strides = [1, 1, 1]} : vector<2x8x8xf32> to vector<2x1x8xf32>
    %284 = arith.mulf %278, %283 : vector<2x1x8xf32>
    %cst_41 = arith.constant dense<0.000000e+00> : vector<2x1xf32>
    %285 = vector.multi_reduction <add>, %284, %cst_41 [2] : vector<2x1x8xf32> to vector<2x1xf32>
    %286 = vector.shape_cast %285 : vector<2x1xf32> to vector<2x1x1xf32>
    %cst_42 = arith.constant 1.000000e-30 : f32
    %287 = vector.broadcast %cst_42 : f32 to vector<2x1x1xf32>
    %288 = arith.addf %286, %287 : vector<2x1x1xf32>
    %289 = tpu.reciprocal %288 {approx = true} : vector<2x1x1xf32> -> vector<2x1x1xf32>
    %290 = vector.broadcast %289 : vector<2x1x1xf32> to vector<2x1x8xf32>
    %291 = arith.mulf %284, %290 : vector<2x1x8xf32>
    %292 = vector.broadcast %282 : vector<1x8x1xf32> to vector<2x8x8xf32>
    %293 = vector.broadcast %291 : vector<2x1x8xf32> to vector<2x8x8xf32>
    %294 = arith.mulf %292, %293 : vector<2x8x8xf32>
    %295 = arith.addf %275, %294 : vector<2x8x8xf32>
    %cst_43 = arith.constant 1.000000e+00 : f32
    %296 = vector.broadcast %cst_43 : f32 to vector<2x1x8xf32>
    %297 = arith.subf %296, %291 : vector<2x1x8xf32>
    %298 = arith.mulf %278, %297 : vector<2x1x8xf32>
    %c5_i32 = arith.constant 5 : i32
    %299 = vector.broadcast %c5_i32 : i32 to vector<1x8x1xi32>
    %300 = arith.cmpi eq, %196, %299 : vector<1x8x1xi32>
    %301 = arith.extui %300 : vector<1x8x1xi1> to vector<1x8x1xi32>
    %302 = arith.sitofp %301 : vector<1x8x1xi32> to vector<1x8x1xf32>
    %303 = vector.extract_strided_slice %195 {offsets = [0, 5, 0], sizes = [2, 1, 8], strides = [1, 1, 1]} : vector<2x8x8xf32> to vector<2x1x8xf32>
    %304 = arith.mulf %298, %303 : vector<2x1x8xf32>
    %cst_44 = arith.constant dense<0.000000e+00> : vector<2x1xf32>
    %305 = vector.multi_reduction <add>, %304, %cst_44 [2] : vector<2x1x8xf32> to vector<2x1xf32>
    %306 = vector.shape_cast %305 : vector<2x1xf32> to vector<2x1x1xf32>
    %cst_45 = arith.constant 1.000000e-30 : f32
    %307 = vector.broadcast %cst_45 : f32 to vector<2x1x1xf32>
    %308 = arith.addf %306, %307 : vector<2x1x1xf32>
    %309 = tpu.reciprocal %308 {approx = true} : vector<2x1x1xf32> -> vector<2x1x1xf32>
    %310 = vector.broadcast %309 : vector<2x1x1xf32> to vector<2x1x8xf32>
    %311 = arith.mulf %304, %310 : vector<2x1x8xf32>
    %312 = vector.broadcast %302 : vector<1x8x1xf32> to vector<2x8x8xf32>
    %313 = vector.broadcast %311 : vector<2x1x8xf32> to vector<2x8x8xf32>
    %314 = arith.mulf %312, %313 : vector<2x8x8xf32>
    %315 = arith.addf %295, %314 : vector<2x8x8xf32>
    %cst_46 = arith.constant 1.000000e+00 : f32
    %316 = vector.broadcast %cst_46 : f32 to vector<2x1x8xf32>
    %317 = arith.subf %316, %311 : vector<2x1x8xf32>
    %318 = arith.mulf %298, %317 : vector<2x1x8xf32>
    %c6_i32 = arith.constant 6 : i32
    %319 = vector.broadcast %c6_i32 : i32 to vector<1x8x1xi32>
    %320 = arith.cmpi eq, %196, %319 : vector<1x8x1xi32>
    %321 = arith.extui %320 : vector<1x8x1xi1> to vector<1x8x1xi32>
    %322 = arith.sitofp %321 : vector<1x8x1xi32> to vector<1x8x1xf32>
    %323 = vector.extract_strided_slice %195 {offsets = [0, 6, 0], sizes = [2, 1, 8], strides = [1, 1, 1]} : vector<2x8x8xf32> to vector<2x1x8xf32>
    %324 = arith.mulf %318, %323 : vector<2x1x8xf32>
    %cst_47 = arith.constant dense<0.000000e+00> : vector<2x1xf32>
    %325 = vector.multi_reduction <add>, %324, %cst_47 [2] : vector<2x1x8xf32> to vector<2x1xf32>
    %326 = vector.shape_cast %325 : vector<2x1xf32> to vector<2x1x1xf32>
    %cst_48 = arith.constant 1.000000e-30 : f32
    %327 = vector.broadcast %cst_48 : f32 to vector<2x1x1xf32>
    %328 = arith.addf %326, %327 : vector<2x1x1xf32>
    %329 = tpu.reciprocal %328 {approx = true} : vector<2x1x1xf32> -> vector<2x1x1xf32>
    %330 = vector.broadcast %329 : vector<2x1x1xf32> to vector<2x1x8xf32>
    %331 = arith.mulf %324, %330 : vector<2x1x8xf32>
    %332 = vector.broadcast %322 : vector<1x8x1xf32> to vector<2x8x8xf32>
    %333 = vector.broadcast %331 : vector<2x1x8xf32> to vector<2x8x8xf32>
    %334 = arith.mulf %332, %333 : vector<2x8x8xf32>
    %335 = arith.addf %315, %334 : vector<2x8x8xf32>
    %cst_49 = arith.constant 1.000000e+00 : f32
    %336 = vector.broadcast %cst_49 : f32 to vector<2x1x8xf32>
    %337 = arith.subf %336, %331 : vector<2x1x8xf32>
    %338 = arith.mulf %318, %337 : vector<2x1x8xf32>
    %c7_i32_50 = arith.constant 7 : i32
    %339 = vector.broadcast %c7_i32_50 : i32 to vector<1x8x1xi32>
    %340 = arith.cmpi eq, %196, %339 : vector<1x8x1xi32>
    %341 = arith.extui %340 : vector<1x8x1xi1> to vector<1x8x1xi32>
    %342 = arith.sitofp %341 : vector<1x8x1xi32> to vector<1x8x1xf32>
    %343 = vector.extract_strided_slice %195 {offsets = [0, 7, 0], sizes = [2, 1, 8], strides = [1, 1, 1]} : vector<2x8x8xf32> to vector<2x1x8xf32>
    %344 = arith.mulf %338, %343 : vector<2x1x8xf32>
    %cst_51 = arith.constant dense<0.000000e+00> : vector<2x1xf32>
    %345 = vector.multi_reduction <add>, %344, %cst_51 [2] : vector<2x1x8xf32> to vector<2x1xf32>
    %346 = vector.shape_cast %345 : vector<2x1xf32> to vector<2x1x1xf32>
    %cst_52 = arith.constant 1.000000e-30 : f32
    %347 = vector.broadcast %cst_52 : f32 to vector<2x1x1xf32>
    %348 = arith.addf %346, %347 : vector<2x1x1xf32>
    %349 = tpu.reciprocal %348 {approx = true} : vector<2x1x1xf32> -> vector<2x1x1xf32>
    %350 = vector.broadcast %349 : vector<2x1x1xf32> to vector<2x1x8xf32>
    %351 = arith.mulf %344, %350 : vector<2x1x8xf32>
    %352 = vector.broadcast %342 : vector<1x8x1xf32> to vector<2x8x8xf32>
    %353 = vector.broadcast %351 : vector<2x1x8xf32> to vector<2x8x8xf32>
    %354 = arith.mulf %352, %353 : vector<2x8x8xf32>
    %355 = arith.addf %335, %354 : vector<2x8x8xf32>
    %cst_53 = arith.constant 0.000000e+00 : f32
    %356 = vector.broadcast %cst_53 : f32 to vector<2x8x8xf32>
    %357 = vector.extract_strided_slice %139 {offsets = [0, 0, 0], sizes = [2, 8, 1], strides = [1, 1, 1]} : vector<2x8x8xf32> to vector<2x8x1xf32>
    %358 = vector.extract_strided_slice %355 {offsets = [0, 0, 0], sizes = [2, 1, 8], strides = [1, 1, 1]} : vector<2x8x8xf32> to vector<2x1x8xf32>
    %359 = vector.broadcast %357 : vector<2x8x1xf32> to vector<2x8x8xf32>
    %360 = vector.broadcast %358 : vector<2x1x8xf32> to vector<2x8x8xf32>
    %361 = arith.mulf %359, %360 : vector<2x8x8xf32>
    %362 = arith.addf %356, %361 : vector<2x8x8xf32>
    %363 = vector.extract_strided_slice %139 {offsets = [0, 0, 1], sizes = [2, 8, 1], strides = [1, 1, 1]} : vector<2x8x8xf32> to vector<2x8x1xf32>
    %364 = vector.extract_strided_slice %355 {offsets = [0, 1, 0], sizes = [2, 1, 8], strides = [1, 1, 1]} : vector<2x8x8xf32> to vector<2x1x8xf32>
    %365 = vector.broadcast %363 : vector<2x8x1xf32> to vector<2x8x8xf32>
    %366 = vector.broadcast %364 : vector<2x1x8xf32> to vector<2x8x8xf32>
    %367 = arith.mulf %365, %366 : vector<2x8x8xf32>
    %368 = arith.addf %362, %367 : vector<2x8x8xf32>
    %369 = vector.extract_strided_slice %139 {offsets = [0, 0, 2], sizes = [2, 8, 1], strides = [1, 1, 1]} : vector<2x8x8xf32> to vector<2x8x1xf32>
    %370 = vector.extract_strided_slice %355 {offsets = [0, 2, 0], sizes = [2, 1, 8], strides = [1, 1, 1]} : vector<2x8x8xf32> to vector<2x1x8xf32>
    %371 = vector.broadcast %369 : vector<2x8x1xf32> to vector<2x8x8xf32>
    %372 = vector.broadcast %370 : vector<2x1x8xf32> to vector<2x8x8xf32>
    %373 = arith.mulf %371, %372 : vector<2x8x8xf32>
    %374 = arith.addf %368, %373 : vector<2x8x8xf32>
    %375 = vector.extract_strided_slice %139 {offsets = [0, 0, 3], sizes = [2, 8, 1], strides = [1, 1, 1]} : vector<2x8x8xf32> to vector<2x8x1xf32>
    %376 = vector.extract_strided_slice %355 {offsets = [0, 3, 0], sizes = [2, 1, 8], strides = [1, 1, 1]} : vector<2x8x8xf32> to vector<2x1x8xf32>
    %377 = vector.broadcast %375 : vector<2x8x1xf32> to vector<2x8x8xf32>
    %378 = vector.broadcast %376 : vector<2x1x8xf32> to vector<2x8x8xf32>
    %379 = arith.mulf %377, %378 : vector<2x8x8xf32>
    %380 = arith.addf %374, %379 : vector<2x8x8xf32>
    %381 = vector.extract_strided_slice %139 {offsets = [0, 0, 4], sizes = [2, 8, 1], strides = [1, 1, 1]} : vector<2x8x8xf32> to vector<2x8x1xf32>
    %382 = vector.extract_strided_slice %355 {offsets = [0, 4, 0], sizes = [2, 1, 8], strides = [1, 1, 1]} : vector<2x8x8xf32> to vector<2x1x8xf32>
    %383 = vector.broadcast %381 : vector<2x8x1xf32> to vector<2x8x8xf32>
    %384 = vector.broadcast %382 : vector<2x1x8xf32> to vector<2x8x8xf32>
    %385 = arith.mulf %383, %384 : vector<2x8x8xf32>
    %386 = arith.addf %380, %385 : vector<2x8x8xf32>
    %387 = vector.extract_strided_slice %139 {offsets = [0, 0, 5], sizes = [2, 8, 1], strides = [1, 1, 1]} : vector<2x8x8xf32> to vector<2x8x1xf32>
    %388 = vector.extract_strided_slice %355 {offsets = [0, 5, 0], sizes = [2, 1, 8], strides = [1, 1, 1]} : vector<2x8x8xf32> to vector<2x1x8xf32>
    %389 = vector.broadcast %387 : vector<2x8x1xf32> to vector<2x8x8xf32>
    %390 = vector.broadcast %388 : vector<2x1x8xf32> to vector<2x8x8xf32>
    %391 = arith.mulf %389, %390 : vector<2x8x8xf32>
    %392 = arith.addf %386, %391 : vector<2x8x8xf32>
    %393 = vector.extract_strided_slice %139 {offsets = [0, 0, 6], sizes = [2, 8, 1], strides = [1, 1, 1]} : vector<2x8x8xf32> to vector<2x8x1xf32>
    %394 = vector.extract_strided_slice %355 {offsets = [0, 6, 0], sizes = [2, 1, 8], strides = [1, 1, 1]} : vector<2x8x8xf32> to vector<2x1x8xf32>
    %395 = vector.broadcast %393 : vector<2x8x1xf32> to vector<2x8x8xf32>
    %396 = vector.broadcast %394 : vector<2x1x8xf32> to vector<2x8x8xf32>
    %397 = arith.mulf %395, %396 : vector<2x8x8xf32>
    %398 = arith.addf %392, %397 : vector<2x8x8xf32>
    %399 = vector.extract_strided_slice %139 {offsets = [0, 0, 7], sizes = [2, 8, 1], strides = [1, 1, 1]} : vector<2x8x8xf32> to vector<2x8x1xf32>
    %400 = vector.extract_strided_slice %355 {offsets = [0, 7, 0], sizes = [2, 1, 8], strides = [1, 1, 1]} : vector<2x8x8xf32> to vector<2x1x8xf32>
    %401 = vector.broadcast %399 : vector<2x8x1xf32> to vector<2x8x8xf32>
    %402 = vector.broadcast %400 : vector<2x1x8xf32> to vector<2x8x8xf32>
    %403 = arith.mulf %401, %402 : vector<2x8x8xf32>
    %404 = arith.addf %398, %403 : vector<2x8x8xf32>
    %cst_54 = arith.constant dense<0.000000e+00> : vector<2x8xf32>
    %405 = vector.multi_reduction <add>, %404, %cst_54 [1] : vector<2x8x8xf32> to vector<2x8xf32>
    %406 = vector.shape_cast %405 : vector<2x8xf32> to vector<2x1x8xf32>
    %407 = vector.broadcast %406 : vector<2x1x8xf32> to vector<2x8x8xf32>
    %408 = arith.divf %404, %407 : vector<2x8x8xf32>
    %c0_55 = arith.constant 0 : index
    %c0_56 = arith.constant 0 : index
    %c0_57 = arith.constant 0 : index
    %409 = vector.load %arg4[%c0_55, %c0_56, %c0_57] : memref<2x8x8xf32, #tpu.memory_space<vmem>>, vector<2x8x8xf32>
    tpu.vector_store %arg4[%c0_55, %c0_56, %c0_57], %408 {strides = array<i32>} : memref<2x8x8xf32, #tpu.memory_space<vmem>>, vector<2x8x8xf32>,
    return
  }
  func.func @transform_0(%arg0: i32) -> (i32, i32, i32) {
    %c0_i32 = arith.constant 0 : i32
    %c0_i32_0 = arith.constant 0 : i32
    %c0_i32_1 = arith.constant 0 : i32
    return %arg0, %c0_i32, %c0_i32_0 : i32, i32, i32
  }
  func.func @transform_1(%arg0: i32) -> (i32, i32, i32) {
    %c0_i32 = arith.constant 0 : i32
    %c0_i32_0 = arith.constant 0 : i32
    %c0_i32_1 = arith.constant 0 : i32
    return %arg0, %c0_i32, %c0_i32_0 : i32, i32, i32
  }
  func.func @transform_2(%arg0: i32) -> (i32, i32) {
    %c0_i32 = arith.constant 0 : i32
    %c0_i32_0 = arith.constant 0 : i32
    %c0_i32_1 = arith.constant 0 : i32
    return %c0_i32, %c0_i32_0 : i32, i32
  }
  func.func @transform_3(%arg0: i32) -> (i32, i32, i32) {
    %c0_i32 = arith.constant 0 : i32
    %c0_i32_0 = arith.constant 0 : i32
    %c0_i32_1 = arith.constant 0 : i32
    return %arg0, %c0_i32, %c0_i32_0 : i32, i32, i32
  }
}

</mosaic_0001>

<llo_original>
// kernel: custom-call.57
$region0: #{custom-call.57}
  %s0 = inlined_call_operand.vmem [shape: f32[2,16,8], index: 0, kind: input, shape index: {}]
  %s1 = inlined_call_operand.vmem [shape: f32[2,16,8], index: 1, kind: output, shape index: {0}]
  %s2 = inlined_call_operand.vmem [shape: f32[2,8], index: 2, kind: output, shape index: {1}]
  %3 = xla_tuple %s1, %s2
  $region1: #{custom-call.57} parent=0
    #allocation0 [shape = 'u8[16384]{0}', space=vmem, size = 0x4000, scoped, tag = 'operand span for operand 0']
    #allocation1 [shape = 'u8[16384]{0}', space=vmem, size = 0x4000, scoped, tag = 'operand span for operand 1']
    #allocation2 [shape = 'u8[4096]{0}', space=vmem, size = 0x1000, scoped, tag = 'operand span for operand 2']
    #allocation3 [shape = 'u8[2048]{0}', space=vmem, size = 0x800, scoped, tag = 'packed  for operand 2']
    loop: start=0, step=1, limit=4
    $region2: #{custom-call.57} parent=1 // loop_pre_header
      _
    $region3: #{custom-call.57} parent=1 // loop_header
      %s5 = sphi 0, %s9
      %p6 = scmp.ge.s32.totalorder %s5, 4
      %s12 = sphi 0, %s31
      %s13 = sphi 0, %s27
      %s14 = sphi 0, %s23
      %s15 = sphi 0, %s12
      %s16 = sphi 0, %s13
      %s17 = sphi 0, %s14
      %s18 = sphi 0, %s15
      %s19 = sphi 0, %s16
      %s20 = sphi 0, %s17
      %s46 = sphi 0, %s48
      %s49 = sphi 0, %s46
      %s50 = sphi 0, %s49
      %s66 = sphi 0, %s50
    $region4: #{custom-call.57} parent=1 // loop_header_branch
      %8 = sbr.rel (%p6) target = $region8
    $region5: #{custom-call.57} parent=1 // loop_body
      %s10 = ssub.s32 %s5, 1
      %s11 = ssub.s32 %s5, 2
      %s21 = sadd.s32 1, %s14
      %p22 = scmp.ge.s32.totalorder %s21, 1
      %s23 = scalar_select %p22, 0, %s21
      %s24 = sadd.s32 1, %s13
      %s25 = scalar_select %p22, %s24, %s13
      %p26 = scmp.ge.s32.totalorder %s25, 1
      %s27 = scalar_select %p26, 0, %s25
      %s28 = sadd.s32 1, %s12
      %s29 = scalar_select %p26, %s28, %s12
      %p30 = scmp.ge.s32.totalorder %s29, 2
      %s31 = scalar_select %p30, 0, %s29
      %p32 = scmp.lt.s32.totalorder %s12, 0
      %s33 = ssub.s32 0, %s12
      %s34 = scalar_select %p32, %s33, %s12
      %s35 = sshrl.u32 %s34, 3
      %s36 = ssub.s32 0, %s35
      %s37 = scalar_select %p32, %s36, %s35
      %p38 = scmp.lt.s32.totalorder %s31, 0
      %s39 = ssub.s32 0, %s31
      %s40 = scalar_select %p38, %s39, %s31
      %s41 = sshrl.u32 %s40, 3
      %s42 = ssub.s32 0, %s41
      %s43 = scalar_select %p38, %s42, %s41
      %s44 = ssub.s32 %s37, %s43
      %p45 = scmp.eq.s32.totalorder %s44, 0
      %s47 = sadd.s32 %s46, 1
      %s48 = scalar_select %p45, %s46, %s47
      %p51 = pneg %p45
      %p52 = scmp.eq.s32.totalorder %s5, 1
      %p53 = por %p51, %p52
      %p54 = scmp.ne.s32.totalorder %s46, %s49
      %p55 = scmp.eq.s32.totalorder %s5, 0
      %p56 = por %p54, %p55
      %p57 = scmp.ne.s32.totalorder %s46, %s49
      %p58 = scmp.eq.s32.totalorder %s10, 1
      %p59 = por %p57, %p58
      %p60 = scmp.ne.s32.totalorder %s49, %s50
      %p61 = scmp.eq.s32.totalorder %s10, 0
      %p62 = por %p60, %p61
      %p63 = scmp.ne.s32.totalorder %s49, %s50
      %p64 = scmp.eq.s32.totalorder %s11, 1
      %p65 = por %p63, %p64
      %p67 = scmp.ne.s32.totalorder %s50, %s66
      %p68 = scmp.eq.s32.totalorder %s11, 0
      %p69 = por %p67, %p68
      %p70 = scmp.le.s32.totalorder 1, %s5
      %p71 = scmp.lt.s32.totalorder %s5, 3
      %p72 = pnand %p70, %p71
      %p73 = pneg %p72
      // Predicated region
      $region9: #{custom-call.57} parent=5 // pred_check
        _
      $region10: #{custom-call.57} parent=5 // pred_check_branch
        %75 = sbr.rel (%p72) target = $region12
      $region11: #{custom-call.57} parent=5 // pred_region
        %s76 = ssub.s32 %s5, 1
      $region12: #{custom-call.57} parent=5 // pred_fallthru
        _
      %p77 = scmp.lt.s32.totalorder %s5, 2
      // Predicated region
      $region13: #{custom-call.57} parent=5 // pred_check
        %p78 = pneg %p77
      $region14: #{custom-call.57} parent=5 // pred_check_branch
        %80 = sbr.rel (%p78) target = $region16
      $region15: #{custom-call.57} parent=5 // pred_region
        %s81 = sand.u32 %s5, 1
        %s82 = sand.u32 %s5, 1
        %s83 = smul.addr %s82, 16
        %s84 = scalar_lea.vmem [#allocation0], %s83
        %s85 = smul.u32 2, %s13
        %s86 = sadd.s32 %s14, %s85
        %s87 = smul.addr %s12, 2
        %s88 = sadd.s32 %s86, %s87
        %s89 = smul.addr %s88, 8
        %s90 = scalar_lea.vmem %s0, %s89
        // Predicated region
        $region17: #{custom-call.57} parent=15 // pred_check
          _
        $region18: #{custom-call.57} parent=15 // pred_check_branch
          %92 = sbr.rel (0) target = $region20
        $region19: #{custom-call.57} parent=15 // pred_region
          // Predicated region
          $region21: #{custom-call.57} parent=19 // pred_check
            _
          $region22: #{custom-call.57} parent=19 // pred_check_branch
            %94 = sbr.rel (0) target = $region24
          $region23: #{custom-call.57} parent=19 // pred_region
            // Predicated region
            $region36: #{custom-call.57} parent=23 // pred_check
              _
            $region37: #{custom-call.57} parent=23 // pred_check_branch
              %112 = sbr.rel (0) target = $region39
            $region38: #{custom-call.57} parent=23 // pred_region
              loop: start=0, step=1, limit=1
              $region40: #{custom-call.57} parent=38 // loop_pre_header
                _
              $region41: #{custom-call.57} parent=38 // loop_header
                %s114 = sphi 0, %s118
                %p115 = scmp.ge.s32.totalorder %s114, 1
                %s119 = sphi %s90, %s90
                %s120 = sphi %s84, %s84
              $region42: #{custom-call.57} parent=38 // loop_header_branch
                %117 = sbr.rel (%p115) target = $region46
              $region43: #{custom-call.57} parent=38 // loop_body
                %v121 = vld [vmem:[%s119] sm:$0xff]
                %122 = vst [vmem:[%s120] sm:$0xff] %v121
                %v123 = vld [vmem:[%s119 + $0x8] sm:$0xff]
                %124 = vst [vmem:[%s120 + $0x8] sm:$0xff] %v123
              $region44: #{custom-call.57} parent=38 // loop_footer
                %s118 = sadd.s32 1, %s114
              $region45: #{custom-call.57} parent=38 // loop_footer_branch
                %113 = sbr.rel target = $region41
              $region46: #{custom-call.57} parent=38 // loop_exit
                _
            $region39: #{custom-call.57} parent=23 // pred_fallthru
              _
            // Predicated region
            $region47: #{custom-call.57} parent=23 // pred_check
              _
            $region48: #{custom-call.57} parent=23 // pred_check_branch
              %126 = sbr.rel target = $region50
            $region49: #{custom-call.57} parent=23 // pred_region
              _
            $region50: #{custom-call.57} parent=23 // pred_fallthru
              _
          $region24: #{custom-call.57} parent=19 // pred_fallthru
            _
          // Predicated region
          $region25: #{custom-call.57} parent=19 // pred_check
            _
          $region26: #{custom-call.57} parent=19 // pred_check_branch
            %96 = sbr.rel target = $region28
          $region27: #{custom-call.57} parent=19 // pred_region
            %s98 = ssub.s32 256, 1
            loop: start=0, step=1, limit=1
            $region29: #{custom-call.57} parent=27 // loop_pre_header
              _
            $region30: #{custom-call.57} parent=27 // loop_header
              %s100 = sphi 0, %s104
              %p101 = scmp.ge.s32.totalorder %s100, 1
              %s105 = sphi %s90, %s90
              %s106 = sphi %s84, %s84
            $region31: #{custom-call.57} parent=27 // loop_header_branch
              %103 = sbr.rel (%p101) target = $region35
            $region32: #{custom-call.57} parent=27 // loop_body
              %v107 = vld [vmem:[%s105] sm:%s98]
              %108 = vst [vmem:[%s106] sm:%s98] %v107
              %v109 = vld [vmem:[%s105 + $0x8] sm:%s98]
              %110 = vst [vmem:[%s106 + $0x8] sm:%s98] %v109
            $region33: #{custom-call.57} parent=27 // loop_footer
              %s104 = sadd.s32 1, %s100
            $region34: #{custom-call.57} parent=27 // loop_footer_branch
              %99 = sbr.rel target = $region30
            $region35: #{custom-call.57} parent=27 // loop_exit
              _
          $region28: #{custom-call.57} parent=19 // pred_fallthru
            _
        $region20: #{custom-call.57} parent=15 // pred_fallthru
          _
        %127 = vnop
      $region16: #{custom-call.57} parent=5 // pred_fallthru
        _
      %p128 = scmp.le.s32.totalorder 1, %s5
      %p129 = scmp.lt.s32.totalorder %s5, 3
      %p130 = pnand %p128, %p129
      %p131 = pneg %p130
      // Predicated region
      $region51: #{custom-call.57} parent=5 // pred_check
        _
      $region52: #{custom-call.57} parent=5 // pred_check_branch
        %133 = sbr.rel (%p130) target = $region54
      $region53: #{custom-call.57} parent=5 // pred_region
        #allocation4 [shape = 'f32[16,128]{1,0}', space=vmem, size = 0x2000, scoped, tag = 'scratch for Householder reflectors']
        %s134 = ssub.s32 %s5, 1
        %s135 = sand.u32 %s10, 1
        %s136 = sand.u32 %s10, 1
        %s137 = smul.addr %s136, 16
        %s138 = scalar_lea.vmem [#allocation0], %s137
        %s139 = sand.u32 %s10, 1
        %s140 = sand.u32 %s10, 1
        %s141 = smul.addr %s140, 16
        %s142 = scalar_lea.vmem [#allocation0], %s141
        %s143 = sand.u32 %s10, 1
        %s144 = sand.u32 %s10, 1
        %s145 = smul.addr %s144, 16
        %s146 = scalar_lea.vmem [#allocation1], %s145
        %p147 = pneg %p62
        %p148 = pneg %p59
        %s149 = sand.u32 %s49, 1
        %s150 = sand.u32 %s49, 1
        %s151 = smul.addr %s150, 2
        %s152 = scalar_lea.vmem [#allocation3], %s151
        %s153 = smul.u32 2, %s16
        %s154 = smul.u32 2, %s16
        %p155 = scmp.lt.s32.totalorder %s15, 0
        %s156 = ssub.s32 0, %s15
        %s157 = scalar_select %p155, %s156, %s15
        %s158 = sshrl.u32 %s157, 3
        %s159 = ssub.s32 0, %s158
        %s160 = scalar_select %p155, %s159, %s158
        %s161 = sand.u32 %s15, 7
        %s162 = scalar_lea.vmem [#allocation2], %s161
        %v163 = vld [vmem:[%s138] sm:$0xff]
        %164 = vst [vmem:[%s146] sm:$0xff] %v163
        %s165 = scalar_lea.vmem %s146, 8 [#allocation1]
        %s166 = scalar_lea.vmem %s138, 8 [#allocation0]
        %v167 = vld [vmem:[%s166] sm:$0xff]
        %168 = vst [vmem:[%s165] sm:$0xff] %v167
        %169 = vst [vmem:[%s162] sm:$0x1] 0.0
        loop: start=0, step=1, limit=8
        $region55: #{custom-call.57} parent=53 // loop_pre_header
          _
        $region56: #{custom-call.57} parent=53 // loop_header
          %s171 = sphi 0, %s175
          %p172 = scmp.ge.s32.totalorder %s171, 8
        $region57: #{custom-call.57} parent=53 // loop_header_branch
          %174 = sbr.rel (%p172) target = $region61
        $region58: #{custom-call.57} parent=53 // loop_body
          %v176 = vld [vmem:[%s146] sm:$0xff]
          %v177 = vlaneseq
          %v178 = vshrl.u32 %v177, 7
          %v180 = vstv %s171
          %vm181 = vcmp.gt.s32.totalorder %v178, %v180
          %v182 = vsel %vm181, %v176, 0.0
          %v183 = vmul.f32 %v182, %v182
          %s184 = scalar_lea.vmem %s146, 8 [#allocation1]
          %v185 = vld [vmem:[%s184] sm:$0xff]
          %v186 = vlaneseq
          %v187 = vshrl.u32 %v186, 7
          %v188 = vadd.s32 %v187, 8
          %v189 = vstv %s171
          %vm190 = vcmp.gt.s32.totalorder %v188, %v189
          %vm191 = vcmp.lt.s32.totalorder %v188, 16
          %vm192 = vmand %vm190, %vm191
          %v193 = vsel %vm192, %v185, 0.0
          %v194 = vmul.f32 %v193, %v193
          %v195 = vadd.f32 %v183, %v194
          %v196 = vrot.slane %v195, 4
          %v197 = vadd.f32 %v195, %v196
          %v198 = vrot.slane %v197, 2
          %v199 = vadd.f32 %v197, %v198
          %v200 = vrot.slane %v199, 1
          %v201 = vadd.f32 %v199, %v200
          %v202 = vrsqrt.pop %v201
          %v203 = vmul.f32 %v202, %v201
          %v204 = vmul.f32 %v203, %v202
          %v205 = vmul.f32 0.5, %v204
          %v206 = vsub.f32 1.5, %v205
          %v207 = vmul.f32 %v202, %v206
          %v208 = vmul.f32 %v201, %v207
          %vm209 = vcmp.eq.f32.partialorder %v201, inf
          %v210 = vsel %vm209, %v201, %v208
          %vm211 = vcmp.eq.f32.partialorder %v201, 0.0
          %v212 = vand.u32 %v201, 2147483648
          %v213 = vsel %vm211, %v212, %v210
          %vm214 = vcmp.eq.f32.partialorder %v201, 0.0
          %s215 = sshrl.u32 %s171, 3
          %s216 = sand.u32 %s171, 7
          %s217 = smul.addr %s215, 8
          %s218 = sadd.s32 %s216, %s217
          %s219 = scalar_lea.vmem %s146, %s218 [#allocation1]
          %v220 = vld [vmem:[%s219] ss:$0 sm:$0xff]
          %v221 = vand.u32 2147483647, %v220
          %v222 = vmax.f32 %v221, 0.0
          %v223 = vand.u32 2147483647, %v213
          %v224 = vmax.f32 %v222, %v223
          %v225 = vrcp.pop %v224
          %v226 = vmul.f32 %v224, %v225
          %v227 = vsub.f32 1.0, %v226
          %v228 = vmul.f32 %v225, %v227
          %v229 = vadd.f32 %v225, %v228
          %vm230 = vweird.f32 %v224
          %vm231 = vweird.f32 %v225
          %vm232 = vmor %vm230, %vm231
          %v233 = vsel %vm232, %v225, %v229
          %v234 = vand.u32 2147483647, %v224
          %vm235 = vcmp.eq.f32.partialorder %v234, 8.507059e+37
          %v236 = vand.u32 %v224, 2147483648
          %v237 = vor.u32 1.1754944e-38, %v236
          %v238 = vsel %vm235, %v237, %v233
          %v239 = vmul.f32 %v221, %v238
          %v240 = vmul.f32 %v239, %v239
          %v241 = vrcp.pop %v224
          %v242 = vmul.f32 %v224, %v241
          %v243 = vsub.f32 1.0, %v242
          %v244 = vmul.f32 %v241, %v243
          %v245 = vadd.f32 %v241, %v244
          %vm246 = vweird.f32 %v224
          %vm247 = vweird.f32 %v241
          %vm248 = vmor %vm246, %vm247
          %v249 = vsel %vm248, %v241, %v245
          %v250 = vand.u32 2147483647, %v224
          %vm251 = vcmp.eq.f32.partialorder %v250, 8.507059e+37
          %v252 = vand.u32 %v224, 2147483648
          %v253 = vor.u32 1.1754944e-38, %v252
          %v254 = vsel %vm251, %v253, %v249
          %v255 = vmul.f32 0.0, %v254
          %v256 = vmul.f32 %v255, %v255
          %v257 = vadd.f32 %v240, %v256
          %v258 = vrcp.pop %v224
          %v259 = vmul.f32 %v224, %v258
          %v260 = vsub.f32 1.0, %v259
          %v261 = vmul.f32 %v258, %v260
          %v262 = vadd.f32 %v258, %v261
          %vm263 = vweird.f32 %v224
          %vm264 = vweird.f32 %v258
          %vm265 = vmor %vm263, %vm264
          %v266 = vsel %vm265, %v258, %v262
          %v267 = vand.u32 2147483647, %v224
          %vm268 = vcmp.eq.f32.partialorder %v267, 8.507059e+37
          %v269 = vand.u32 %v224, 2147483648
          %v270 = vor.u32 1.1754944e-38, %v269
          %v271 = vsel %vm268, %v270, %v266
          %v272 = vmul.f32 %v223, %v271
          %v273 = vmul.f32 %v272, %v272
          %v274 = vadd.f32 %v257, %v273
          %vm275 = vcmp.eq.f32.partialorder %v224, 0.0
          %v276 = vrsqrt.pop %v274
          %v277 = vmul.f32 %v276, %v274
          %v278 = vmul.f32 %v277, %v276
          %v279 = vmul.f32 0.5, %v278
          %v280 = vsub.f32 1.5, %v279
          %v281 = vmul.f32 %v276, %v280
          %v282 = vmul.f32 %v274, %v281
          %vm283 = vcmp.eq.f32.partialorder %v274, inf
          %v284 = vsel %vm283, %v274, %v282
          %vm285 = vcmp.eq.f32.partialorder %v274, 0.0
          %v286 = vand.u32 %v274, 2147483648
          %v287 = vsel %vm285, %v286, %v284
          %v288 = vmul.f32 %v224, %v287
          %v289 = vsel %vm275, 0.0, %v288
          %vm290 = vcmp.lt.f32.partialorder %v220, 0.0
          %v291 = vxor.u32 %v289, 2147483648
          %v292 = vsel %vm290, %v289, %v291
          %v293 = vsub.f32 %v292, %v220
          %v294 = vrcp.pop %v292
          %v295 = vmul.f32 %v292, %v294
          %v296 = vsub.f32 1.0, %v295
          %v297 = vmul.f32 %v294, %v296
          %v298 = vadd.f32 %v294, %v297
          %vm299 = vweird.f32 %v292
          %vm300 = vweird.f32 %v294
          %vm301 = vmor %vm299, %vm300
          %v302 = vsel %vm301, %v294, %v298
          %v303 = vand.u32 2147483647, %v292
          %vm304 = vcmp.eq.f32.partialorder %v303, 8.507059e+37
          %v305 = vand.u32 %v292, 2147483648
          %v306 = vor.u32 1.1754944e-38, %v305
          %v307 = vsel %vm304, %v306, %v302
          %v308 = vmul.f32 %v293, %v307
          %v309 = vsel %vm214, %v220, %v292
          %v310 = vsel %vm214, 0.0, %v308
          %v311 = vsub.f32 %v220, %v309
          %s312 = smov %s146
          %v313 = vlaneseq
          %v314 = vshrl.u32 %v313, 7
          %v315 = vmov %v314
          %v316 = vld [vmem:[%s312] sm:$0xff]
          %v318 = vstv %s171
          %vm319 = vcmp.gt.s32.totalorder %v315, %v318
          %v320 = vsel %vm319, %v316, 0.0
          %v321 = vrcp.pop %v311
          %v322 = vmul.f32 %v311, %v321
          %v323 = vsub.f32 1.0, %v322
          %v324 = vmul.f32 %v321, %v323
          %v325 = vadd.f32 %v321, %v324
          %vm326 = vweird.f32 %v311
          %vm327 = vweird.f32 %v321
          %vm328 = vmor %vm326, %vm327
          %v329 = vsel %vm328, %v321, %v325
          %v330 = vand.u32 2147483647, %v311
          %vm331 = vcmp.eq.f32.partialorder %v330, 8.507059e+37
          %v332 = vand.u32 %v311, 2147483648
          %v333 = vor.u32 1.1754944e-38, %v332
          %v334 = vsel %vm331, %v333, %v329
          %v335 = vmul.f32 %v320, %v334
          %v336 = vsel %vm214, 0.0, %v335
          %v337 = vstv %s171
          %v338 = vlaneseq
          %v339 = vand.u32 %v338, 127
          %vm340 = vcmp.eq.s32.totalorder %v339, %v337
          %v341 = vsel %vm340, %v336, 0.0
          %342 = vadd.xlane.f32.xlu0 %v341
          %v343 = vpop.xlane.xlu0 %342
          %344 = vst [vmem:[#allocation4] sm:$0xff] %v343
          %s345 = scalar_lea.vmem %s312, 8
          %v346 = vld [vmem:[%s345] sm:$0xff]
          %v347 = vadd.s32 %v315, 8
          %v348 = vstv %s171
          %vm349 = vcmp.gt.s32.totalorder %v347, %v348
          %vm350 = vcmp.lt.s32.totalorder %v347, 16
          %vm351 = vmand %vm349, %vm350
          %v352 = vsel %vm351, %v346, 0.0
          %v353 = vrcp.pop %v311
          %v354 = vmul.f32 %v311, %v353
          %v355 = vsub.f32 1.0, %v354
          %v356 = vmul.f32 %v353, %v355
          %v357 = vadd.f32 %v353, %v356
          %vm358 = vweird.f32 %v311
          %vm359 = vweird.f32 %v353
          %vm360 = vmor %vm358, %vm359
          %v361 = vsel %vm360, %v353, %v357
          %v362 = vand.u32 2147483647, %v311
          %vm363 = vcmp.eq.f32.partialorder %v362, 8.507059e+37
          %v364 = vand.u32 %v311, 2147483648
          %v365 = vor.u32 1.1754944e-38, %v364
          %v366 = vsel %vm363, %v365, %v361
          %v367 = vmul.f32 %v352, %v366
          %v368 = vsel %vm214, 0.0, %v367
          %v369 = vstv %s171
          %v370 = vlaneseq
          %v371 = vand.u32 %v370, 127
          %vm372 = vcmp.eq.s32.totalorder %v371, %v369
          %v373 = vsel %vm372, %v368, 0.0
          %374 = vadd.xlane.f32.xlu0 %v373
          %v375 = vpop.xlane.xlu0 %374
          %s376 = scalar_lea.vmem [#allocation4], 8
          %377 = vst [vmem:[%s376] sm:$0xff] %v375
          %s378 = scalar_lea.vmem [#allocation4], %s171
          %379 = vst [vmem:[%s378] sm:$0x1] 1.0
          %v380 = vstv %s171
          %v381 = vlaneseq
          %v382 = vand.u32 %v381, 127
          %vm383 = vcmp.eq.s32.totalorder %v382, %v380
          %v384 = vsel %vm383, %v310, 0.0
          %385 = vadd.xlane.f32.xlu0 %v384
          %v386 = vpop.xlane.xlu0 %385
          %v387 = vstv %s171
          %v388 = vlaneseq
          %v389 = vand.u32 %v388, 127
          %vm390 = vcmp.eq.s32.totalorder %v389, %v387
          %v391 = vld [vmem:[%s162] ss:$0 sm:$0xff]
          %v392 = vsel %vm390, %v386, %v391
          %393 = vst [vmem:[%s162] sm:$0x1] %v392
          %s394 = smov %s146
          %s395 = smov [#allocation4]
          %v396 = vlaneseq
          %v397 = vshrl.u32 %v396, 7
          %v398 = vmov %v397
          %v400 = vld [vmem:[%s395] sm:$0xff]
          %v401 = vld [vmem:[%s394] sm:$0xff]
          %v402 = vmul.f32 %v400, %v401
          %v403 = vadd.s32 %v398, 8
          %s404 = scalar_lea.vmem %s395, 8
          %v405 = vld [vmem:[%s404] sm:$0xff]
          %s406 = scalar_lea.vmem %s394, 8
          %v407 = vld [vmem:[%s406] sm:$0xff]
          %v408 = vmul.f32 %v405, %v407
          %vm409 = vcmp.lt.s32.totalorder %v403, 16
          %v410 = vsel %vm409, %v408, 0.0
          %v411 = vadd.f32 %v402, %v410
          %v412 = vrot.slane %v411, 4
          %v413 = vadd.f32 %v411, %v412
          %v414 = vrot.slane %v413, 2
          %v415 = vadd.f32 %v413, %v414
          %v416 = vrot.slane %v415, 1
          %v417 = vadd.f32 %v415, %v416
          %s418 = smov %s394
          %s419 = smov %s395
          %v420 = vlaneseq
          %v421 = vshrl.u32 %v420, 7
          %v422 = vmov %v421
          %v423 = vmul.f32 %v417, %v386
          %v425 = vlaneseq
          %v426 = vand.u32 %v425, 127
          %v427 = vld [vmem:[%s419] sm:$0xff]
          %v428 = vmul.f32 %v427, %v423
          %v429 = vld [vmem:[%s418] sm:$0xff]
          %v430 = vstv %s171
          %vm431 = vcmp.gt.s32.totalorder %v426, %v430
          %v432 = vsub.f32 %v429, %v428
          %v433 = vsel %vm431, %v432, %v429
          %v434 = vstv %s171
          %v435 = vlaneseq
          %v436 = vand.u32 %v435, 127
          %vm437 = vcmp.eq.s32.totalorder %v436, %v434
          %v438 = vstv %s171
          %vm439 = vcmp.ge.s32.totalorder %v422, %v438
          %vm440 = vmand %vm437, %vm439
          %v441 = vsel %vm440, %v427, %v433
          %442 = vst [vmem:[%s418] sm:$0xff] %v441
          %v443 = vadd.s32 %v422, 8
          %v444 = vlaneseq
          %v445 = vand.u32 %v444, 127
          %s446 = scalar_lea.vmem %s419, 8
          %v447 = vld [vmem:[%s446] sm:$0xff]
          %v448 = vmul.f32 %v447, %v423
          %s449 = scalar_lea.vmem %s418, 8
          %v450 = vld [vmem:[%s449] sm:$0xff]
          %v451 = vstv %s171
          %vm452 = vcmp.gt.s32.totalorder %v445, %v451
          %v453 = vsub.f32 %v450, %v448
          %v454 = vsel %vm452, %v453, %v450
          %v455 = vstv %s171
          %v456 = vlaneseq
          %v457 = vand.u32 %v456, 127
          %vm458 = vcmp.eq.s32.totalorder %v457, %v455
          %v459 = vstv %s171
          %vm460 = vcmp.ge.s32.totalorder %v443, %v459
          %vm461 = vmand %vm458, %vm460
          %v462 = vsel %vm461, %v447, %v454
          %463 = vst [vmem:[%s449] sm:$0xff] %v462
          %s464 = scalar_lea.vmem %s418, %s171
          %v465 = vld [vmem:[%s464] ss:$0 sm:$0xff]
          %v466 = vstv %s171
          %v467 = vlaneseq
          %v468 = vand.u32 %v467, 127
          %vm469 = vcmp.eq.s32.totalorder %v468, %v466
          %v470 = vsel %vm469, %v309, %v465
          %471 = vst [vmem:[%s464] sm:$0x1] %v470
        $region59: #{custom-call.57} parent=53 // loop_footer
          %s175 = sadd.s32 1, %s171
        $region60: #{custom-call.57} parent=53 // loop_footer_branch
          %170 = sbr.rel target = $region56
        $region61: #{custom-call.57} parent=53 // loop_exit
          _
        %s473 = ssub.s32 4, 1
        %v474 = vld [vmem:[#allocation2] sm:%s473]
        %s476 = ssub.s32 4, 1
        %477 = vst [vmem:[%s152] sm:%s476] %v474
        %s478 = sand.u32 %s10, 1
        %s479 = sand.u32 %s10, 1
        %s480 = smul.addr %s479, 16
        %s481 = scalar_lea.vmem [#allocation1], %s480
        %s482 = sand.u32 %s49, 1
        %s483 = sand.u32 %s49, 1
        %s484 = smul.addr %s483, 2
        %s485 = scalar_lea.vmem [#allocation3], %s484
        %s486 = smul.u32 2, %s16
        %s487 = sadd.s32 %s17, %s486
        %s488 = smul.addr %s15, 2
        %s489 = sadd.s32 %s487, %s488
        %s490 = smul.addr %s489, 8
        %s491 = scalar_lea.vmem %s1, %s490
        // Predicated region
        $region62: #{custom-call.57} parent=53 // pred_check
          _
        $region63: #{custom-call.57} parent=53 // pred_check_branch
          %493 = sbr.rel (0) target = $region65
        $region64: #{custom-call.57} parent=53 // pred_region
          // Predicated region
          $region66: #{custom-call.57} parent=64 // pred_check
            _
          $region67: #{custom-call.57} parent=64 // pred_check_branch
            %495 = sbr.rel (0) target = $region69
          $region68: #{custom-call.57} parent=64 // pred_region
            // Predicated region
            $region81: #{custom-call.57} parent=68 // pred_check
              _
            $region82: #{custom-call.57} parent=68 // pred_check_branch
              %513 = sbr.rel (0) target = $region84
            $region83: #{custom-call.57} parent=68 // pred_region
              loop: start=0, step=1, limit=1
              $region85: #{custom-call.57} parent=83 // loop_pre_header
                _
              $region86: #{custom-call.57} parent=83 // loop_header
                %s515 = sphi 0, %s519
                %p516 = scmp.ge.s32.totalorder %s515, 1
                %s520 = sphi %s481, %s481
                %s521 = sphi %s491, %s491
              $region87: #{custom-call.57} parent=83 // loop_header_branch
                %518 = sbr.rel (%p516) target = $region91
              $region88: #{custom-call.57} parent=83 // loop_body
                %v522 = vld [vmem:[%s520] sm:$0xff]
                %523 = vst [vmem:[%s521] sm:$0xff] %v522
                %v524 = vld [vmem:[%s520 + $0x8] sm:$0xff]
                %525 = vst [vmem:[%s521 + $0x8] sm:$0xff] %v524
              $region89: #{custom-call.57} parent=83 // loop_footer
                %s519 = sadd.s32 1, %s515
              $region90: #{custom-call.57} parent=83 // loop_footer_branch
                %514 = sbr.rel target = $region86
              $region91: #{custom-call.57} parent=83 // loop_exit
                _
            $region84: #{custom-call.57} parent=68 // pred_fallthru
              _
            // Predicated region
            $region92: #{custom-call.57} parent=68 // pred_check
              _
            $region93: #{custom-call.57} parent=68 // pred_check_branch
              %527 = sbr.rel target = $region95
            $region94: #{custom-call.57} parent=68 // pred_region
              _
            $region95: #{custom-call.57} parent=68 // pred_fallthru
              _
          $region69: #{custom-call.57} parent=64 // pred_fallthru
            _
          // Predicated region
          $region70: #{custom-call.57} parent=64 // pred_check
            _
          $region71: #{custom-call.57} parent=64 // pred_check_branch
            %497 = sbr.rel target = $region73
          $region72: #{custom-call.57} parent=64 // pred_region
            %s499 = ssub.s32 256, 1
            loop: start=0, step=1, limit=1
            $region74: #{custom-call.57} parent=72 // loop_pre_header
              _
            $region75: #{custom-call.57} parent=72 // loop_header
              %s501 = sphi 0, %s505
              %p502 = scmp.ge.s32.totalorder %s501, 1
              %s506 = sphi %s481, %s481
              %s507 = sphi %s491, %s491
            $region76: #{custom-call.57} parent=72 // loop_header_branch
              %504 = sbr.rel (%p502) target = $region80
            $region77: #{custom-call.57} parent=72 // loop_body
              %v508 = vld [vmem:[%s506] sm:%s499]
              %509 = vst [vmem:[%s507] sm:%s499] %v508
              %v510 = vld [vmem:[%s506 + $0x8] sm:%s499]
              %511 = vst [vmem:[%s507 + $0x8] sm:%s499] %v510
            $region78: #{custom-call.57} parent=72 // loop_footer
              %s505 = sadd.s32 1, %s501
            $region79: #{custom-call.57} parent=72 // loop_footer_branch
              %500 = sbr.rel target = $region75
            $region80: #{custom-call.57} parent=72 // loop_exit
              _
          $region73: #{custom-call.57} parent=64 // pred_fallthru
            _
        $region65: #{custom-call.57} parent=53 // pred_fallthru
          _
        %528 = vnop
        // Predicated region
        $region96: #{custom-call.57} parent=53 // pred_check
          %p529 = pneg %p59
        $region97: #{custom-call.57} parent=53 // pred_check_branch
          %531 = sbr.rel (%p529) target = $region99
        $region98: #{custom-call.57} parent=53 // pred_region
          %p532 = scmp.lt.s32.totalorder %s15, 0
          %s533 = ssub.s32 0, %s15
          %s534 = scalar_select %p532, %s533, %s15
          %s535 = sshrl.u32 %s534, 3
          %s536 = ssub.s32 0, %s535
          %s537 = scalar_select %p532, %s536, %s535
          %s538 = smul.addr %s537, 2
          %s539 = scalar_lea.vmem %s2, %s538
          // Predicated region
          $region100: #{custom-call.57} parent=98 // pred_check
            _
          $region101: #{custom-call.57} parent=98 // pred_check_branch
            %541 = sbr.rel (0) target = $region103
          $region102: #{custom-call.57} parent=98 // pred_region
            // Predicated region
            $region104: #{custom-call.57} parent=102 // pred_check
              _
            $region105: #{custom-call.57} parent=102 // pred_check_branch
              %543 = sbr.rel target = $region107
            $region106: #{custom-call.57} parent=102 // pred_region
              // Predicated region
              $region119: #{custom-call.57} parent=106 // pred_check
                _
              $region120: #{custom-call.57} parent=106 // pred_check_branch
                %559 = sbr.rel (0) target = $region122
              $region121: #{custom-call.57} parent=106 // pred_region
                %s561 = ssub.s32 4, 1
                loop: start=0, step=1, limit=1
                $region123: #{custom-call.57} parent=121 // loop_pre_header
                  _
                $region124: #{custom-call.57} parent=121 // loop_header
                  %s563 = sphi 0, %s567
                  %p564 = scmp.ge.s32.totalorder %s563, 1
                  %s568 = sphi %s485, %s485
                  %s569 = sphi %s539, %s539
                $region125: #{custom-call.57} parent=121 // loop_header_branch
                  %566 = sbr.rel (%p564) target = $region129
                $region126: #{custom-call.57} parent=121 // loop_body
                  %v570 = vld [vmem:[%s568] sm:%s561]
                  %571 = vst [vmem:[%s569] sm:%s561] %v570
                $region127: #{custom-call.57} parent=121 // loop_footer
                  %s567 = sadd.s32 1, %s563
                $region128: #{custom-call.57} parent=121 // loop_footer_branch
                  %562 = sbr.rel target = $region124
                $region129: #{custom-call.57} parent=121 // loop_exit
                  _
              $region122: #{custom-call.57} parent=106 // pred_fallthru
                _
            $region107: #{custom-call.57} parent=102 // pred_fallthru
              _
            // Predicated region
            $region108: #{custom-call.57} parent=102 // pred_check
              _
            $region109: #{custom-call.57} parent=102 // pred_check_branch
              %545 = sbr.rel (0) target = $region111
            $region110: #{custom-call.57} parent=102 // pred_region
              %s547 = ssub.s32 4, 1
              loop: start=0, step=1, limit=1
              $region112: #{custom-call.57} parent=110 // loop_pre_header
                _
              $region113: #{custom-call.57} parent=110 // loop_header
                %s549 = sphi 0, %s553
                %p550 = scmp.ge.s32.totalorder %s549, 1
                %s554 = sphi %s485, %s485
                %s555 = sphi %s539, %s539
              $region114: #{custom-call.57} parent=110 // loop_header_branch
                %552 = sbr.rel (%p550) target = $region118
              $region115: #{custom-call.57} parent=110 // loop_body
                %v556 = vld [vmem:[%s554] sm:%s547]
                %557 = vst [vmem:[%s555] sm:%s547] %v556
              $region116: #{custom-call.57} parent=110 // loop_footer
                %s553 = sadd.s32 1, %s549
              $region117: #{custom-call.57} parent=110 // loop_footer_branch
                %548 = sbr.rel target = $region113
              $region118: #{custom-call.57} parent=110 // loop_exit
                _
            $region111: #{custom-call.57} parent=102 // pred_fallthru
              _
          $region103: #{custom-call.57} parent=98 // pred_fallthru
            _
          %572 = vnop
        $region99: #{custom-call.57} parent=53 // pred_fallthru
          _
      $region54: #{custom-call.57} parent=5 // pred_fallthru
        _
      %p573 = scmp.le.s32.totalorder 2, %s5
      // Predicated region
      $region130: #{custom-call.57} parent=5 // pred_check
        %p574 = pneg %p573
      $region131: #{custom-call.57} parent=5 // pred_check_branch
        %576 = sbr.rel (%p574) target = $region133
      $region132: #{custom-call.57} parent=5 // pred_region
        %s577 = ssub.s32 %s5, 2
        %s578 = sand.u32 %s11, 1
        %s579 = sand.u32 %s11, 1
        %s580 = smul.addr %s579, 16
        %s581 = scalar_lea.vmem [#allocation1], %s580
        // Predicated region
        $region134: #{custom-call.57} parent=132 // pred_check
          %p582 = pneg %p65
        $region135: #{custom-call.57} parent=132 // pred_check_branch
          %584 = sbr.rel (%p582) target = $region137
        $region136: #{custom-call.57} parent=132 // pred_region
          %s585 = sand.u32 %s50, 1
          %s586 = sand.u32 %s50, 1
          %s587 = smul.addr %s586, 2
          %s588 = scalar_lea.vmem [#allocation3], %s587
        $region137: #{custom-call.57} parent=132 // pred_fallthru
          _
      $region133: #{custom-call.57} parent=5 // pred_fallthru
        _
    $region6: #{custom-call.57} parent=1 // loop_footer
      %s9 = sadd.s32 1, %s5
    $region7: #{custom-call.57} parent=1 // loop_footer_branch
      %4 = sbr.rel target = $region3
    $region8: #{custom-call.57} parent=1 // loop_exit
      _

// kernel: custom-call.58
$region0: #{custom-call.58}
  %s0 = inlined_call_operand.vmem [shape: f32[2,8,8], index: 0, kind: input, shape index: {}]
  %s1 = inlined_call_operand.vmem [shape: f32[2,8,8], index: 1, kind: output, shape index: {}]
  $region1: #{custom-call.58} parent=0
    #allocation0 [shape = 'u8[8192]{0}', space=vmem, size = 0x2000, scoped, tag = 'operand span for operand 0']
    #allocation1 [shape = 'u8[8192]{0}', space=vmem, size = 0x2000, scoped, tag = 'operand span for operand 1']
    loop: start=0, step=1, limit=4
    $region2: #{custom-call.58} parent=1 // loop_pre_header
      _
    $region3: #{custom-call.58} parent=1 // loop_header
      %s3 = sphi 0, %s7
      %p4 = scmp.ge.s32.totalorder %s3, 4
    $region4: #{custom-call.58} parent=1 // loop_header_branch
      %6 = sbr.rel (%p4) target = $region8
    $region5: #{custom-call.58} parent=1 // loop_body
      %s8 = ssub.s32 %s3, 1
      %s9 = ssub.s32 %s3, 2
      %s10 = sadd.s32 %s3, 1
      %p11 = scmp.le.s32.totalorder 1, %s3
      %p12 = scmp.lt.s32.totalorder %s3, 3
      %p13 = pnand %p11, %p12
      %p14 = pneg %p13
      // Predicated region
      $region9: #{custom-call.58} parent=5 // pred_check
        _
      $region10: #{custom-call.58} parent=5 // pred_check_branch
        %16 = sbr.rel (%p13) target = $region12
      $region11: #{custom-call.58} parent=5 // pred_region
        %s17 = ssub.s32 %s3, 1
      $region12: #{custom-call.58} parent=5 // pred_fallthru
        _
      %p18 = scmp.lt.s32.totalorder %s3, 2
      // Predicated region
      $region13: #{custom-call.58} parent=5 // pred_check
        %p19 = pneg %p18
      $region14: #{custom-call.58} parent=5 // pred_check_branch
        %21 = sbr.rel (%p19) target = $region16
      $region15: #{custom-call.58} parent=5 // pred_region
        %s22 = sand.u32 %s3, 1
        %s23 = sand.u32 %s3, 1
        %s24 = smul.addr %s23, 8
        %s25 = scalar_lea.vmem [#allocation0], %s24
        %s26 = smul.addr %s3, 8
        %s27 = scalar_lea.vmem %s0, %s26
        // Predicated region
        $region17: #{custom-call.58} parent=15 // pred_check
          _
        $region18: #{custom-call.58} parent=15 // pred_check_branch
          %29 = sbr.rel (0) target = $region20
        $region19: #{custom-call.58} parent=15 // pred_region
          // Predicated region
          $region21: #{custom-call.58} parent=19 // pred_check
            _
          $region22: #{custom-call.58} parent=19 // pred_check_branch
            %31 = sbr.rel (0) target = $region24
          $region23: #{custom-call.58} parent=19 // pred_region
            // Predicated region
            $region36: #{custom-call.58} parent=23 // pred_check
              _
            $region37: #{custom-call.58} parent=23 // pred_check_branch
              %47 = sbr.rel (0) target = $region39
            $region38: #{custom-call.58} parent=23 // pred_region
              loop: start=0, step=1, limit=1
              $region40: #{custom-call.58} parent=38 // loop_pre_header
                _
              $region41: #{custom-call.58} parent=38 // loop_header
                %s49 = sphi 0, %s53
                %p50 = scmp.ge.s32.totalorder %s49, 1
                %s54 = sphi %s27, %s27
                %s55 = sphi %s25, %s25
              $region42: #{custom-call.58} parent=38 // loop_header_branch
                %52 = sbr.rel (%p50) target = $region46
              $region43: #{custom-call.58} parent=38 // loop_body
                %v56 = vld [vmem:[%s54] sm:$0xff]
                %57 = vst [vmem:[%s55] sm:$0xff] %v56
              $region44: #{custom-call.58} parent=38 // loop_footer
                %s53 = sadd.s32 1, %s49
              $region45: #{custom-call.58} parent=38 // loop_footer_branch
                %48 = sbr.rel target = $region41
              $region46: #{custom-call.58} parent=38 // loop_exit
                _
            $region39: #{custom-call.58} parent=23 // pred_fallthru
              _
            // Predicated region
            $region47: #{custom-call.58} parent=23 // pred_check
              _
            $region48: #{custom-call.58} parent=23 // pred_check_branch
              %59 = sbr.rel target = $region50
            $region49: #{custom-call.58} parent=23 // pred_region
              _
            $region50: #{custom-call.58} parent=23 // pred_fallthru
              _
          $region24: #{custom-call.58} parent=19 // pred_fallthru
            _
          // Predicated region
          $region25: #{custom-call.58} parent=19 // pred_check
            _
          $region26: #{custom-call.58} parent=19 // pred_check_branch
            %33 = sbr.rel target = $region28
          $region27: #{custom-call.58} parent=19 // pred_region
            %s35 = ssub.s32 256, 1
            loop: start=0, step=1, limit=1
            $region29: #{custom-call.58} parent=27 // loop_pre_header
              _
            $region30: #{custom-call.58} parent=27 // loop_header
              %s37 = sphi 0, %s41
              %p38 = scmp.ge.s32.totalorder %s37, 1
              %s42 = sphi %s27, %s27
              %s43 = sphi %s25, %s25
            $region31: #{custom-call.58} parent=27 // loop_header_branch
              %40 = sbr.rel (%p38) target = $region35
            $region32: #{custom-call.58} parent=27 // loop_body
              %v44 = vld [vmem:[%s42] sm:%s35]
              %45 = vst [vmem:[%s43] sm:%s35] %v44
            $region33: #{custom-call.58} parent=27 // loop_footer
              %s41 = sadd.s32 1, %s37
            $region34: #{custom-call.58} parent=27 // loop_footer_branch
              %36 = sbr.rel target = $region30
            $region35: #{custom-call.58} parent=27 // loop_exit
              _
          $region28: #{custom-call.58} parent=19 // pred_fallthru
            _
        $region20: #{custom-call.58} parent=15 // pred_fallthru
          _
        %60 = vnop
      $region16: #{custom-call.58} parent=5 // pred_fallthru
        _
      %p61 = scmp.le.s32.totalorder 1, %s3
      %p62 = scmp.lt.s32.totalorder %s3, 3
      %p63 = pnand %p61, %p62
      %p64 = pneg %p63
      // Predicated region
      $region51: #{custom-call.58} parent=5 // pred_check
        _
      $region52: #{custom-call.58} parent=5 // pred_check_branch
        %66 = sbr.rel (%p63) target = $region54
      $region53: #{custom-call.58} parent=5 // pred_region
        %s67 = ssub.s32 %s3, 1
        %s68 = sand.u32 %s8, 1
        %s69 = sand.u32 %s8, 1
        %s70 = smul.addr %s69, 8
        %s71 = scalar_lea.vmem [#allocation0], %s70
        %s72 = sand.u32 %s8, 1
        %s73 = sand.u32 %s8, 1
        %s74 = smul.addr %s73, 8
        %s75 = scalar_lea.vmem [#allocation0], %s74
        %s76 = sand.u32 %s8, 1
        %s77 = sand.u32 %s8, 1
        %s78 = smul.addr %s77, 8
        %s79 = scalar_lea.vmem [#allocation1], %s78
        %v80 = vlaneseq
        %v81 = vand.u32 %v80, 127
        %v82 = vlaneseq
        %v83 = vshrl.u32 %v82, 7
        %vm85 = vcmp.eq.s32.totalorder %v81, %v83
        %v86 = vld [vmem:[%s71] sm:$0xff]
        %v87 = vlaneseq
        %v88 = vand.u32 %v87, 127
        %vm89 = vcmp.eq.s32.totalorder %v88, 0
        %v90 = vsel %vm89, %v86, 1.0
        %v91 = vsel %vm85, %v90, 0.0
        %s92 = scalar_lea.vmem %s71, 1 [#allocation0]
        %v93 = vld [vmem:[%s92] ss:$0 sm:$0xff]
        %vm94 = vcmask 64512
        %v95 = vsel %vm94, %v93, 0.0
        %v96 = vlaneseq
        %v97 = vand.u32 %v96, 127
        %vm98 = vcmp.eq.s32.totalorder %v97, 1
        %v99 = vmul.f32 %v95, %v91
        %100 = vadd.xlane.f32.xlu0 %v99
        %v101 = vpop.xlane.xlu0 %100
        %v102 = vsel %vm98, %v101, %v91
        %s103 = scalar_lea.vmem %s71, 2 [#allocation0]
        %v104 = vld [vmem:[%s103] ss:$0 sm:$0xff]
        %vm105 = vcmask 64512
        %v106 = vsel %vm105, %v104, 0.0
        %v107 = vlaneseq
        %v108 = vand.u32 %v107, 127
        %vm109 = vcmp.eq.s32.totalorder %v108, 2
        %v110 = vmul.f32 %v106, %v102
        %111 = vadd.xlane.f32.xlu0 %v110
        %v112 = vpop.xlane.xlu0 %111
        %v113 = vsel %vm109, %v112, %v102
        %s114 = scalar_lea.vmem %s71, 3 [#allocation0]
        %v115 = vld [vmem:[%s114] ss:$0 sm:$0xff]
        %vm116 = vcmask 64512
        %v117 = vsel %vm116, %v115, 0.0
        %v118 = vlaneseq
        %v119 = vand.u32 %v118, 127
        %vm120 = vcmp.eq.s32.totalorder %v119, 3
        %v121 = vmul.f32 %v117, %v113
        %122 = vadd.xlane.f32.xlu0 %v121
        %v123 = vpop.xlane.xlu0 %122
        %v124 = vsel %vm120, %v123, %v113
        %s125 = scalar_lea.vmem %s71, 4 [#allocation0]
        %v126 = vld [vmem:[%s125] ss:$0 sm:$0xff]
        %vm127 = vcmask 64512
        %v128 = vsel %vm127, %v126, 0.0
        %v129 = vlaneseq
        %v130 = vand.u32 %v129, 127
        %vm131 = vcmp.eq.s32.totalorder %v130, 4
        %v132 = vmul.f32 %v128, %v124
        %133 = vadd.xlane.f32.xlu0 %v132
        %v134 = vpop.xlane.xlu0 %133
        %v135 = vsel %vm131, %v134, %v124
        %s136 = scalar_lea.vmem %s71, 5 [#allocation0]
        %v137 = vld [vmem:[%s136] ss:$0 sm:$0xff]
        %vm138 = vcmask 64512
        %v139 = vsel %vm138, %v137, 0.0
        %v140 = vlaneseq
        %v141 = vand.u32 %v140, 127
        %vm142 = vcmp.eq.s32.totalorder %v141, 5
        %v143 = vmul.f32 %v139, %v135
        %144 = vadd.xlane.f32.xlu0 %v143
        %v145 = vpop.xlane.xlu0 %144
        %v146 = vsel %vm142, %v145, %v135
        %s147 = scalar_lea.vmem %s71, 6 [#allocation0]
        %v148 = vld [vmem:[%s147] ss:$0 sm:$0xff]
        %vm149 = vcmask 64512
        %v150 = vsel %vm149, %v148, 0.0
        %v151 = vlaneseq
        %v152 = vand.u32 %v151, 127
        %vm153 = vcmp.eq.s32.totalorder %v152, 6
        %v154 = vmul.f32 %v150, %v146
        %155 = vadd.xlane.f32.xlu0 %v154
        %v156 = vpop.xlane.xlu0 %155
        %v157 = vsel %vm153, %v156, %v146
        %s158 = scalar_lea.vmem %s71, 7 [#allocation0]
        %v159 = vld [vmem:[%s158] ss:$0 sm:$0xff]
        %vm160 = vcmask 64512
        %v161 = vsel %vm160, %v159, 0.0
        %v162 = vlaneseq
        %v163 = vand.u32 %v162, 127
        %vm164 = vcmp.eq.s32.totalorder %v163, 7
        %v165 = vmul.f32 %v161, %v157
        %166 = vadd.xlane.f32.xlu0 %v165
        %v167 = vpop.xlane.xlu0 %166
        %v168 = vsel %vm164, %v167, %v157
        %169 = vst [vmem:[%s79] sm:$0xff] %v168
        %s170 = sand.u32 %s8, 1
        %s171 = sand.u32 %s8, 1
        %s172 = smul.addr %s171, 8
        %s173 = scalar_lea.vmem [#allocation1], %s172
        %s174 = smul.addr %s8, 8
        %s175 = scalar_lea.vmem %s1, %s174
        // Predicated region
        $region55: #{custom-call.58} parent=53 // pred_check
          _
        $region56: #{custom-call.58} parent=53 // pred_check_branch
          %177 = sbr.rel (0) target = $region58
        $region57: #{custom-call.58} parent=53 // pred_region
          // Predicated region
          $region59: #{custom-call.58} parent=57 // pred_check
            _
          $region60: #{custom-call.58} parent=57 // pred_check_branch
            %179 = sbr.rel (0) target = $region62
          $region61: #{custom-call.58} parent=57 // pred_region
            // Predicated region
            $region74: #{custom-call.58} parent=61 // pred_check
              _
            $region75: #{custom-call.58} parent=61 // pred_check_branch
              %195 = sbr.rel (0) target = $region77
            $region76: #{custom-call.58} parent=61 // pred_region
              loop: start=0, step=1, limit=1
              $region78: #{custom-call.58} parent=76 // loop_pre_header
                _
              $region79: #{custom-call.58} parent=76 // loop_header
                %s197 = sphi 0, %s201
                %p198 = scmp.ge.s32.totalorder %s197, 1
                %s202 = sphi %s173, %s173
                %s203 = sphi %s175, %s175
              $region80: #{custom-call.58} parent=76 // loop_header_branch
                %200 = sbr.rel (%p198) target = $region84
              $region81: #{custom-call.58} parent=76 // loop_body
                %v204 = vld [vmem:[%s202] sm:$0xff]
                %205 = vst [vmem:[%s203] sm:$0xff] %v204
              $region82: #{custom-call.58} parent=76 // loop_footer
                %s201 = sadd.s32 1, %s197
              $region83: #{custom-call.58} parent=76 // loop_footer_branch
                %196 = sbr.rel target = $region79
              $region84: #{custom-call.58} parent=76 // loop_exit
                _
            $region77: #{custom-call.58} parent=61 // pred_fallthru
              _
            // Predicated region
            $region85: #{custom-call.58} parent=61 // pred_check
              _
            $region86: #{custom-call.58} parent=61 // pred_check_branch
              %207 = sbr.rel target = $region88
            $region87: #{custom-call.58} parent=61 // pred_region
              _
            $region88: #{custom-call.58} parent=61 // pred_fallthru
              _
          $region62: #{custom-call.58} parent=57 // pred_fallthru
            _
          // Predicated region
          $region63: #{custom-call.58} parent=57 // pred_check
            _
          $region64: #{custom-call.58} parent=57 // pred_check_branch
            %181 = sbr.rel target = $region66
          $region65: #{custom-call.58} parent=57 // pred_region
            %s183 = ssub.s32 256, 1
            loop: start=0, step=1, limit=1
            $region67: #{custom-call.58} parent=65 // loop_pre_header
              _
            $region68: #{custom-call.58} parent=65 // loop_header
              %s185 = sphi 0, %s189
              %p186 = scmp.ge.s32.totalorder %s185, 1
              %s190 = sphi %s173, %s173
              %s191 = sphi %s175, %s175
            $region69: #{custom-call.58} parent=65 // loop_header_branch
              %188 = sbr.rel (%p186) target = $region73
            $region70: #{custom-call.58} parent=65 // loop_body
              %v192 = vld [vmem:[%s190] sm:%s183]
              %193 = vst [vmem:[%s191] sm:%s183] %v192
            $region71: #{custom-call.58} parent=65 // loop_footer
              %s189 = sadd.s32 1, %s185
            $region72: #{custom-call.58} parent=65 // loop_footer_branch
              %184 = sbr.rel target = $region68
            $region73: #{custom-call.58} parent=65 // loop_exit
              _
          $region66: #{custom-call.58} parent=57 // pred_fallthru
            _
        $region58: #{custom-call.58} parent=53 // pred_fallthru
          _
        %208 = vnop
      $region54: #{custom-call.58} parent=5 // pred_fallthru
        _
      %p209 = scmp.le.s32.totalorder 2, %s3
      // Predicated region
      $region89: #{custom-call.58} parent=5 // pred_check
        %p210 = pneg %p209
      $region90: #{custom-call.58} parent=5 // pred_check_branch
        %212 = sbr.rel (%p210) target = $region92
      $region91: #{custom-call.58} parent=5 // pred_region
        %s213 = ssub.s32 %s3, 2
        %s214 = sand.u32 %s9, 1
        %s215 = sand.u32 %s9, 1
        %s216 = smul.addr %s215, 8
        %s217 = scalar_lea.vmem [#allocation1], %s216
      $region92: #{custom-call.58} parent=5 // pred_fallthru
        _
    $region6: #{custom-call.58} parent=1 // loop_footer
      %s7 = sadd.s32 1, %s3
    $region7: #{custom-call.58} parent=1 // loop_footer_branch
      %2 = sbr.rel target = $region3
    $region8: #{custom-call.58} parent=1 // loop_exit
      _

// kernel: custom-call.50
$region0: #{custom-call.50}
  %s0 = inlined_call_operand.hbm [shape: pred[2], index: 0, kind: output, shape index: {}]

// kernel: custom-call.55
$region0: #{custom-call.55}
  %s0 = inlined_call_operand.vmem [shape: f32[2,8,8], index: 0, kind: input, shape index: {}]
  %s1 = inlined_call_operand.vmem [shape: f32[2,8,8], index: 1, kind: output, shape index: {}]
  $region1: #{custom-call.55} parent=0
    #allocation0 [shape = 'u8[8192]{0}', space=vmem, size = 0x2000, scoped, tag = 'operand span for operand 0']
    #allocation1 [shape = 'u8[8192]{0}', space=vmem, size = 0x2000, scoped, tag = 'operand span for operand 1']
    loop: start=0, step=1, limit=4
    $region2: #{custom-call.55} parent=1 // loop_pre_header
      _
    $region3: #{custom-call.55} parent=1 // loop_header
      %s3 = sphi 0, %s7
      %p4 = scmp.ge.s32.totalorder %s3, 4
      %s10 = sphi 0, %s29
      %s11 = sphi 0, %s25
      %s12 = sphi 0, %s21
      %s13 = sphi 0, %s10
      %s14 = sphi 0, %s11
      %s15 = sphi 0, %s12
      %s16 = sphi 0, %s13
      %s17 = sphi 0, %s14
      %s18 = sphi 0, %s15
    $region4: #{custom-call.55} parent=1 // loop_header_branch
      %6 = sbr.rel (%p4) target = $region8
    $region5: #{custom-call.55} parent=1 // loop_body
      %s8 = ssub.s32 %s3, 1
      %s9 = ssub.s32 %s3, 2
      %s19 = sadd.s32 1, %s12
      %p20 = scmp.ge.s32.totalorder %s19, 1
      %s21 = scalar_select %p20, 0, %s19
      %s22 = sadd.s32 1, %s11
      %s23 = scalar_select %p20, %s22, %s11
      %p24 = scmp.ge.s32.totalorder %s23, 1
      %s25 = scalar_select %p24, 0, %s23
      %s26 = sadd.s32 1, %s10
      %s27 = scalar_select %p24, %s26, %s10
      %p28 = scmp.ge.s32.totalorder %s27, 2
      %s29 = scalar_select %p28, 0, %s27
      %p30 = scmp.le.s32.totalorder 1, %s3
      %p31 = scmp.lt.s32.totalorder %s3, 3
      %p32 = pnand %p30, %p31
      %p33 = pneg %p32
      // Predicated region
      $region9: #{custom-call.55} parent=5 // pred_check
        _
      $region10: #{custom-call.55} parent=5 // pred_check_branch
        %35 = sbr.rel (%p32) target = $region12
      $region11: #{custom-call.55} parent=5 // pred_region
        %s36 = ssub.s32 %s3, 1
      $region12: #{custom-call.55} parent=5 // pred_fallthru
        _
      %p37 = scmp.lt.s32.totalorder %s3, 2
      // Predicated region
      $region13: #{custom-call.55} parent=5 // pred_check
        %p38 = pneg %p37
      $region14: #{custom-call.55} parent=5 // pred_check_branch
        %40 = sbr.rel (%p38) target = $region16
      $region15: #{custom-call.55} parent=5 // pred_region
        %s41 = sand.u32 %s3, 1
        %s42 = sand.u32 %s3, 1
        %s43 = smul.addr %s42, 8
        %s44 = scalar_lea.vmem [#allocation0], %s43
        %s45 = sadd.s32 %s12, %s11
        %s46 = sadd.s32 %s45, %s10
        %s47 = smul.addr %s46, 8
        %s48 = scalar_lea.vmem %s0, %s47
        // Predicated region
        $region17: #{custom-call.55} parent=15 // pred_check
          _
        $region18: #{custom-call.55} parent=15 // pred_check_branch
          %50 = sbr.rel (0) target = $region20
        $region19: #{custom-call.55} parent=15 // pred_region
          // Predicated region
          $region21: #{custom-call.55} parent=19 // pred_check
            _
          $region22: #{custom-call.55} parent=19 // pred_check_branch
            %52 = sbr.rel (0) target = $region24
          $region23: #{custom-call.55} parent=19 // pred_region
            // Predicated region
            $region36: #{custom-call.55} parent=23 // pred_check
              _
            $region37: #{custom-call.55} parent=23 // pred_check_branch
              %68 = sbr.rel (0) target = $region39
            $region38: #{custom-call.55} parent=23 // pred_region
              loop: start=0, step=1, limit=1
              $region40: #{custom-call.55} parent=38 // loop_pre_header
                _
              $region41: #{custom-call.55} parent=38 // loop_header
                %s70 = sphi 0, %s74
                %p71 = scmp.ge.s32.totalorder %s70, 1
                %s75 = sphi %s48, %s48
                %s76 = sphi %s44, %s44
              $region42: #{custom-call.55} parent=38 // loop_header_branch
                %73 = sbr.rel (%p71) target = $region46
              $region43: #{custom-call.55} parent=38 // loop_body
                %v77 = vld [vmem:[%s75] sm:$0xff]
                %78 = vst [vmem:[%s76] sm:$0xff] %v77
              $region44: #{custom-call.55} parent=38 // loop_footer
                %s74 = sadd.s32 1, %s70
              $region45: #{custom-call.55} parent=38 // loop_footer_branch
                %69 = sbr.rel target = $region41
              $region46: #{custom-call.55} parent=38 // loop_exit
                _
            $region39: #{custom-call.55} parent=23 // pred_fallthru
              _
            // Predicated region
            $region47: #{custom-call.55} parent=23 // pred_check
              _
            $region48: #{custom-call.55} parent=23 // pred_check_branch
              %80 = sbr.rel target = $region50
            $region49: #{custom-call.55} parent=23 // pred_region
              _
            $region50: #{custom-call.55} parent=23 // pred_fallthru
              _
          $region24: #{custom-call.55} parent=19 // pred_fallthru
            _
          // Predicated region
          $region25: #{custom-call.55} parent=19 // pred_check
            _
          $region26: #{custom-call.55} parent=19 // pred_check_branch
            %54 = sbr.rel target = $region28
          $region27: #{custom-call.55} parent=19 // pred_region
            %s56 = ssub.s32 256, 1
            loop: start=0, step=1, limit=1
            $region29: #{custom-call.55} parent=27 // loop_pre_header
              _
            $region30: #{custom-call.55} parent=27 // loop_header
              %s58 = sphi 0, %s62
              %p59 = scmp.ge.s32.totalorder %s58, 1
              %s63 = sphi %s48, %s48
              %s64 = sphi %s44, %s44
            $region31: #{custom-call.55} parent=27 // loop_header_branch
              %61 = sbr.rel (%p59) target = $region35
            $region32: #{custom-call.55} parent=27 // loop_body
              %v65 = vld [vmem:[%s63] sm:%s56]
              %66 = vst [vmem:[%s64] sm:%s56] %v65
            $region33: #{custom-call.55} parent=27 // loop_footer
              %s62 = sadd.s32 1, %s58
            $region34: #{custom-call.55} parent=27 // loop_footer_branch
              %57 = sbr.rel target = $region30
            $region35: #{custom-call.55} parent=27 // loop_exit
              _
          $region28: #{custom-call.55} parent=19 // pred_fallthru
            _
        $region20: #{custom-call.55} parent=15 // pred_fallthru
          _
        %81 = vnop
      $region16: #{custom-call.55} parent=5 // pred_fallthru
        _
      %p82 = scmp.le.s32.totalorder 1, %s3
      %p83 = scmp.lt.s32.totalorder %s3, 3
      %p84 = pnand %p82, %p83
      %p85 = pneg %p84
      // Predicated region
      $region51: #{custom-call.55} parent=5 // pred_check
        _
      $region52: #{custom-call.55} parent=5 // pred_check_branch
        %87 = sbr.rel (%p84) target = $region54
      $region53: #{custom-call.55} parent=5 // pred_region
        %s88 = ssub.s32 %s3, 1
        %s89 = sand.u32 %s8, 1
        %s90 = sand.u32 %s8, 1
        %s91 = smul.addr %s90, 8
        %s92 = scalar_lea.vmem [#allocation0], %s91
        %s93 = sand.u32 %s8, 1
        %s94 = sand.u32 %s8, 1
        %s95 = smul.addr %s94, 8
        %s96 = scalar_lea.vmem [#allocation0], %s95
        %s97 = sand.u32 %s8, 1
        %s98 = sand.u32 %s8, 1
        %s99 = smul.addr %s98, 8
        %s100 = scalar_lea.vmem [#allocation1], %s99
        %101 = vst [vmem:[%s100] sm:$0xff] 0.0
        %vm102 = vcmask 7168
        %v103 = vld [vmem:[%s100] ss:$0 sm:$0xff]
        %v104 = vld [vmem:[%s92] ss:$0 sm:$0xff]
        %v105 = vmul.f32 %v103, %v103
        %106 = vadd.xlane.f32.xlu0 %v105
        %v107 = vpop.xlane.xlu0 %106
        %v108 = vsub.f32 %v104, %v107
        %v109 = vrsqrt.pop %v108
        %v110 = vmul.f32 %v109, %v108
        %v111 = vmul.f32 %v110, %v109
        %v112 = vmul.f32 0.5, %v111
        %v113 = vsub.f32 1.5, %v112
        %v114 = vmul.f32 %v109, %v113
        %vm115 = vweird.f32 %v108
        %vm116 = vweird.f32 %v109
        %vm117 = vmor %vm115, %vm116
        %v118 = vsel %vm117, %v109, %v114
        %v119 = vld [vmem:[%s92] sm:$0xff]
        %v120 = vld [vmem:[%s100] sm:$0xff]
        %v121 = vmul.f32 %v120, %v103
        %122 = vadd.xlane.f32.xlu0 %v121
        %v123 = vpop.xlane.xlu0 %122
        %v124 = vsub.f32 %v119, %v123
        %v125 = vmul.f32 %v124, %v118
        %v126 = vsel %vm102, %v125, 0.0
        %v127 = vadd.f32 %v120, %v126
        %128 = vst [vmem:[%s100] sm:$0xff] %v127
        %vm129 = vcmask 15368
        %s130 = scalar_lea.vmem %s100, 1 [#allocation1]
        %v131 = vld [vmem:[%s130] ss:$0 sm:$0xff]
        %s132 = scalar_lea.vmem %s92, 1 [#allocation0]
        %v133 = vld [vmem:[%s132] ss:$0 sm:$0xff]
        %v134 = vmul.f32 %v131, %v131
        %135 = vadd.xlane.f32.xlu0 %v134
        %v136 = vpop.xlane.xlu0 %135
        %v137 = vsub.f32 %v133, %v136
        %v138 = vrsqrt.pop %v137
        %v139 = vmul.f32 %v138, %v137
        %v140 = vmul.f32 %v139, %v138
        %v141 = vmul.f32 0.5, %v140
        %v142 = vsub.f32 1.5, %v141
        %v143 = vmul.f32 %v138, %v142
        %vm144 = vweird.f32 %v137
        %vm145 = vweird.f32 %v138
        %vm146 = vmor %vm144, %vm145
        %v147 = vsel %vm146, %v138, %v143
        %v148 = vld [vmem:[%s92] sm:$0xff]
        %v149 = vld [vmem:[%s100] sm:$0xff]
        %v150 = vmul.f32 %v149, %v131
        %151 = vadd.xlane.f32.xlu0 %v150
        %v152 = vpop.xlane.xlu0 %151
        %v153 = vsub.f32 %v148, %v152
        %v154 = vmul.f32 %v153, %v147
        %vm155 = vcmask 1047553
        %vm156 = vmand %vm129, %vm155
        %v157 = vsel %vm156, %v154, 0.0
        %v158 = vadd.f32 %v149, %v157
        %159 = vst [vmem:[%s100] sm:$0xff] %v158
        %vm160 = vcmask 23568
        %s161 = scalar_lea.vmem %s100, 2 [#allocation1]
        %v162 = vld [vmem:[%s161] ss:$0 sm:$0xff]
        %s163 = scalar_lea.vmem %s92, 2 [#allocation0]
        %v164 = vld [vmem:[%s163] ss:$0 sm:$0xff]
        %v165 = vmul.f32 %v162, %v162
        %166 = vadd.xlane.f32.xlu0 %v165
        %v167 = vpop.xlane.xlu0 %166
        %v168 = vsub.f32 %v164, %v167
        %v169 = vrsqrt.pop %v168
        %v170 = vmul.f32 %v169, %v168
        %v171 = vmul.f32 %v170, %v169
        %v172 = vmul.f32 0.5, %v171
        %v173 = vsub.f32 1.5, %v172
        %v174 = vmul.f32 %v169, %v173
        %vm175 = vweird.f32 %v168
        %vm176 = vweird.f32 %v169
        %vm177 = vmor %vm175, %vm176
        %v178 = vsel %vm177, %v169, %v174
        %v179 = vld [vmem:[%s92] sm:$0xff]
        %v180 = vld [vmem:[%s100] sm:$0xff]
        %v181 = vmul.f32 %v180, %v162
        %182 = vadd.xlane.f32.xlu0 %v181
        %v183 = vpop.xlane.xlu0 %182
        %v184 = vsub.f32 %v179, %v183
        %v185 = vmul.f32 %v184, %v178
        %vm186 = vcmask 1047554
        %vm187 = vmand %vm160, %vm186
        %v188 = vsel %vm187, %v185, 0.0
        %v189 = vadd.f32 %v180, %v188
        %190 = vst [vmem:[%s100] sm:$0xff] %v189
        %vm191 = vcmask 31768
        %s192 = scalar_lea.vmem %s100, 3 [#allocation1]
        %v193 = vld [vmem:[%s192] ss:$0 sm:$0xff]
        %s194 = scalar_lea.vmem %s92, 3 [#allocation0]
        %v195 = vld [vmem:[%s194] ss:$0 sm:$0xff]
        %v196 = vmul.f32 %v193, %v193
        %197 = vadd.xlane.f32.xlu0 %v196
        %v198 = vpop.xlane.xlu0 %197
        %v199 = vsub.f32 %v195, %v198
        %v200 = vrsqrt.pop %v199
        %v201 = vmul.f32 %v200, %v199
        %v202 = vmul.f32 %v201, %v200
        %v203 = vmul.f32 0.5, %v202
        %v204 = vsub.f32 1.5, %v203
        %v205 = vmul.f32 %v200, %v204
        %vm206 = vweird.f32 %v199
        %vm207 = vweird.f32 %v200
        %vm208 = vmor %vm206, %vm207
        %v209 = vsel %vm208, %v200, %v205
        %v210 = vld [vmem:[%s92] sm:$0xff]
        %v211 = vld [vmem:[%s100] sm:$0xff]
        %v212 = vmul.f32 %v211, %v193
        %213 = vadd.xlane.f32.xlu0 %v212
        %v214 = vpop.xlane.xlu0 %213
        %v215 = vsub.f32 %v210, %v214
        %v216 = vmul.f32 %v215, %v209
        %vm217 = vcmask 1047555
        %vm218 = vmand %vm191, %vm217
        %v219 = vsel %vm218, %v216, 0.0
        %v220 = vadd.f32 %v211, %v219
        %221 = vst [vmem:[%s100] sm:$0xff] %v220
        %vm222 = vcmask 39968
        %s223 = scalar_lea.vmem %s100, 4 [#allocation1]
        %v224 = vld [vmem:[%s223] ss:$0 sm:$0xff]
        %s225 = scalar_lea.vmem %s92, 4 [#allocation0]
        %v226 = vld [vmem:[%s225] ss:$0 sm:$0xff]
        %v227 = vmul.f32 %v224, %v224
        %228 = vadd.xlane.f32.xlu0 %v227
        %v229 = vpop.xlane.xlu0 %228
        %v230 = vsub.f32 %v226, %v229
        %v231 = vrsqrt.pop %v230
        %v232 = vmul.f32 %v231, %v230
        %v233 = vmul.f32 %v232, %v231
        %v234 = vmul.f32 0.5, %v233
        %v235 = vsub.f32 1.5, %v234
        %v236 = vmul.f32 %v231, %v235
        %vm237 = vweird.f32 %v230
        %vm238 = vweird.f32 %v231
        %vm239 = vmor %vm237, %vm238
        %v240 = vsel %vm239, %v231, %v236
        %v241 = vld [vmem:[%s92] sm:$0xff]
        %v242 = vld [vmem:[%s100] sm:$0xff]
        %v243 = vmul.f32 %v242, %v224
        %244 = vadd.xlane.f32.xlu0 %v243
        %v245 = vpop.xlane.xlu0 %244
        %v246 = vsub.f32 %v241, %v245
        %v247 = vmul.f32 %v246, %v240
        %vm248 = vcmask 1047556
        %vm249 = vmand %vm222, %vm248
        %v250 = vsel %vm249, %v247, 0.0
        %v251 = vadd.f32 %v242, %v250
        %252 = vst [vmem:[%s100] sm:$0xff] %v251
        %vm253 = vcmask 48168
        %s254 = scalar_lea.vmem %s100, 5 [#allocation1]
        %v255 = vld [vmem:[%s254] ss:$0 sm:$0xff]
        %s256 = scalar_lea.vmem %s92, 5 [#allocation0]
        %v257 = vld [vmem:[%s256] ss:$0 sm:$0xff]
        %v258 = vmul.f32 %v255, %v255
        %259 = vadd.xlane.f32.xlu0 %v258
        %v260 = vpop.xlane.xlu0 %259
        %v261 = vsub.f32 %v257, %v260
        %v262 = vrsqrt.pop %v261
        %v263 = vmul.f32 %v262, %v261
        %v264 = vmul.f32 %v263, %v262
        %v265 = vmul.f32 0.5, %v264
        %v266 = vsub.f32 1.5, %v265
        %v267 = vmul.f32 %v262, %v266
        %vm268 = vweird.f32 %v261
        %vm269 = vweird.f32 %v262
        %vm270 = vmor %vm268, %vm269
        %v271 = vsel %vm270, %v262, %v267
        %v272 = vld [vmem:[%s92] sm:$0xff]
        %v273 = vld [vmem:[%s100] sm:$0xff]
        %v274 = vmul.f32 %v273, %v255
        %275 = vadd.xlane.f32.xlu0 %v274
        %v276 = vpop.xlane.xlu0 %275
        %v277 = vsub.f32 %v272, %v276
        %v278 = vmul.f32 %v277, %v271
        %vm279 = vcmask 1047557
        %vm280 = vmand %vm253, %vm279
        %v281 = vsel %vm280, %v278, 0.0
        %v282 = vadd.f32 %v273, %v281
        %283 = vst [vmem:[%s100] sm:$0xff] %v282
        %vm284 = vcmask 56368
        %s285 = scalar_lea.vmem %s100, 6 [#allocation1]
        %v286 = vld [vmem:[%s285] ss:$0 sm:$0xff]
        %s287 = scalar_lea.vmem %s92, 6 [#allocation0]
        %v288 = vld [vmem:[%s287] ss:$0 sm:$0xff]
        %v289 = vmul.f32 %v286, %v286
        %290 = vadd.xlane.f32.xlu0 %v289
        %v291 = vpop.xlane.xlu0 %290
        %v292 = vsub.f32 %v288, %v291
        %v293 = vrsqrt.pop %v292
        %v294 = vmul.f32 %v293, %v292
        %v295 = vmul.f32 %v294, %v293
        %v296 = vmul.f32 0.5, %v295
        %v297 = vsub.f32 1.5, %v296
        %v298 = vmul.f32 %v293, %v297
        %vm299 = vweird.f32 %v292
        %vm300 = vweird.f32 %v293
        %vm301 = vmor %vm299, %vm300
        %v302 = vsel %vm301, %v293, %v298
        %v303 = vld [vmem:[%s92] sm:$0xff]
        %v304 = vld [vmem:[%s100] sm:$0xff]
        %v305 = vmul.f32 %v304, %v286
        %306 = vadd.xlane.f32.xlu0 %v305
        %v307 = vpop.xlane.xlu0 %306
        %v308 = vsub.f32 %v303, %v307
        %v309 = vmul.f32 %v308, %v302
        %vm310 = vcmask 1047558
        %vm311 = vmand %vm284, %vm310
        %v312 = vsel %vm311, %v309, 0.0
        %v313 = vadd.f32 %v304, %v312
        %314 = vst [vmem:[%s100] sm:$0xff] %v313
        %vm315 = vcmask 64568
        %s316 = scalar_lea.vmem %s100, 7 [#allocation1]
        %v317 = vld [vmem:[%s316] ss:$0 sm:$0xff]
        %s318 = scalar_lea.vmem %s92, 7 [#allocation0]
        %v319 = vld [vmem:[%s318] ss:$0 sm:$0xff]
        %v320 = vmul.f32 %v317, %v317
        %321 = vadd.xlane.f32.xlu0 %v320
        %v322 = vpop.xlane.xlu0 %321
        %v323 = vsub.f32 %v319, %v322
        %v324 = vrsqrt.pop %v323
        %v325 = vmul.f32 %v324, %v323
        %v326 = vmul.f32 %v325, %v324
        %v327 = vmul.f32 0.5, %v326
        %v328 = vsub.f32 1.5, %v327
        %v329 = vmul.f32 %v324, %v328
        %vm330 = vweird.f32 %v323
        %vm331 = vweird.f32 %v324
        %vm332 = vmor %vm330, %vm331
        %v333 = vsel %vm332, %v324, %v329
        %v334 = vld [vmem:[%s92] sm:$0xff]
        %v335 = vld [vmem:[%s100] sm:$0xff]
        %v336 = vmul.f32 %v335, %v317
        %337 = vadd.xlane.f32.xlu0 %v336
        %v338 = vpop.xlane.xlu0 %337
        %v339 = vsub.f32 %v334, %v338
        %v340 = vmul.f32 %v339, %v333
        %vm341 = vcmask 1047559
        %vm342 = vmand %vm315, %vm341
        %v343 = vsel %vm342, %v340, 0.0
        %v344 = vadd.f32 %v335, %v343
        %345 = vst [vmem:[%s100] sm:$0xff] %v344
        %s346 = sand.u32 %s8, 1
        %s347 = sand.u32 %s8, 1
        %s348 = smul.addr %s347, 8
        %s349 = scalar_lea.vmem [#allocation1], %s348
        %s350 = sadd.s32 %s15, %s14
        %s351 = sadd.s32 %s350, %s13
        %s352 = smul.addr %s351, 8
        %s353 = scalar_lea.vmem %s1, %s352
        // Predicated region
        $region55: #{custom-call.55} parent=53 // pred_check
          _
        $region56: #{custom-call.55} parent=53 // pred_check_branch
          %355 = sbr.rel (0) target = $region58
        $region57: #{custom-call.55} parent=53 // pred_region
          // Predicated region
          $region59: #{custom-call.55} parent=57 // pred_check
            _
          $region60: #{custom-call.55} parent=57 // pred_check_branch
            %357 = sbr.rel (0) target = $region62
          $region61: #{custom-call.55} parent=57 // pred_region
            // Predicated region
            $region74: #{custom-call.55} parent=61 // pred_check
              _
            $region75: #{custom-call.55} parent=61 // pred_check_branch
              %373 = sbr.rel (0) target = $region77
            $region76: #{custom-call.55} parent=61 // pred_region
              loop: start=0, step=1, limit=1
              $region78: #{custom-call.55} parent=76 // loop_pre_header
                _
              $region79: #{custom-call.55} parent=76 // loop_header
                %s375 = sphi 0, %s379
                %p376 = scmp.ge.s32.totalorder %s375, 1
                %s380 = sphi %s349, %s349
                %s381 = sphi %s353, %s353
              $region80: #{custom-call.55} parent=76 // loop_header_branch
                %378 = sbr.rel (%p376) target = $region84
              $region81: #{custom-call.55} parent=76 // loop_body
                %v382 = vld [vmem:[%s380] sm:$0xff]
                %383 = vst [vmem:[%s381] sm:$0xff] %v382
              $region82: #{custom-call.55} parent=76 // loop_footer
                %s379 = sadd.s32 1, %s375
              $region83: #{custom-call.55} parent=76 // loop_footer_branch
                %374 = sbr.rel target = $region79
              $region84: #{custom-call.55} parent=76 // loop_exit
                _
            $region77: #{custom-call.55} parent=61 // pred_fallthru
              _
            // Predicated region
            $region85: #{custom-call.55} parent=61 // pred_check
              _
            $region86: #{custom-call.55} parent=61 // pred_check_branch
              %385 = sbr.rel target = $region88
            $region87: #{custom-call.55} parent=61 // pred_region
              _
            $region88: #{custom-call.55} parent=61 // pred_fallthru
              _
          $region62: #{custom-call.55} parent=57 // pred_fallthru
            _
          // Predicated region
          $region63: #{custom-call.55} parent=57 // pred_check
            _
          $region64: #{custom-call.55} parent=57 // pred_check_branch
            %359 = sbr.rel target = $region66
          $region65: #{custom-call.55} parent=57 // pred_region
            %s361 = ssub.s32 256, 1
            loop: start=0, step=1, limit=1
            $region67: #{custom-call.55} parent=65 // loop_pre_header
              _
            $region68: #{custom-call.55} parent=65 // loop_header
              %s363 = sphi 0, %s367
              %p364 = scmp.ge.s32.totalorder %s363, 1
              %s368 = sphi %s349, %s349
              %s369 = sphi %s353, %s353
            $region69: #{custom-call.55} parent=65 // loop_header_branch
              %366 = sbr.rel (%p364) target = $region73
            $region70: #{custom-call.55} parent=65 // loop_body
              %v370 = vld [vmem:[%s368] sm:%s361]
              %371 = vst [vmem:[%s369] sm:%s361] %v370
            $region71: #{custom-call.55} parent=65 // loop_footer
              %s367 = sadd.s32 1, %s363
            $region72: #{custom-call.55} parent=65 // loop_footer_branch
              %362 = sbr.rel target = $region68
            $region73: #{custom-call.55} parent=65 // loop_exit
              _
          $region66: #{custom-call.55} parent=57 // pred_fallthru
            _
        $region58: #{custom-call.55} parent=53 // pred_fallthru
          _
        %386 = vnop
      $region54: #{custom-call.55} parent=5 // pred_fallthru
        _
      %p387 = scmp.le.s32.totalorder 2, %s3
      // Predicated region
      $region89: #{custom-call.55} parent=5 // pred_check
        %p388 = pneg %p387
      $region90: #{custom-call.55} parent=5 // pred_check_branch
        %390 = sbr.rel (%p388) target = $region92
      $region91: #{custom-call.55} parent=5 // pred_region
        %s391 = ssub.s32 %s3, 2
        %s392 = sand.u32 %s9, 1
        %s393 = sand.u32 %s9, 1
        %s394 = smul.addr %s393, 8
        %s395 = scalar_lea.vmem [#allocation1], %s394
      $region92: #{custom-call.55} parent=5 // pred_fallthru
        _
    $region6: #{custom-call.55} parent=1 // loop_footer
      %s7 = sadd.s32 1, %s3
    $region7: #{custom-call.55} parent=1 // loop_footer_branch
      %2 = sbr.rel target = $region3
    $region8: #{custom-call.55} parent=1 // loop_exit
      _

// kernel: custom-call.56
$region0: #{custom-call.56}
  %s0 = inlined_call_operand.vmem [shape: f32[2,1,8,8], index: 0, kind: input, shape index: {}]
  %s1 = inlined_call_operand.vmem [shape: f32[2,1,8,8], index: 1, kind: output, shape index: {}]
  $region1: #{custom-call.56} parent=0
    #allocation0 [shape = 'u8[8192]{0}', space=vmem, size = 0x2000, scoped, tag = 'operand span for operand 0']
    #allocation1 [shape = 'u8[8192]{0}', space=vmem, size = 0x2000, scoped, tag = 'operand span for operand 1']
    loop: start=0, step=1, limit=4
    $region2: #{custom-call.56} parent=1 // loop_pre_header
      _
    $region3: #{custom-call.56} parent=1 // loop_header
      %s3 = sphi 0, %s7
      %p4 = scmp.ge.s32.totalorder %s3, 4
      %s10 = sphi 0, %s36
      %s11 = sphi 0, %s32
      %s12 = sphi 0, %s28
      %s13 = sphi 0, %s24
      %s14 = sphi 0, %s10
      %s15 = sphi 0, %s11
      %s16 = sphi 0, %s12
      %s17 = sphi 0, %s13
      %s18 = sphi 0, %s14
      %s19 = sphi 0, %s15
      %s20 = sphi 0, %s16
      %s21 = sphi 0, %s17
    $region4: #{custom-call.56} parent=1 // loop_header_branch
      %6 = sbr.rel (%p4) target = $region8
    $region5: #{custom-call.56} parent=1 // loop_body
      %s8 = ssub.s32 %s3, 1
      %s9 = ssub.s32 %s3, 2
      %s22 = sadd.s32 1, %s13
      %p23 = scmp.ge.s32.totalorder %s22, 1
      %s24 = scalar_select %p23, 0, %s22
      %s25 = sadd.s32 1, %s12
      %s26 = scalar_select %p23, %s25, %s12
      %p27 = scmp.ge.s32.totalorder %s26, 1
      %s28 = scalar_select %p27, 0, %s26
      %s29 = sadd.s32 1, %s11
      %s30 = scalar_select %p27, %s29, %s11
      %p31 = scmp.ge.s32.totalorder %s30, 1
      %s32 = scalar_select %p31, 0, %s30
      %s33 = sadd.s32 1, %s10
      %s34 = scalar_select %p31, %s33, %s10
      %p35 = scmp.ge.s32.totalorder %s34, 2
      %s36 = scalar_select %p35, 0, %s34
      %p37 = scmp.le.s32.totalorder 1, %s3
      %p38 = scmp.lt.s32.totalorder %s3, 3
      %p39 = pnand %p37, %p38
      %p40 = pneg %p39
      // Predicated region
      $region9: #{custom-call.56} parent=5 // pred_check
        _
      $region10: #{custom-call.56} parent=5 // pred_check_branch
        %42 = sbr.rel (%p39) target = $region12
      $region11: #{custom-call.56} parent=5 // pred_region
        %s43 = ssub.s32 %s3, 1
      $region12: #{custom-call.56} parent=5 // pred_fallthru
        _
      %p44 = scmp.lt.s32.totalorder %s3, 2
      // Predicated region
      $region13: #{custom-call.56} parent=5 // pred_check
        %p45 = pneg %p44
      $region14: #{custom-call.56} parent=5 // pred_check_branch
        %47 = sbr.rel (%p45) target = $region16
      $region15: #{custom-call.56} parent=5 // pred_region
        %s48 = sand.u32 %s3, 1
        %s49 = sand.u32 %s3, 1
        %s50 = smul.addr %s49, 8
        %s51 = scalar_lea.vmem [#allocation0], %s50
        %s52 = sadd.s32 %s13, %s12
        %s53 = sadd.s32 %s52, %s11
        %s54 = sadd.s32 %s53, %s10
        %s55 = smul.addr %s54, 8
        %s56 = scalar_lea.vmem %s0, %s55
        // Predicated region
        $region17: #{custom-call.56} parent=15 // pred_check
          _
        $region18: #{custom-call.56} parent=15 // pred_check_branch
          %58 = sbr.rel (0) target = $region20
        $region19: #{custom-call.56} parent=15 // pred_region
          // Predicated region
          $region21: #{custom-call.56} parent=19 // pred_check
            _
          $region22: #{custom-call.56} parent=19 // pred_check_branch
            %60 = sbr.rel (0) target = $region24
          $region23: #{custom-call.56} parent=19 // pred_region
            // Predicated region
            $region36: #{custom-call.56} parent=23 // pred_check
              _
            $region37: #{custom-call.56} parent=23 // pred_check_branch
              %76 = sbr.rel (0) target = $region39
            $region38: #{custom-call.56} parent=23 // pred_region
              loop: start=0, step=1, limit=1
              $region40: #{custom-call.56} parent=38 // loop_pre_header
                _
              $region41: #{custom-call.56} parent=38 // loop_header
                %s78 = sphi 0, %s82
                %p79 = scmp.ge.s32.totalorder %s78, 1
                %s83 = sphi %s56, %s56
                %s84 = sphi %s51, %s51
              $region42: #{custom-call.56} parent=38 // loop_header_branch
                %81 = sbr.rel (%p79) target = $region46
              $region43: #{custom-call.56} parent=38 // loop_body
                %v85 = vld [vmem:[%s83] sm:$0xff]
                %86 = vst [vmem:[%s84] sm:$0xff] %v85
              $region44: #{custom-call.56} parent=38 // loop_footer
                %s82 = sadd.s32 1, %s78
              $region45: #{custom-call.56} parent=38 // loop_footer_branch
                %77 = sbr.rel target = $region41
              $region46: #{custom-call.56} parent=38 // loop_exit
                _
            $region39: #{custom-call.56} parent=23 // pred_fallthru
              _
            // Predicated region
            $region47: #{custom-call.56} parent=23 // pred_check
              _
            $region48: #{custom-call.56} parent=23 // pred_check_branch
              %88 = sbr.rel target = $region50
            $region49: #{custom-call.56} parent=23 // pred_region
              _
            $region50: #{custom-call.56} parent=23 // pred_fallthru
              _
          $region24: #{custom-call.56} parent=19 // pred_fallthru
            _
          // Predicated region
          $region25: #{custom-call.56} parent=19 // pred_check
            _
          $region26: #{custom-call.56} parent=19 // pred_check_branch
            %62 = sbr.rel target = $region28
          $region27: #{custom-call.56} parent=19 // pred_region
            %s64 = ssub.s32 256, 1
            loop: start=0, step=1, limit=1
            $region29: #{custom-call.56} parent=27 // loop_pre_header
              _
            $region30: #{custom-call.56} parent=27 // loop_header
              %s66 = sphi 0, %s70
              %p67 = scmp.ge.s32.totalorder %s66, 1
              %s71 = sphi %s56, %s56
              %s72 = sphi %s51, %s51
            $region31: #{custom-call.56} parent=27 // loop_header_branch
              %69 = sbr.rel (%p67) target = $region35
            $region32: #{custom-call.56} parent=27 // loop_body
              %v73 = vld [vmem:[%s71] sm:%s64]
              %74 = vst [vmem:[%s72] sm:%s64] %v73
            $region33: #{custom-call.56} parent=27 // loop_footer
              %s70 = sadd.s32 1, %s66
            $region34: #{custom-call.56} parent=27 // loop_footer_branch
              %65 = sbr.rel target = $region30
            $region35: #{custom-call.56} parent=27 // loop_exit
              _
          $region28: #{custom-call.56} parent=19 // pred_fallthru
            _
        $region20: #{custom-call.56} parent=15 // pred_fallthru
          _
        %89 = vnop
      $region16: #{custom-call.56} parent=5 // pred_fallthru
        _
      %p90 = scmp.le.s32.totalorder 1, %s3
      %p91 = scmp.lt.s32.totalorder %s3, 3
      %p92 = pnand %p90, %p91
      %p93 = pneg %p92
      // Predicated region
      $region51: #{custom-call.56} parent=5 // pred_check
        _
      $region52: #{custom-call.56} parent=5 // pred_check_branch
        %95 = sbr.rel (%p92) target = $region54
      $region53: #{custom-call.56} parent=5 // pred_region
        #allocation2 [shape = 'f32[8,8]{1,0}', space=vmem, size = 0x1000, scoped, tag = 'rescaled input a']
        %s96 = ssub.s32 %s3, 1
        %s97 = sand.u32 %s8, 1
        %s98 = sand.u32 %s8, 1
        %s99 = smul.addr %s98, 8
        %s100 = scalar_lea.vmem [#allocation0], %s99
        %s101 = sand.u32 %s8, 1
        %s102 = sand.u32 %s8, 1
        %s103 = smul.addr %s102, 8
        %s104 = scalar_lea.vmem [#allocation0], %s103
        %s105 = sand.u32 %s8, 1
        %s106 = sand.u32 %s8, 1
        %s107 = smul.addr %s106, 8
        %s108 = scalar_lea.vmem [#allocation1], %s107
        %v109 = vlaneseq
        %v110 = vand.u32 %v109, 127
        %vm111 = vcmp.lt.s32.totalorder %v110, 8
        %v112 = vlaneseq
        %v113 = vshrl.u32 %v112, 7
        %vm115 = vcmp.eq.s32.totalorder %v113, %v110
        %v116 = vld [vmem:[%s100] sm:$0xff]
        %v117 = vsel %vm115, %v116, 0.0
        %118 = vadd.xlane.f32.xlu0 %v117
        %v119 = vpop.xlane.xlu0 %118
        %vm120 = vcmp.ge.s32.totalorder %v113, %v110
        %vm121 = vmand %vm120, %vm111
        %v122 = vsel %vm121, %v116, 0.0
        %v123 = vrcp.pop %v119
        %v124 = vmul.f32 %v119, %v123
        %v125 = vsub.f32 1.0, %v124
        %v126 = vmul.f32 %v123, %v125
        %v127 = vadd.f32 %v123, %v126
        %vm128 = vweird.f32 %v119
        %vm129 = vweird.f32 %v123
        %vm130 = vmor %vm128, %vm129
        %v131 = vsel %vm130, %v123, %v127
        %v132 = vand.u32 2147483647, %v119
        %vm133 = vcmp.eq.f32.partialorder %v132, 8.507059e+37
        %v134 = vand.u32 %v119, 2147483648
        %v135 = vor.u32 1.1754944e-38, %v134
        %v136 = vsel %vm133, %v135, %v131
        %v137 = vmul.f32 %v122, %v136
        %138 = vst [vmem:[#allocation2] sm:$0xff] %v137
        %v139 = vlaneseq
        %v140 = vand.u32 %v139, 127
        %v141 = vlaneseq
        %v142 = vshrl.u32 %v141, 7
        %vm144 = vcmp.eq.s32.totalorder %v140, %v142
        %v145 = vlaneseq
        %v146 = vand.u32 %v145, 127
        %vm147 = vcmp.eq.s32.totalorder %v146, 0
        %v148 = vsel %vm147, 1.0, -1.0
        %v149 = vsel %vm144, %v148, 0.0
        %s150 = scalar_lea.vmem [#allocation2], 1
        %v151 = vld [vmem:[%s150] ss:$0 sm:$0xff]
        %v152 = vxor.u32 %v151, 2147483648
        %v153 = vlaneseq
        %v154 = vand.u32 %v153, 127
        %vm155 = vcmp.eq.s32.totalorder %v154, 1
        %v156 = vmul.f32 %v152, %v149
        %157 = vadd.xlane.f32.xlu0 %v156
        %v158 = vpop.xlane.xlu0 %157
        %v159 = vsel %vm155, %v158, %v149
        %s160 = scalar_lea.vmem [#allocation2], 2
        %v161 = vld [vmem:[%s160] ss:$0 sm:$0xff]
        %v162 = vxor.u32 %v161, 2147483648
        %v163 = vlaneseq
        %v164 = vand.u32 %v163, 127
        %vm165 = vcmp.eq.s32.totalorder %v164, 2
        %v166 = vmul.f32 %v162, %v159
        %167 = vadd.xlane.f32.xlu0 %v166
        %v168 = vpop.xlane.xlu0 %167
        %v169 = vsel %vm165, %v168, %v159
        %s170 = scalar_lea.vmem [#allocation2], 3
        %v171 = vld [vmem:[%s170] ss:$0 sm:$0xff]
        %v172 = vxor.u32 %v171, 2147483648
        %v173 = vlaneseq
        %v174 = vand.u32 %v173, 127
        %vm175 = vcmp.eq.s32.totalorder %v174, 3
        %v176 = vmul.f32 %v172, %v169
        %177 = vadd.xlane.f32.xlu0 %v176
        %v178 = vpop.xlane.xlu0 %177
        %v179 = vsel %vm175, %v178, %v169
        %s180 = scalar_lea.vmem [#allocation2], 4
        %v181 = vld [vmem:[%s180] ss:$0 sm:$0xff]
        %v182 = vxor.u32 %v181, 2147483648
        %v183 = vlaneseq
        %v184 = vand.u32 %v183, 127
        %vm185 = vcmp.eq.s32.totalorder %v184, 4
        %v186 = vmul.f32 %v182, %v179
        %187 = vadd.xlane.f32.xlu0 %v186
        %v188 = vpop.xlane.xlu0 %187
        %v189 = vsel %vm185, %v188, %v179
        %s190 = scalar_lea.vmem [#allocation2], 5
        %v191 = vld [vmem:[%s190] ss:$0 sm:$0xff]
        %v192 = vxor.u32 %v191, 2147483648
        %v193 = vlaneseq
        %v194 = vand.u32 %v193, 127
        %vm195 = vcmp.eq.s32.totalorder %v194, 5
        %v196 = vmul.f32 %v192, %v189
        %197 = vadd.xlane.f32.xlu0 %v196
        %v198 = vpop.xlane.xlu0 %197
        %v199 = vsel %vm195, %v198, %v189
        %s200 = scalar_lea.vmem [#allocation2], 6
        %v201 = vld [vmem:[%s200] ss:$0 sm:$0xff]
        %v202 = vxor.u32 %v201, 2147483648
        %v203 = vlaneseq
        %v204 = vand.u32 %v203, 127
        %vm205 = vcmp.eq.s32.totalorder %v204, 6
        %v206 = vmul.f32 %v202, %v199
        %207 = vadd.xlane.f32.xlu0 %v206
        %v208 = vpop.xlane.xlu0 %207
        %v209 = vsel %vm205, %v208, %v199
        %s210 = scalar_lea.vmem [#allocation2], 7
        %v211 = vld [vmem:[%s210] ss:$0 sm:$0xff]
        %v212 = vxor.u32 %v211, 2147483648
        %v213 = vlaneseq
        %v214 = vand.u32 %v213, 127
        %vm215 = vcmp.eq.s32.totalorder %v214, 7
        %v216 = vmul.f32 %v212, %v209
        %217 = vadd.xlane.f32.xlu0 %v216
        %v218 = vpop.xlane.xlu0 %217
        %v219 = vsel %vm215, %v218, %v209
        %v220 = vrcp.pop %v119
        %v221 = vmul.f32 %v119, %v220
        %v222 = vsub.f32 1.0, %v221
        %v223 = vmul.f32 %v220, %v222
        %v224 = vadd.f32 %v220, %v223
        %vm225 = vweird.f32 %v119
        %vm226 = vweird.f32 %v220
        %vm227 = vmor %vm225, %vm226
        %v228 = vsel %vm227, %v220, %v224
        %v229 = vand.u32 2147483647, %v119
        %vm230 = vcmp.eq.f32.partialorder %v229, 8.507059e+37
        %v231 = vand.u32 %v119, 2147483648
        %v232 = vor.u32 1.1754944e-38, %v231
        %v233 = vsel %vm230, %v232, %v228
        %v234 = vmul.f32 %v219, %v233
        %vm235 = vweird.f32 %v119
        %v236 = vsel %vm235, %v219, %v234
        %237 = vst [vmem:[%s108] sm:$0xff] %v236
        %s238 = sand.u32 %s8, 1
        %s239 = sand.u32 %s8, 1
        %s240 = smul.addr %s239, 8
        %s241 = scalar_lea.vmem [#allocation1], %s240
        %s242 = sadd.s32 %s17, %s16
        %s243 = sadd.s32 %s242, %s15
        %s244 = sadd.s32 %s243, %s14
        %s245 = smul.addr %s244, 8
        %s246 = scalar_lea.vmem %s1, %s245
        // Predicated region
        $region55: #{custom-call.56} parent=53 // pred_check
          _
        $region56: #{custom-call.56} parent=53 // pred_check_branch
          %248 = sbr.rel (0) target = $region58
        $region57: #{custom-call.56} parent=53 // pred_region
          // Predicated region
          $region59: #{custom-call.56} parent=57 // pred_check
            _
          $region60: #{custom-call.56} parent=57 // pred_check_branch
            %250 = sbr.rel (0) target = $region62
          $region61: #{custom-call.56} parent=57 // pred_region
            // Predicated region
            $region74: #{custom-call.56} parent=61 // pred_check
              _
            $region75: #{custom-call.56} parent=61 // pred_check_branch
              %266 = sbr.rel (0) target = $region77
            $region76: #{custom-call.56} parent=61 // pred_region
              loop: start=0, step=1, limit=1
              $region78: #{custom-call.56} parent=76 // loop_pre_header
                _
              $region79: #{custom-call.56} parent=76 // loop_header
                %s268 = sphi 0, %s272
                %p269 = scmp.ge.s32.totalorder %s268, 1
                %s273 = sphi %s241, %s241
                %s274 = sphi %s246, %s246
              $region80: #{custom-call.56} parent=76 // loop_header_branch
                %271 = sbr.rel (%p269) target = $region84
              $region81: #{custom-call.56} parent=76 // loop_body
                %v275 = vld [vmem:[%s273] sm:$0xff]
                %276 = vst [vmem:[%s274] sm:$0xff] %v275
              $region82: #{custom-call.56} parent=76 // loop_footer
                %s272 = sadd.s32 1, %s268
              $region83: #{custom-call.56} parent=76 // loop_footer_branch
                %267 = sbr.rel target = $region79
              $region84: #{custom-call.56} parent=76 // loop_exit
                _
            $region77: #{custom-call.56} parent=61 // pred_fallthru
              _
            // Predicated region
            $region85: #{custom-call.56} parent=61 // pred_check
              _
            $region86: #{custom-call.56} parent=61 // pred_check_branch
              %278 = sbr.rel target = $region88
            $region87: #{custom-call.56} parent=61 // pred_region
              _
            $region88: #{custom-call.56} parent=61 // pred_fallthru
              _
          $region62: #{custom-call.56} parent=57 // pred_fallthru
            _
          // Predicated region
          $region63: #{custom-call.56} parent=57 // pred_check
            _
          $region64: #{custom-call.56} parent=57 // pred_check_branch
            %252 = sbr.rel target = $region66
          $region65: #{custom-call.56} parent=57 // pred_region
            %s254 = ssub.s32 256, 1
            loop: start=0, step=1, limit=1
            $region67: #{custom-call.56} parent=65 // loop_pre_header
              _
            $region68: #{custom-call.56} parent=65 // loop_header
              %s256 = sphi 0, %s260
              %p257 = scmp.ge.s32.totalorder %s256, 1
              %s261 = sphi %s241, %s241
              %s262 = sphi %s246, %s246
            $region69: #{custom-call.56} parent=65 // loop_header_branch
              %259 = sbr.rel (%p257) target = $region73
            $region70: #{custom-call.56} parent=65 // loop_body
              %v263 = vld [vmem:[%s261] sm:%s254]
              %264 = vst [vmem:[%s262] sm:%s254] %v263
            $region71: #{custom-call.56} parent=65 // loop_footer
              %s260 = sadd.s32 1, %s256
            $region72: #{custom-call.56} parent=65 // loop_footer_branch
              %255 = sbr.rel target = $region68
            $region73: #{custom-call.56} parent=65 // loop_exit
              _
          $region66: #{custom-call.56} parent=57 // pred_fallthru
            _
        $region58: #{custom-call.56} parent=53 // pred_fallthru
          _
        %279 = vnop
      $region54: #{custom-call.56} parent=5 // pred_fallthru
        _
      %p280 = scmp.le.s32.totalorder 2, %s3
      // Predicated region
      $region89: #{custom-call.56} parent=5 // pred_check
        %p281 = pneg %p280
      $region90: #{custom-call.56} parent=5 // pred_check_branch
        %283 = sbr.rel (%p281) target = $region92
      $region91: #{custom-call.56} parent=5 // pred_region
        %s284 = ssub.s32 %s3, 2
        %s285 = sand.u32 %s9, 1
        %s286 = sand.u32 %s9, 1
        %s287 = smul.addr %s286, 8
        %s288 = scalar_lea.vmem [#allocation1], %s287
      $region92: #{custom-call.56} parent=5 // pred_fallthru
        _
    $region6: #{custom-call.56} parent=1 // loop_footer
      %s7 = sadd.s32 1, %s3
    $region7: #{custom-call.56} parent=1 // loop_footer_branch
      %2 = sbr.rel target = $region3
    $region8: #{custom-call.56} parent=1 // loop_exit
      _

// kernel: reverse
$region0: #{reverse}
  %s0 = inlined_call_operand.vmem [shape: f32[2,8], index: 0, kind: input, shape index: {}]
  %s1 = inlined_call_operand.vmem [shape: f32[2,8], index: 1, kind: output, shape index: {}]
  %v2 = vlaneseq
  %v3 = vsub.s32 7, %v2
  %4 = vset.pattern.permute.xlu0 %v3
  $region1: #{reverse} parent=0
    #allocation0 [shape = 'u8[4096]{0}', space=vmem, size = 0x1000, scoped, tag = 'operand span for operand 0']
    #allocation1 [shape = 'u8[1024]{0}', space=vmem, size = 0x400, scoped, tag = 'packed  for operand 0']
    #allocation2 [shape = 'u8[4096]{0}', space=vmem, size = 0x1000, scoped, tag = 'operand span for operand 1']
    #allocation3 [shape = 'u8[1024]{0}', space=vmem, size = 0x400, scoped, tag = 'packed  for operand 1']
    // Predicated region
    $region2: #{reverse} parent=1 // pred_check
      _
    $region3: #{reverse} parent=1 // pred_check_branch
      %6 = sbr.rel (0) target = $region5
    $region4: #{reverse} parent=1 // pred_region
      // Predicated region
      $region6: #{reverse} parent=4 // pred_check
        _
      $region7: #{reverse} parent=4 // pred_check_branch
        %8 = sbr.rel target = $region9
      $region8: #{reverse} parent=4 // pred_region
        // Predicated region
        $region21: #{reverse} parent=8 // pred_check
          _
        $region22: #{reverse} parent=8 // pred_check_branch
          %24 = sbr.rel (0) target = $region24
        $region23: #{reverse} parent=8 // pred_region
          %s26 = ssub.s32 4, 1
          loop: start=0, step=1, limit=1
          $region25: #{reverse} parent=23 // loop_pre_header
            _
          $region26: #{reverse} parent=23 // loop_header
            %s28 = sphi 0, %s32
            %p29 = scmp.ge.s32.totalorder %s28, 1
            %s33 = sphi %s0, %s0
            %s34 = sphi [#allocation1], [#allocation1]
          $region27: #{reverse} parent=23 // loop_header_branch
            %31 = sbr.rel (%p29) target = $region31
          $region28: #{reverse} parent=23 // loop_body
            %v35 = vld [vmem:[%s33] sm:%s26]
            %36 = vst [vmem:[%s34] sm:%s26] %v35
          $region29: #{reverse} parent=23 // loop_footer
            %s32 = sadd.s32 1, %s28
          $region30: #{reverse} parent=23 // loop_footer_branch
            %27 = sbr.rel target = $region26
          $region31: #{reverse} parent=23 // loop_exit
            _
        $region24: #{reverse} parent=8 // pred_fallthru
          _
      $region9: #{reverse} parent=4 // pred_fallthru
        _
      // Predicated region
      $region10: #{reverse} parent=4 // pred_check
        _
      $region11: #{reverse} parent=4 // pred_check_branch
        %10 = sbr.rel (0) target = $region13
      $region12: #{reverse} parent=4 // pred_region
        %s12 = ssub.s32 4, 1
        loop: start=0, step=1, limit=1
        $region14: #{reverse} parent=12 // loop_pre_header
          _
        $region15: #{reverse} parent=12 // loop_header
          %s14 = sphi 0, %s18
          %p15 = scmp.ge.s32.totalorder %s14, 1
          %s19 = sphi %s0, %s0
          %s20 = sphi [#allocation1], [#allocation1]
        $region16: #{reverse} parent=12 // loop_header_branch
          %17 = sbr.rel (%p15) target = $region20
        $region17: #{reverse} parent=12 // loop_body
          %v21 = vld [vmem:[%s19] sm:%s12]
          %22 = vst [vmem:[%s20] sm:%s12] %v21
        $region18: #{reverse} parent=12 // loop_footer
          %s18 = sadd.s32 1, %s14
        $region19: #{reverse} parent=12 // loop_footer_branch
          %13 = sbr.rel target = $region15
        $region20: #{reverse} parent=12 // loop_exit
          _
      $region13: #{reverse} parent=4 // pred_fallthru
        _
    $region5: #{reverse} parent=1 // pred_fallthru
      _
    %37 = vnop
    %s39 = ssub.s32 4, 1
    %v40 = vld [vmem:[#allocation1] sm:%s39]
    %41 = vst [vmem:[#allocation0] sm:%s39] %v40
    %v42 = vld [vmem:[#allocation0] sm:$0xff]
    %43 = vperm.xlu0 %4, %v42
    %v44 = vpop.permute.xlu0 %43
    %45 = vst [vmem:[#allocation2] sm:$0xff] %v44
    %s47 = ssub.s32 4, 1
    %v48 = vld [vmem:[#allocation2] sm:%s47]
    %s50 = ssub.s32 4, 1
    %51 = vst [vmem:[#allocation3] sm:%s50] %v48
    // Predicated region
    $region32: #{reverse} parent=1 // pred_check
      _
    $region33: #{reverse} parent=1 // pred_check_branch
      %53 = sbr.rel (0) target = $region35
    $region34: #{reverse} parent=1 // pred_region
      // Predicated region
      $region36: #{reverse} parent=34 // pred_check
        _
      $region37: #{reverse} parent=34 // pred_check_branch
        %55 = sbr.rel target = $region39
      $region38: #{reverse} parent=34 // pred_region
        // Predicated region
        $region51: #{reverse} parent=38 // pred_check
          _
        $region52: #{reverse} parent=38 // pred_check_branch
          %71 = sbr.rel (0) target = $region54
        $region53: #{reverse} parent=38 // pred_region
          %s73 = ssub.s32 4, 1
          loop: start=0, step=1, limit=1
          $region55: #{reverse} parent=53 // loop_pre_header
            _
          $region56: #{reverse} parent=53 // loop_header
            %s75 = sphi 0, %s79
            %p76 = scmp.ge.s32.totalorder %s75, 1
            %s80 = sphi [#allocation3], [#allocation3]
            %s81 = sphi %s1, %s1
          $region57: #{reverse} parent=53 // loop_header_branch
            %78 = sbr.rel (%p76) target = $region61
          $region58: #{reverse} parent=53 // loop_body
            %v82 = vld [vmem:[%s80] sm:%s73]
            %83 = vst [vmem:[%s81] sm:%s73] %v82
          $region59: #{reverse} parent=53 // loop_footer
            %s79 = sadd.s32 1, %s75
          $region60: #{reverse} parent=53 // loop_footer_branch
            %74 = sbr.rel target = $region56
          $region61: #{reverse} parent=53 // loop_exit
            _
        $region54: #{reverse} parent=38 // pred_fallthru
          _
      $region39: #{reverse} parent=34 // pred_fallthru
        _
      // Predicated region
      $region40: #{reverse} parent=34 // pred_check
        _
      $region41: #{reverse} parent=34 // pred_check_branch
        %57 = sbr.rel (0) target = $region43
      $region42: #{reverse} parent=34 // pred_region
        %s59 = ssub.s32 4, 1
        loop: start=0, step=1, limit=1
        $region44: #{reverse} parent=42 // loop_pre_header
          _
        $region45: #{reverse} parent=42 // loop_header
          %s61 = sphi 0, %s65
          %p62 = scmp.ge.s32.totalorder %s61, 1
          %s66 = sphi [#allocation3], [#allocation3]
          %s67 = sphi %s1, %s1
        $region46: #{reverse} parent=42 // loop_header_branch
          %64 = sbr.rel (%p62) target = $region50
        $region47: #{reverse} parent=42 // loop_body
          %v68 = vld [vmem:[%s66] sm:%s59]
          %69 = vst [vmem:[%s67] sm:%s59] %v68
        $region48: #{reverse} parent=42 // loop_footer
          %s65 = sadd.s32 1, %s61
        $region49: #{reverse} parent=42 // loop_footer_branch
          %60 = sbr.rel target = $region45
        $region50: #{reverse} parent=42 // loop_exit
          _
      $region43: #{reverse} parent=34 // pred_fallthru
        _
    $region35: #{reverse} parent=1 // pred_fallthru
      _
    %84 = vnop

// kernel: custom-call.22
$region0: #{custom-call.22}
  %s0 = inlined_call_operand.vmem [shape: f32[2,4,4], index: 0, kind: input, shape index: {}]
  %s1 = inlined_call_operand.vmem [shape: f32[2,4,4], index: 1, kind: input, shape index: {}]
  %s2 = inlined_call_operand.vmem [shape: f32[2,4,4], index: 2, kind: input, shape index: {}]
  %s3 = inlined_call_operand.vmem [shape: f32[2,4,4], index: 3, kind: input, shape index: {}]
  %s4 = inlined_call_operand.vmem [shape: f32[2,4], index: 4, kind: output, shape index: {0}]
  %s5 = inlined_call_operand.vmem [shape: f32[2,4], index: 5, kind: output, shape index: {1}]
  %s6 = inlined_call_operand.vmem [shape: f32[2,4,4], index: 6, kind: output, shape index: {2}]
  %s7 = inlined_call_operand.vmem [shape: f32[2,4,4], index: 7, kind: output, shape index: {3}]
  %s8 = inlined_call_operand.vmem [shape: f32[2,4,4], index: 8, kind: output, shape index: {4}]
  %s9 = inlined_call_operand.vmem [shape: f32[2,4,4], index: 9, kind: output, shape index: {5}]
  %10 = xla_tuple %s4, %s5, %s6, %s7, %s8, %s9
  $region1: #{custom-call.22} parent=0
    #allocation0 [shape = 'u8[4096]{0}', space=vmem, size = 0x1000, scoped, tag = 'operand span for operand 0']
    #allocation1 [shape = 'u8[4096]{0}', space=vmem, size = 0x1000, scoped, tag = 'packed  for operand 0']
    #allocation2 [shape = 'u8[4096]{0}', space=vmem, size = 0x1000, scoped, tag = 'operand span for operand 1']
    #allocation3 [shape = 'u8[4096]{0}', space=vmem, size = 0x1000, scoped, tag = 'packed  for operand 1']
    #allocation4 [shape = 'u8[4096]{0}', space=vmem, size = 0x1000, scoped, tag = 'operand span for operand 2']
    #allocation5 [shape = 'u8[4096]{0}', space=vmem, size = 0x1000, scoped, tag = 'packed  for operand 2']
    #allocation6 [shape = 'u8[4096]{0}', space=vmem, size = 0x1000, scoped, tag = 'operand span for operand 3']
    #allocation7 [shape = 'u8[4096]{0}', space=vmem, size = 0x1000, scoped, tag = 'packed  for operand 3']
    #allocation8 [shape = 'u8[4096]{0}', space=vmem, size = 0x1000, scoped, tag = 'operand span for operand 4']
    #allocation9 [shape = 'u8[2048]{0}', space=vmem, size = 0x800, scoped, tag = 'packed  for operand 4']
    #allocation10 [shape = 'u8[4096]{0}', space=vmem, size = 0x1000, scoped, tag = 'operand span for operand 5']
    #allocation11 [shape = 'u8[2048]{0}', space=vmem, size = 0x800, scoped, tag = 'packed  for operand 5']
    #allocation12 [shape = 'u8[4096]{0}', space=vmem, size = 0x1000, scoped, tag = 'operand span for operand 6']
    #allocation13 [shape = 'u8[4096]{0}', space=vmem, size = 0x1000, scoped, tag = 'packed  for operand 6']
    #allocation14 [shape = 'u8[4096]{0}', space=vmem, size = 0x1000, scoped, tag = 'operand span for operand 7']
    #allocation15 [shape = 'u8[4096]{0}', space=vmem, size = 0x1000, scoped, tag = 'packed  for operand 7']
    #allocation16 [shape = 'u8[4096]{0}', space=vmem, size = 0x1000, scoped, tag = 'operand span for operand 8']
    #allocation17 [shape = 'u8[4096]{0}', space=vmem, size = 0x1000, scoped, tag = 'packed  for operand 8']
    #allocation18 [shape = 'u8[4096]{0}', space=vmem, size = 0x1000, scoped, tag = 'operand span for operand 9']
    #allocation19 [shape = 'u8[4096]{0}', space=vmem, size = 0x1000, scoped, tag = 'packed  for operand 9']
    loop: start=0, step=1, limit=4
    $region2: #{custom-call.22} parent=1 // loop_pre_header
      _
    $region3: #{custom-call.22} parent=1 // loop_header
      %s12 = sphi 0, %s16
      %p13 = scmp.ge.s32.totalorder %s12, 4
      %s24 = sphi 0, %s26
      %s27 = sphi 0, %s24
      %s28 = sphi 0, %s27
      %s44 = sphi 0, %s28
      %s52 = sphi 0, %s54
      %s55 = sphi 0, %s52
      %s56 = sphi 0, %s55
      %s72 = sphi 0, %s56
    $region4: #{custom-call.22} parent=1 // loop_header_branch
      %15 = sbr.rel (%p13) target = $region8
    $region5: #{custom-call.22} parent=1 // loop_body
      %s17 = ssub.s32 %s12, 1
      %s18 = ssub.s32 %s12, 2
      %s19 = sadd.s32 %s12, 1
      %s20 = sshrl.u32 %s12, 3
      %s21 = sshrl.u32 %s19, 3
      %s22 = ssub.s32 %s20, %s21
      %p23 = scmp.eq.s32.totalorder %s22, 0
      %s25 = sadd.s32 %s24, 1
      %s26 = scalar_select %p23, %s24, %s25
      %p29 = pneg %p23
      %p30 = scmp.eq.s32.totalorder %s12, 1
      %p31 = por %p29, %p30
      %p32 = scmp.ne.s32.totalorder %s24, %s27
      %p33 = scmp.eq.s32.totalorder %s12, 0
      %p34 = por %p32, %p33
      %p35 = scmp.ne.s32.totalorder %s24, %s27
      %p36 = scmp.eq.s32.totalorder %s17, 1
      %p37 = por %p35, %p36
      %p38 = scmp.ne.s32.totalorder %s27, %s28
      %p39 = scmp.eq.s32.totalorder %s17, 0
      %p40 = por %p38, %p39
      %p41 = scmp.ne.s32.totalorder %s27, %s28
      %p42 = scmp.eq.s32.totalorder %s18, 1
      %p43 = por %p41, %p42
      %p45 = scmp.ne.s32.totalorder %s28, %s44
      %p46 = scmp.eq.s32.totalorder %s18, 0
      %p47 = por %p45, %p46
      %s48 = sshrl.u32 %s12, 3
      %s49 = sshrl.u32 %s19, 3
      %s50 = ssub.s32 %s48, %s49
      %p51 = scmp.eq.s32.totalorder %s50, 0
      %s53 = sadd.s32 %s52, 1
      %s54 = scalar_select %p51, %s52, %s53
      %p57 = pneg %p51
      %p58 = scmp.eq.s32.totalorder %s12, 1
      %p59 = por %p57, %p58
      %p60 = scmp.ne.s32.totalorder %s52, %s55
      %p61 = scmp.eq.s32.totalorder %s12, 0
      %p62 = por %p60, %p61
      %p63 = scmp.ne.s32.totalorder %s52, %s55
      %p64 = scmp.eq.s32.totalorder %s17, 1
      %p65 = por %p63, %p64
      %p66 = scmp.ne.s32.totalorder %s55, %s56
      %p67 = scmp.eq.s32.totalorder %s17, 0
      %p68 = por %p66, %p67
      %p69 = scmp.ne.s32.totalorder %s55, %s56
      %p70 = scmp.eq.s32.totalorder %s18, 1
      %p71 = por %p69, %p70
      %p73 = scmp.ne.s32.totalorder %s56, %s72
      %p74 = scmp.eq.s32.totalorder %s18, 0
      %p75 = por %p73, %p74
      %p76 = scmp.le.s32.totalorder 1, %s12
      %p77 = scmp.lt.s32.totalorder %s12, 3
      %p78 = pnand %p76, %p77
      %p79 = pneg %p78
      // Predicated region
      $region9: #{custom-call.22} parent=5 // pred_check
        _
      $region10: #{custom-call.22} parent=5 // pred_check_branch
        %81 = sbr.rel (%p78) target = $region12
      $region11: #{custom-call.22} parent=5 // pred_region
        %s82 = ssub.s32 %s12, 1
      $region12: #{custom-call.22} parent=5 // pred_fallthru
        _
      %p83 = scmp.lt.s32.totalorder %s12, 2
      // Predicated region
      $region13: #{custom-call.22} parent=5 // pred_check
        %p84 = pneg %p83
      $region14: #{custom-call.22} parent=5 // pred_check_branch
        %86 = sbr.rel (%p84) target = $region16
      $region15: #{custom-call.22} parent=5 // pred_region
        %s87 = sand.u32 %s12, 1
        %s88 = sand.u32 %s12, 1
        %s89 = smul.addr %s88, 4
        %s90 = scalar_lea.vmem [#allocation1], %s89
        %s91 = smul.addr %s12, 4
        %s92 = scalar_lea.vmem %s0, %s91
        // Predicated region
        $region17: #{custom-call.22} parent=15 // pred_check
          _
        $region18: #{custom-call.22} parent=15 // pred_check_branch
          %94 = sbr.rel (0) target = $region20
        $region19: #{custom-call.22} parent=15 // pred_region
          // Predicated region
          $region21: #{custom-call.22} parent=19 // pred_check
            _
          $region22: #{custom-call.22} parent=19 // pred_check_branch
            %96 = sbr.rel target = $region24
          $region23: #{custom-call.22} parent=19 // pred_region
            // Predicated region
            $region36: #{custom-call.22} parent=23 // pred_check
              _
            $region37: #{custom-call.22} parent=23 // pred_check_branch
              %112 = sbr.rel (0) target = $region39
            $region38: #{custom-call.22} parent=23 // pred_region
              %s114 = ssub.s32 16, 1
              loop: start=0, step=1, limit=1
              $region40: #{custom-call.22} parent=38 // loop_pre_header
                _
              $region41: #{custom-call.22} parent=38 // loop_header
                %s116 = sphi 0, %s120
                %p117 = scmp.ge.s32.totalorder %s116, 1
                %s121 = sphi %s92, %s92
                %s122 = sphi %s90, %s90
              $region42: #{custom-call.22} parent=38 // loop_header_branch
                %119 = sbr.rel (%p117) target = $region46
              $region43: #{custom-call.22} parent=38 // loop_body
                %v123 = vld [vmem:[%s121] sm:%s114]
                %124 = vst [vmem:[%s122] sm:%s114] %v123
              $region44: #{custom-call.22} parent=38 // loop_footer
                %s120 = sadd.s32 1, %s116
              $region45: #{custom-call.22} parent=38 // loop_footer_branch
                %115 = sbr.rel target = $region41
              $region46: #{custom-call.22} parent=38 // loop_exit
                _
            $region39: #{custom-call.22} parent=23 // pred_fallthru
              _
          $region24: #{custom-call.22} parent=19 // pred_fallthru
            _
          // Predicated region
          $region25: #{custom-call.22} parent=19 // pred_check
            _
          $region26: #{custom-call.22} parent=19 // pred_check_branch
            %98 = sbr.rel (0) target = $region28
          $region27: #{custom-call.22} parent=19 // pred_region
            %s100 = ssub.s32 16, 1
            loop: start=0, step=1, limit=1
            $region29: #{custom-call.22} parent=27 // loop_pre_header
              _
            $region30: #{custom-call.22} parent=27 // loop_header
              %s102 = sphi 0, %s106
              %p103 = scmp.ge.s32.totalorder %s102, 1
              %s107 = sphi %s92, %s92
              %s108 = sphi %s90, %s90
            $region31: #{custom-call.22} parent=27 // loop_header_branch
              %105 = sbr.rel (%p103) target = $region35
            $region32: #{custom-call.22} parent=27 // loop_body
              %v109 = vld [vmem:[%s107] sm:%s100]
              %110 = vst [vmem:[%s108] sm:%s100] %v109
            $region33: #{custom-call.22} parent=27 // loop_footer
              %s106 = sadd.s32 1, %s102
            $region34: #{custom-call.22} parent=27 // loop_footer_branch
              %101 = sbr.rel target = $region30
            $region35: #{custom-call.22} parent=27 // loop_exit
              _
          $region28: #{custom-call.22} parent=19 // pred_fallthru
            _
        $region20: #{custom-call.22} parent=15 // pred_fallthru
          _
        %125 = vnop
        %s126 = sand.u32 %s12, 1
        %s127 = sand.u32 %s12, 1
        %s128 = smul.addr %s127, 4
        %s129 = scalar_lea.vmem [#allocation3], %s128
        %s130 = smul.addr %s12, 4
        %s131 = scalar_lea.vmem %s1, %s130
        // Predicated region
        $region47: #{custom-call.22} parent=15 // pred_check
          _
        $region48: #{custom-call.22} parent=15 // pred_check_branch
          %133 = sbr.rel (0) target = $region50
        $region49: #{custom-call.22} parent=15 // pred_region
          // Predicated region
          $region51: #{custom-call.22} parent=49 // pred_check
            _
          $region52: #{custom-call.22} parent=49 // pred_check_branch
            %135 = sbr.rel target = $region54
          $region53: #{custom-call.22} parent=49 // pred_region
            // Predicated region
            $region66: #{custom-call.22} parent=53 // pred_check
              _
            $region67: #{custom-call.22} parent=53 // pred_check_branch
              %151 = sbr.rel (0) target = $region69
            $region68: #{custom-call.22} parent=53 // pred_region
              %s153 = ssub.s32 16, 1
              loop: start=0, step=1, limit=1
              $region70: #{custom-call.22} parent=68 // loop_pre_header
                _
              $region71: #{custom-call.22} parent=68 // loop_header
                %s155 = sphi 0, %s159
                %p156 = scmp.ge.s32.totalorder %s155, 1
                %s160 = sphi %s131, %s131
                %s161 = sphi %s129, %s129
              $region72: #{custom-call.22} parent=68 // loop_header_branch
                %158 = sbr.rel (%p156) target = $region76
              $region73: #{custom-call.22} parent=68 // loop_body
                %v162 = vld [vmem:[%s160] sm:%s153]
                %163 = vst [vmem:[%s161] sm:%s153] %v162
              $region74: #{custom-call.22} parent=68 // loop_footer
                %s159 = sadd.s32 1, %s155
              $region75: #{custom-call.22} parent=68 // loop_footer_branch
                %154 = sbr.rel target = $region71
              $region76: #{custom-call.22} parent=68 // loop_exit
                _
            $region69: #{custom-call.22} parent=53 // pred_fallthru
              _
          $region54: #{custom-call.22} parent=49 // pred_fallthru
            _
          // Predicated region
          $region55: #{custom-call.22} parent=49 // pred_check
            _
          $region56: #{custom-call.22} parent=49 // pred_check_branch
            %137 = sbr.rel (0) target = $region58
          $region57: #{custom-call.22} parent=49 // pred_region
            %s139 = ssub.s32 16, 1
            loop: start=0, step=1, limit=1
            $region59: #{custom-call.22} parent=57 // loop_pre_header
              _
            $region60: #{custom-call.22} parent=57 // loop_header
              %s141 = sphi 0, %s145
              %p142 = scmp.ge.s32.totalorder %s141, 1
              %s146 = sphi %s131, %s131
              %s147 = sphi %s129, %s129
            $region61: #{custom-call.22} parent=57 // loop_header_branch
              %144 = sbr.rel (%p142) target = $region65
            $region62: #{custom-call.22} parent=57 // loop_body
              %v148 = vld [vmem:[%s146] sm:%s139]
              %149 = vst [vmem:[%s147] sm:%s139] %v148
            $region63: #{custom-call.22} parent=57 // loop_footer
              %s145 = sadd.s32 1, %s141
            $region64: #{custom-call.22} parent=57 // loop_footer_branch
              %140 = sbr.rel target = $region60
            $region65: #{custom-call.22} parent=57 // loop_exit
              _
          $region58: #{custom-call.22} parent=49 // pred_fallthru
            _
        $region50: #{custom-call.22} parent=15 // pred_fallthru
          _
        %164 = vnop
        %s165 = sand.u32 %s12, 1
        %s166 = sand.u32 %s12, 1
        %s167 = smul.addr %s166, 4
        %s168 = scalar_lea.vmem [#allocation5], %s167
        %s169 = smul.addr %s12, 4
        %s170 = scalar_lea.vmem %s2, %s169
        // Predicated region
        $region77: #{custom-call.22} parent=15 // pred_check
          _
        $region78: #{custom-call.22} parent=15 // pred_check_branch
          %172 = sbr.rel (0) target = $region80
        $region79: #{custom-call.22} parent=15 // pred_region
          // Predicated region
          $region81: #{custom-call.22} parent=79 // pred_check
            _
          $region82: #{custom-call.22} parent=79 // pred_check_branch
            %174 = sbr.rel target = $region84
          $region83: #{custom-call.22} parent=79 // pred_region
            // Predicated region
            $region96: #{custom-call.22} parent=83 // pred_check
              _
            $region97: #{custom-call.22} parent=83 // pred_check_branch
              %190 = sbr.rel (0) target = $region99
            $region98: #{custom-call.22} parent=83 // pred_region
              %s192 = ssub.s32 16, 1
              loop: start=0, step=1, limit=1
              $region100: #{custom-call.22} parent=98 // loop_pre_header
                _
              $region101: #{custom-call.22} parent=98 // loop_header
                %s194 = sphi 0, %s198
                %p195 = scmp.ge.s32.totalorder %s194, 1
                %s199 = sphi %s170, %s170
                %s200 = sphi %s168, %s168
              $region102: #{custom-call.22} parent=98 // loop_header_branch
                %197 = sbr.rel (%p195) target = $region106
              $region103: #{custom-call.22} parent=98 // loop_body
                %v201 = vld [vmem:[%s199] sm:%s192]
                %202 = vst [vmem:[%s200] sm:%s192] %v201
              $region104: #{custom-call.22} parent=98 // loop_footer
                %s198 = sadd.s32 1, %s194
              $region105: #{custom-call.22} parent=98 // loop_footer_branch
                %193 = sbr.rel target = $region101
              $region106: #{custom-call.22} parent=98 // loop_exit
                _
            $region99: #{custom-call.22} parent=83 // pred_fallthru
              _
          $region84: #{custom-call.22} parent=79 // pred_fallthru
            _
          // Predicated region
          $region85: #{custom-call.22} parent=79 // pred_check
            _
          $region86: #{custom-call.22} parent=79 // pred_check_branch
            %176 = sbr.rel (0) target = $region88
          $region87: #{custom-call.22} parent=79 // pred_region
            %s178 = ssub.s32 16, 1
            loop: start=0, step=1, limit=1
            $region89: #{custom-call.22} parent=87 // loop_pre_header
              _
            $region90: #{custom-call.22} parent=87 // loop_header
              %s180 = sphi 0, %s184
              %p181 = scmp.ge.s32.totalorder %s180, 1
              %s185 = sphi %s170, %s170
              %s186 = sphi %s168, %s168
            $region91: #{custom-call.22} parent=87 // loop_header_branch
              %183 = sbr.rel (%p181) target = $region95
            $region92: #{custom-call.22} parent=87 // loop_body
              %v187 = vld [vmem:[%s185] sm:%s178]
              %188 = vst [vmem:[%s186] sm:%s178] %v187
            $region93: #{custom-call.22} parent=87 // loop_footer
              %s184 = sadd.s32 1, %s180
            $region94: #{custom-call.22} parent=87 // loop_footer_branch
              %179 = sbr.rel target = $region90
            $region95: #{custom-call.22} parent=87 // loop_exit
              _
          $region88: #{custom-call.22} parent=79 // pred_fallthru
            _
        $region80: #{custom-call.22} parent=15 // pred_fallthru
          _
        %203 = vnop
        %s204 = sand.u32 %s12, 1
        %s205 = sand.u32 %s12, 1
        %s206 = smul.addr %s205, 4
        %s207 = scalar_lea.vmem [#allocation7], %s206
        %s208 = smul.addr %s12, 4
        %s209 = scalar_lea.vmem %s3, %s208
        // Predicated region
        $region107: #{custom-call.22} parent=15 // pred_check
          _
        $region108: #{custom-call.22} parent=15 // pred_check_branch
          %211 = sbr.rel (0) target = $region110
        $region109: #{custom-call.22} parent=15 // pred_region
          // Predicated region
          $region111: #{custom-call.22} parent=109 // pred_check
            _
          $region112: #{custom-call.22} parent=109 // pred_check_branch
            %213 = sbr.rel target = $region114
          $region113: #{custom-call.22} parent=109 // pred_region
            // Predicated region
            $region126: #{custom-call.22} parent=113 // pred_check
              _
            $region127: #{custom-call.22} parent=113 // pred_check_branch
              %229 = sbr.rel (0) target = $region129
            $region128: #{custom-call.22} parent=113 // pred_region
              %s231 = ssub.s32 16, 1
              loop: start=0, step=1, limit=1
              $region130: #{custom-call.22} parent=128 // loop_pre_header
                _
              $region131: #{custom-call.22} parent=128 // loop_header
                %s233 = sphi 0, %s237
                %p234 = scmp.ge.s32.totalorder %s233, 1
                %s238 = sphi %s209, %s209
                %s239 = sphi %s207, %s207
              $region132: #{custom-call.22} parent=128 // loop_header_branch
                %236 = sbr.rel (%p234) target = $region136
              $region133: #{custom-call.22} parent=128 // loop_body
                %v240 = vld [vmem:[%s238] sm:%s231]
                %241 = vst [vmem:[%s239] sm:%s231] %v240
              $region134: #{custom-call.22} parent=128 // loop_footer
                %s237 = sadd.s32 1, %s233
              $region135: #{custom-call.22} parent=128 // loop_footer_branch
                %232 = sbr.rel target = $region131
              $region136: #{custom-call.22} parent=128 // loop_exit
                _
            $region129: #{custom-call.22} parent=113 // pred_fallthru
              _
          $region114: #{custom-call.22} parent=109 // pred_fallthru
            _
          // Predicated region
          $region115: #{custom-call.22} parent=109 // pred_check
            _
          $region116: #{custom-call.22} parent=109 // pred_check_branch
            %215 = sbr.rel (0) target = $region118
          $region117: #{custom-call.22} parent=109 // pred_region
            %s217 = ssub.s32 16, 1
            loop: start=0, step=1, limit=1
            $region119: #{custom-call.22} parent=117 // loop_pre_header
              _
            $region120: #{custom-call.22} parent=117 // loop_header
              %s219 = sphi 0, %s223
              %p220 = scmp.ge.s32.totalorder %s219, 1
              %s224 = sphi %s209, %s209
              %s225 = sphi %s207, %s207
            $region121: #{custom-call.22} parent=117 // loop_header_branch
              %222 = sbr.rel (%p220) target = $region125
            $region122: #{custom-call.22} parent=117 // loop_body
              %v226 = vld [vmem:[%s224] sm:%s217]
              %227 = vst [vmem:[%s225] sm:%s217] %v226
            $region123: #{custom-call.22} parent=117 // loop_footer
              %s223 = sadd.s32 1, %s219
            $region124: #{custom-call.22} parent=117 // loop_footer_branch
              %218 = sbr.rel target = $region120
            $region125: #{custom-call.22} parent=117 // loop_exit
              _
          $region118: #{custom-call.22} parent=109 // pred_fallthru
            _
        $region110: #{custom-call.22} parent=15 // pred_fallthru
          _
        %242 = vnop
      $region16: #{custom-call.22} parent=5 // pred_fallthru
        _
      %p243 = scmp.le.s32.totalorder 1, %s12
      %p244 = scmp.lt.s32.totalorder %s12, 3
      %p245 = pnand %p243, %p244
      %p246 = pneg %p245
      // Predicated region
      $region137: #{custom-call.22} parent=5 // pred_check
        _
      $region138: #{custom-call.22} parent=5 // pred_check_branch
        %248 = sbr.rel (%p245) target = $region140
      $region139: #{custom-call.22} parent=5 // pred_region
        #allocation20 [shape = 'f32[4,4]{1,0}', space=vmem, size = 0x1000, scoped, tag = 'a top-left matrix']
        #allocation21 [shape = 'f32[4,4]{1,0}', space=vmem, size = 0x1000, scoped, tag = 'a top-right matrix']
        #allocation22 [shape = 'f32[4,4]{1,0}', space=vmem, size = 0x1000, scoped, tag = 'a bottom-left matrix']
        #allocation23 [shape = 'f32[4,4]{1,0}', space=vmem, size = 0x1000, scoped, tag = 'a bottom-right matrix']
        %s249 = ssub.s32 %s12, 1
        %s250 = sand.u32 %s17, 1
        %s251 = sand.u32 %s17, 1
        %s252 = smul.addr %s251, 4
        %s253 = scalar_lea.vmem [#allocation1], %s252
        %s254 = sand.u32 %s17, 1
        %s255 = sand.u32 %s17, 1
        %s256 = smul.addr %s255, 4
        %s257 = scalar_lea.vmem [#allocation3], %s256
        %s258 = sand.u32 %s17, 1
        %s259 = sand.u32 %s17, 1
        %s260 = smul.addr %s259, 4
        %s261 = scalar_lea.vmem [#allocation5], %s260
        %s262 = sand.u32 %s17, 1
        %s263 = sand.u32 %s17, 1
        %s264 = smul.addr %s263, 4
        %s265 = scalar_lea.vmem [#allocation7], %s264
        %s266 = sand.u32 %s17, 1
        %s267 = sand.u32 %s17, 1
        %s268 = smul.addr %s267, 4
        %s269 = scalar_lea.vmem [#allocation1], %s268
        %s270 = sand.u32 %s17, 1
        %s271 = sand.u32 %s17, 1
        %s272 = smul.addr %s271, 4
        %s273 = scalar_lea.vmem [#allocation3], %s272
        %s274 = sand.u32 %s17, 1
        %s275 = sand.u32 %s17, 1
        %s276 = smul.addr %s275, 4
        %s277 = scalar_lea.vmem [#allocation5], %s276
        %s278 = sand.u32 %s17, 1
        %s279 = sand.u32 %s17, 1
        %s280 = smul.addr %s279, 4
        %s281 = scalar_lea.vmem [#allocation7], %s280
        %p282 = pneg %p40
        %p283 = pneg %p37
        %s284 = sand.u32 %s27, 1
        %s285 = sand.u32 %s27, 1
        %s286 = smul.addr %s285, 2
        %s287 = scalar_lea.vmem [#allocation9], %s286
        %p288 = pneg %p68
        %p289 = pneg %p65
        %s290 = sand.u32 %s55, 1
        %s291 = sand.u32 %s55, 1
        %s292 = smul.addr %s291, 2
        %s293 = scalar_lea.vmem [#allocation11], %s292
        %s294 = sand.u32 %s17, 1
        %s295 = sand.u32 %s17, 1
        %s296 = smul.addr %s295, 4
        %s297 = scalar_lea.vmem [#allocation13], %s296
        %s298 = sand.u32 %s17, 1
        %s299 = sand.u32 %s17, 1
        %s300 = smul.addr %s299, 4
        %s301 = scalar_lea.vmem [#allocation15], %s300
        %s302 = sand.u32 %s17, 1
        %s303 = sand.u32 %s17, 1
        %s304 = smul.addr %s303, 4
        %s305 = scalar_lea.vmem [#allocation17], %s304
        %s306 = sand.u32 %s17, 1
        %s307 = sand.u32 %s17, 1
        %s308 = smul.addr %s307, 4
        %s309 = scalar_lea.vmem [#allocation19], %s308
        %s311 = ssub.s32 16, 1
        %v312 = vld [vmem:[%s269] sm:%s311]
        %313 = vst [vmem:[#allocation0] sm:%s311] %v312
        %s315 = ssub.s32 16, 1
        %v316 = vld [vmem:[%s273] sm:%s315]
        %317 = vst [vmem:[#allocation2] sm:%s315] %v316
        %s319 = ssub.s32 16, 1
        %v320 = vld [vmem:[%s277] sm:%s319]
        %321 = vst [vmem:[#allocation4] sm:%s319] %v320
        %s323 = ssub.s32 16, 1
        %v324 = vld [vmem:[%s281] sm:%s323]
        %325 = vst [vmem:[#allocation6] sm:%s323] %v324
        %s326 = sshrl.u32 %s17, 3
        %s327 = sshrl.u32 %s17, 3
        %s328 = smov [#allocation20]
        %v329 = vld [vmem:[#allocation0] sm:$0xff]
        %330 = vst [vmem:[%s328] sm:$0xff] %v329
        %s331 = smov [#allocation21]
        %v332 = vld [vmem:[#allocation2] sm:$0xff]
        %333 = vst [vmem:[%s331] sm:$0xff] %v332
        %s334 = smov [#allocation22]
        %v335 = vld [vmem:[#allocation4] sm:$0xff]
        %336 = vst [vmem:[%s334] sm:$0xff] %v335
        %s337 = smov [#allocation23]
        %v338 = vld [vmem:[#allocation6] sm:$0xff]
        %339 = vst [vmem:[%s337] sm:$0xff] %v338
        %340 = vst [vmem:[#allocation12] sm:$0xff] 0.0
        %341 = vst [vmem:[#allocation14] sm:$0xff] 0.0
        %342 = vst [vmem:[#allocation16] sm:$0xff] 0.0
        %343 = vst [vmem:[#allocation18] sm:$0xff] 0.0
        %s344 = smov [#allocation12]
        %v345 = vlaneseq
        %v346 = vand.u32 %v345, 127
        %v347 = vmov %v346
        %v348 = vlaneseq
        %v349 = vshrl.u32 %v348, 7
        %v350 = vmov %v349
        %v351 = vld [vmem:[%s344] sm:$0xf]
        %vm354 = vcmp.eq.s32.totalorder %v350, %v347
        %v355 = vsel %vm354, 1.0, %v351
        %356 = vst [vmem:[%s344] sm:$0xf] %v355
        %s357 = smov [#allocation18]
        %v358 = vlaneseq
        %v359 = vand.u32 %v358, 127
        %v360 = vmov %v359
        %v361 = vlaneseq
        %v362 = vshrl.u32 %v361, 7
        %v363 = vmov %v362
        %v364 = vld [vmem:[%s357] sm:$0xf]
        %vm367 = vcmp.eq.s32.totalorder %v363, %v360
        %v368 = vsel %vm367, 1.0, %v364
        %369 = vst [vmem:[%s357] sm:$0xf] %v368
        // While loop
        $region141: #{custom-call.22} parent=139 // loop_pre_header
          _
        $region142: #{custom-call.22} parent=139 // loop_header
          %s371 = sphi 0, %s953
          %v372 = vlaneseq
          %v373 = vand.u32 %v372, 127
          %v374 = vmov %v373
          %v375 = vlaneseq
          %v376 = vshrl.u32 %v375, 7
          %v377 = vmov %v376
          %s378 = smov [#allocation20]
          %v379 = vlaneseq
          %v380 = vand.u32 %v379, 127
          %vm381 = vcmp.ge.s32.totalorder %v380, 0
          %vm382 = vcmp.lt.s32.totalorder %v380, 4
          %vm383 = vmand %vm381, %vm382
          %v384 = vld [vmem:[%s378] sm:$0xf]
          %v385 = vsel %vm383, %v384, 0.0
          %v386 = vmul.f32 %v385, %v385
          %vm389 = vcmp.eq.s32.totalorder %v377, %v374
          %v390 = vsel %vm389, 0.0, %v386
          %v391 = vlaneseq
          %v392 = vand.u32 %v391, 127
          %v393 = vmov %v392
          %v394 = vlaneseq
          %v395 = vshrl.u32 %v394, 7
          %v396 = vmov %v395
          %s397 = smov [#allocation21]
          %v398 = vlaneseq
          %v399 = vand.u32 %v398, 127
          %vm400 = vcmp.ge.s32.totalorder %v399, 0
          %vm401 = vcmp.lt.s32.totalorder %v399, 4
          %vm402 = vmand %vm400, %vm401
          %v403 = vld [vmem:[%s397] sm:$0xf]
          %v404 = vsel %vm402, %v403, 0.0
          %v405 = vmul.f32 %v404, %v404
          %v406 = vadd.f32 %v390, %v405
          %v407 = vadd.f32 %v386, %v405
          %v408 = vlaneseq
          %v409 = vand.u32 %v408, 127
          %v410 = vmov %v409
          %v411 = vlaneseq
          %v412 = vshrl.u32 %v411, 7
          %v413 = vmov %v412
          %s414 = smov [#allocation22]
          %v415 = vlaneseq
          %v416 = vand.u32 %v415, 127
          %vm417 = vcmp.ge.s32.totalorder %v416, 0
          %vm418 = vcmp.lt.s32.totalorder %v416, 4
          %vm419 = vmand %vm417, %vm418
          %v420 = vld [vmem:[%s414] sm:$0xf]
          %v421 = vsel %vm419, %v420, 0.0
          %v422 = vmul.f32 %v421, %v421
          %v423 = vadd.f32 %v406, %v422
          %v424 = vadd.f32 %v407, %v422
          %v425 = vlaneseq
          %v426 = vand.u32 %v425, 127
          %v427 = vmov %v426
          %v428 = vlaneseq
          %v429 = vshrl.u32 %v428, 7
          %v430 = vmov %v429
          %s431 = smov [#allocation23]
          %v432 = vlaneseq
          %v433 = vand.u32 %v432, 127
          %vm434 = vcmp.ge.s32.totalorder %v433, 0
          %vm435 = vcmp.lt.s32.totalorder %v433, 4
          %vm436 = vmand %vm434, %vm435
          %v437 = vld [vmem:[%s431] sm:$0xf]
          %v438 = vsel %vm436, %v437, 0.0
          %v439 = vmul.f32 %v438, %v438
          %vm442 = vcmp.eq.s32.totalorder %v430, %v427
          %v443 = vsel %vm442, 0.0, %v439
          %v444 = vadd.f32 %v423, %v443
          %v445 = vadd.f32 %v424, %v439
          %446 = vadd.xlane.f32.xlu0 %v445
          %v447 = vpop.xlane.xlu0 %446
          %v448 = vrot.slane %v447, 4
          %v449 = vadd.f32 %v447, %v448
          %v450 = vrot.slane %v449, 2
          %v451 = vadd.f32 %v449, %v450
          %v452 = vrot.slane %v451, 1
          %v453 = vadd.f32 %v451, %v452
          %454 = vadd.xlane.f32.xlu0 %v444
          %v455 = vpop.xlane.xlu0 %454
          %v456 = vrot.slane %v455, 4
          %v457 = vadd.f32 %v455, %v456
          %v458 = vrot.slane %v457, 2
          %v459 = vadd.f32 %v457, %v458
          %v460 = vrot.slane %v459, 1
          %v461 = vadd.f32 %v459, %v460
          %s462 = vtos %v461
          %s463 = vtos %v453
          %s464 = smul.f32 1e-10, %s463
          %p465 = scmp.le.f32.partialorder %s462, %s464
          %p466 = scmp.ge.s32.totalorder %s371, 15
          %p467 = por %p465, %p466
        $region143: #{custom-call.22} parent=139 // loop_header_branch
          %955 = sbr.rel (%p467) target = $region147
        $region144: #{custom-call.22} parent=139 // loop_body
          loop: start=0, step=1, limit=7
          $region148: #{custom-call.22} parent=144 // loop_pre_header
            _
          $region149: #{custom-call.22} parent=144 // loop_header
            %s469 = sphi 0, %s473
            %p470 = scmp.ge.s32.totalorder %s469, 7
          $region150: #{custom-call.22} parent=144 // loop_header_branch
            %472 = sbr.rel (%p470) target = $region154
          $region151: #{custom-call.22} parent=144 // loop_body
            #allocation24 [shape = 'f32[1024]{0}', space=vmem, size = 0x1000, scoped, tag = 'a_tl_diag vmem']
            #allocation25 [shape = 'f32[1024]{0}', space=vmem, size = 0x1000, scoped, tag = 'a_tr_diag vmem']
            #allocation26 [shape = 'f32[1024]{0}', space=vmem, size = 0x1000, scoped, tag = 'a_br_diag vmem']
            #allocation27 [shape = 'f32[1024]{0}', space=vmem, size = 0x1000, scoped, tag = 'rt1 vmem']
            #allocation28 [shape = 'f32[1024]{0}', space=vmem, size = 0x1000, scoped, tag = 'rt2 vmem']
            #allocation29 [shape = 'f32[1024]{0}', space=vmem, size = 0x1000, scoped, tag = 'c vmem']
            #allocation30 [shape = 'f32[1024]{0}', space=vmem, size = 0x1000, scoped, tag = 's vmem']
            #allocation31 [shape = 'f32[4096]{0}', space=vmem, size = 0x4000, scoped, tag = 'c broadcast']
            #allocation32 [shape = 'f32[4096]{0}', space=vmem, size = 0x4000, scoped, tag = 's broadcast']
            %s474 = smov [#allocation20]
            %s475 = smov [#allocation24]
            %v476 = vlaneseq
            %v477 = vand.u32 %v476, 127
            %v478 = vmov %v477
            %v479 = vlaneseq
            %v480 = vshrl.u32 %v479, 7
            %v481 = vmov %v480
            %v482 = vld [vmem:[%s474] sm:$0xf]
            %vm485 = vcmp.eq.s32.totalorder %v481, %v478
            %v486 = vsel %vm485, %v482, 0.0
            %v487 = vrot.slane %v486, 4
            %v488 = vadd.f32 %v486, %v487
            %v489 = vrot.slane %v488, 2
            %v490 = vadd.f32 %v488, %v489
            %v491 = vrot.slane %v490, 1
            %v492 = vadd.f32 %v490, %v491
            %493 = vst [vmem:[%s475] sm:$0x1] %v492
            %s494 = smov [#allocation21]
            %s495 = smov [#allocation25]
            %v496 = vlaneseq
            %v497 = vand.u32 %v496, 127
            %v498 = vmov %v497
            %v499 = vlaneseq
            %v500 = vshrl.u32 %v499, 7
            %v501 = vmov %v500
            %v502 = vld [vmem:[%s494] sm:$0xf]
            %vm505 = vcmp.eq.s32.totalorder %v501, %v498
            %v506 = vsel %vm505, %v502, 0.0
            %v507 = vrot.slane %v506, 4
            %v508 = vadd.f32 %v506, %v507
            %v509 = vrot.slane %v508, 2
            %v510 = vadd.f32 %v508, %v509
            %v511 = vrot.slane %v510, 1
            %v512 = vadd.f32 %v510, %v511
            %513 = vst [vmem:[%s495] sm:$0x1] %v512
            %s514 = smov [#allocation23]
            %s515 = smov [#allocation26]
            %v516 = vlaneseq
            %v517 = vand.u32 %v516, 127
            %v518 = vmov %v517
            %v519 = vlaneseq
            %v520 = vshrl.u32 %v519, 7
            %v521 = vmov %v520
            %v522 = vld [vmem:[%s514] sm:$0xf]
            %vm525 = vcmp.eq.s32.totalorder %v521, %v518
            %v526 = vsel %vm525, %v522, 0.0
            %v527 = vrot.slane %v526, 4
            %v528 = vadd.f32 %v526, %v527
            %v529 = vrot.slane %v528, 2
            %v530 = vadd.f32 %v528, %v529
            %v531 = vrot.slane %v530, 1
            %v532 = vadd.f32 %v530, %v531
            %533 = vst [vmem:[%s515] sm:$0x1] %v532
            %s534 = smov [#allocation29]
            %s535 = smov [#allocation30]
            %s536 = smov [#allocation24]
            %v537 = vld [vmem:[%s536] sm:$0xff]
            %s538 = smov [#allocation25]
            %v539 = vld [vmem:[%s538] sm:$0xff]
            %s540 = smov [#allocation26]
            %v541 = vld [vmem:[%s540] sm:$0xff]
            %v542 = vsub.f32 %v541, %v537
            %v543 = vmul.f32 2.0, %v539
            %v544 = vrcp.pop %v543
            %v545 = vmul.f32 %v543, %v544
            %v546 = vsub.f32 1.0, %v545
            %v547 = vmul.f32 %v544, %v546
            %v548 = vadd.f32 %v544, %v547
            %vm549 = vweird.f32 %v543
            %vm550 = vweird.f32 %v544
            %vm551 = vmor %vm549, %vm550
            %v552 = vsel %vm551, %v544, %v548
            %v553 = vand.u32 2147483647, %v543
            %vm554 = vcmp.eq.f32.partialorder %v553, 8.507059e+37
            %v555 = vand.u32 %v543, 2147483648
            %v556 = vor.u32 1.1754944e-38, %v555
            %v557 = vsel %vm554, %v556, %v552
            %v558 = vmul.f32 %v542, %v557
            %vm559 = vcmp.ge.f32.partialorder %v558, 0.0
            %v560 = vmul.f32 %v558, %v558
            %v561 = vadd.f32 1.0, %v560
            %v562 = vrsqrt.pop %v561
            %v563 = vmul.f32 %v562, %v561
            %v564 = vmul.f32 %v563, %v562
            %v565 = vmul.f32 0.5, %v564
            %v566 = vsub.f32 1.5, %v565
            %v567 = vmul.f32 %v562, %v566
            %v568 = vmul.f32 %v561, %v567
            %vm569 = vcmp.eq.f32.partialorder %v561, inf
            %v570 = vsel %vm569, %v561, %v568
            %vm571 = vcmp.eq.f32.partialorder %v561, 0.0
            %v572 = vand.u32 %v561, 2147483648
            %v573 = vsel %vm571, %v572, %v570
            %v574 = vxor.u32 %v573, 2147483648
            %v575 = vsel %vm559, %v573, %v574
            %v576 = vadd.f32 %v558, %v575
            %v577 = vrcp.pop %v576
            %v578 = vmul.f32 %v576, %v577
            %v579 = vsub.f32 1.0, %v578
            %v580 = vmul.f32 %v577, %v579
            %v581 = vadd.f32 %v577, %v580
            %vm582 = vweird.f32 %v576
            %vm583 = vweird.f32 %v577
            %vm584 = vmor %vm582, %vm583
            %v585 = vsel %vm584, %v577, %v581
            %v586 = vand.u32 2147483647, %v576
            %vm587 = vcmp.eq.f32.partialorder %v586, 8.507059e+37
            %v588 = vand.u32 %v576, 2147483648
            %v589 = vor.u32 1.1754944e-38, %v588
            %v590 = vsel %vm587, %v589, %v585
            %v591 = vand.u32 2147483647, %v537
            %v592 = vand.u32 2147483647, %v539
            %v593 = vand.u32 2147483647, %v541
            %v594 = vmin.f32 %v591, %v593
            %v595 = vmul.f32 1.1920929e-08, %v594
            %vm596 = vcmp.le.f32.partialorder %v592, %v595
            %v597 = vsel %vm596, 0.0, %v590
            %v598 = vmul.f32 %v597, %v597
            %v599 = vadd.f32 1.0, %v598
            %v600 = vrsqrt.pop %v599
            %v601 = vmul.f32 %v600, %v599
            %v602 = vmul.f32 %v601, %v600
            %v603 = vmul.f32 0.5, %v602
            %v604 = vsub.f32 1.5, %v603
            %v605 = vmul.f32 %v600, %v604
            %vm606 = vweird.f32 %v599
            %vm607 = vweird.f32 %v600
            %vm608 = vmor %vm606, %vm607
            %v609 = vsel %vm608, %v600, %v605
            %v610 = vmul.f32 %v597, %v609
            %v611 = vmul.f32 %v597, %v539
            %v612 = vsub.f32 %v537, %v611
            %v613 = vmul.f32 %v597, %v539
            %v614 = vadd.f32 %v541, %v613
            %s615 = smov [#allocation27]
            %616 = vst [vmem:[%s615] sm:$0xff] %v612
            %s617 = smov [#allocation28]
            %618 = vst [vmem:[%s617] sm:$0xff] %v614
            %s619 = smov %s534
            %620 = vst [vmem:[%s619] sm:$0xff] %v609
            %s621 = smov %s535
            %622 = vst [vmem:[%s621] sm:$0xff] %v610
            %s623 = smov [#allocation29]
            %v624 = vld [vmem:[%s623] ss:$0 sm:$0xff]
            %v625 = vlaneseq
            %v626 = vand.u32 %v625, 127
            %v627 = vmov %v626
            %v628 = vlaneseq
            %v629 = vshrl.u32 %v628, 7
            %v630 = vmov %v629
            %vm632 = vcmp.eq.s32.totalorder %v630, %v627
            %v633 = vsel %vm632, %v624, 0.0
            %634 = vadd.xlane.f32.xlu0 %v633
            %v635 = vpop.xlane.xlu0 %634
            %s636 = smov [#allocation31]
            %637 = vst [vmem:[%s636] sm:$0xff] %v635
            %s638 = smov [#allocation30]
            %v639 = vld [vmem:[%s638] ss:$0 sm:$0xff]
            %v640 = vlaneseq
            %v641 = vand.u32 %v640, 127
            %v642 = vmov %v641
            %v643 = vlaneseq
            %v644 = vshrl.u32 %v643, 7
            %v645 = vmov %v644
            %vm647 = vcmp.eq.s32.totalorder %v645, %v642
            %v648 = vsel %vm647, %v639, 0.0
            %649 = vadd.xlane.f32.xlu0 %v648
            %v650 = vpop.xlane.xlu0 %649
            %s651 = smov [#allocation32]
            %652 = vst [vmem:[%s651] sm:$0xff] %v650
            %s653 = smov [#allocation31]
            %v654 = vld [vmem:[%s653] sm:$0xff]
            %s655 = smov [#allocation32]
            %v656 = vld [vmem:[%s655] sm:$0xff]
            %s657 = smov [#allocation20]
            %s658 = smov [#allocation21]
            %s659 = smov [#allocation22]
            %s660 = smov [#allocation23]
            %v661 = vld [vmem:[%s657] sm:$0xf]
            %v662 = vld [vmem:[%s658] sm:$0xf]
            %v663 = vld [vmem:[%s659] sm:$0xf]
            %v664 = vld [vmem:[%s660] sm:$0xf]
            %v665 = vmul.f32 %v654, %v661
            %v666 = vmul.f32 %v656, %v663
            %v667 = vsub.f32 %v665, %v666
            %v668 = vmul.f32 %v654, %v662
            %v669 = vmul.f32 %v656, %v664
            %v670 = vsub.f32 %v668, %v669
            %v671 = vmul.f32 %v656, %v661
            %v672 = vmul.f32 %v654, %v663
            %v673 = vadd.f32 %v671, %v672
            %v674 = vmul.f32 %v656, %v662
            %v675 = vmul.f32 %v654, %v664
            %v676 = vadd.f32 %v674, %v675
            %677 = vst [vmem:[%s657] sm:$0xf] %v667
            %678 = vst [vmem:[%s658] sm:$0xf] %v670
            %679 = vst [vmem:[%s659] sm:$0xf] %v673
            %680 = vst [vmem:[%s660] sm:$0xf] %v676
            %s681 = smov [#allocation29]
            %v682 = vld [vmem:[%s681] ss:$0 sm:$0xff]
            %s683 = smov [#allocation30]
            %v684 = vld [vmem:[%s683] ss:$0 sm:$0xff]
            %s685 = smov [#allocation20]
            %s686 = smov [#allocation21]
            %s687 = smov [#allocation22]
            %s688 = smov [#allocation23]
            %v689 = vld [vmem:[%s685] sm:$0xf]
            %v690 = vld [vmem:[%s686] sm:$0xf]
            %v691 = vld [vmem:[%s687] sm:$0xf]
            %v692 = vld [vmem:[%s688] sm:$0xf]
            %v693 = vmul.f32 %v682, %v689
            %v694 = vmul.f32 %v684, %v690
            %v695 = vsub.f32 %v693, %v694
            %v696 = vmul.f32 %v684, %v689
            %v697 = vmul.f32 %v682, %v690
            %v698 = vadd.f32 %v696, %v697
            %v699 = vmul.f32 %v682, %v691
            %v700 = vmul.f32 %v684, %v692
            %v701 = vsub.f32 %v699, %v700
            %v702 = vmul.f32 %v684, %v691
            %v703 = vmul.f32 %v682, %v692
            %v704 = vadd.f32 %v702, %v703
            %705 = vst [vmem:[%s685] sm:$0xf] %v695
            %706 = vst [vmem:[%s686] sm:$0xf] %v698
            %707 = vst [vmem:[%s687] sm:$0xf] %v701
            %708 = vst [vmem:[%s688] sm:$0xf] %v704
            %s709 = smov [#allocation20]
            %s710 = smov [#allocation27]
            %v711 = vlaneseq
            %v712 = vand.u32 %v711, 127
            %v713 = vmov %v712
            %v714 = vlaneseq
            %v715 = vshrl.u32 %v714, 7
            %v716 = vmov %v715
            %v717 = vld [vmem:[%s710] ss:$0 sm:$0xff]
            %v718 = vld [vmem:[%s709] sm:$0xf]
            %vm721 = vcmp.eq.s32.totalorder %v716, %v713
            %v722 = vsel %vm721, %v717, %v718
            %723 = vst [vmem:[%s709] sm:$0xf] %v722
            %s724 = smov [#allocation21]
            %v725 = vlaneseq
            %v726 = vand.u32 %v725, 127
            %v727 = vmov %v726
            %v728 = vlaneseq
            %v729 = vshrl.u32 %v728, 7
            %v730 = vmov %v729
            %v731 = vld [vmem:[%s724] sm:$0xf]
            %vm734 = vcmp.eq.s32.totalorder %v730, %v727
            %v735 = vsel %vm734, 0.0, %v731
            %736 = vst [vmem:[%s724] sm:$0xf] %v735
            %s737 = smov [#allocation22]
            %v738 = vlaneseq
            %v739 = vand.u32 %v738, 127
            %v740 = vmov %v739
            %v741 = vlaneseq
            %v742 = vshrl.u32 %v741, 7
            %v743 = vmov %v742
            %v744 = vld [vmem:[%s737] sm:$0xf]
            %vm747 = vcmp.eq.s32.totalorder %v743, %v740
            %v748 = vsel %vm747, 0.0, %v744
            %749 = vst [vmem:[%s737] sm:$0xf] %v748
            %s750 = smov [#allocation23]
            %s751 = smov [#allocation28]
            %v752 = vlaneseq
            %v753 = vand.u32 %v752, 127
            %v754 = vmov %v753
            %v755 = vlaneseq
            %v756 = vshrl.u32 %v755, 7
            %v757 = vmov %v756
            %v758 = vld [vmem:[%s751] ss:$0 sm:$0xff]
            %v759 = vld [vmem:[%s750] sm:$0xf]
            %vm762 = vcmp.eq.s32.totalorder %v757, %v754
            %v763 = vsel %vm762, %v758, %v759
            %764 = vst [vmem:[%s750] sm:$0xf] %v763
            %s765 = smov [#allocation20]
            %s766 = smov [#allocation21]
            %v767 = vld [vmem:[%s766] sm:$0xf]
            %768 = vrot.lane.b32.xlu0 %v767, 1
            %v769 = vpop.permute.xlu0 %768
            %v770 = vld [vmem:[%s765] sm:$0xf]
            %v771 = vld [vmem:[%s765] sm:$0xf]
            %772 = vrot.lane.b32.xlu0 %v771, 1
            %v773 = vpop.permute.xlu0 %772
            %v774 = vlaneseq
            %v775 = vand.u32 %v774, 127
            %vm776 = vcmp.eq.s32.totalorder %v775, 0
            %v777 = vsel %vm776, %v771, %v773
            %v778 = vlaneseq
            %v779 = vand.u32 %v778, 127
            %vm780 = vcmp.eq.s32.totalorder %v779, 1
            %v781 = vsel %vm780, %v769, %v777
            %v782 = vlaneseq
            %v783 = vand.u32 %v782, 127
            %vm784 = vcmp.ge.s32.totalorder %v783, 0
            %vm785 = vcmp.lt.s32.totalorder %v783, 4
            %vm786 = vmand %vm784, %vm785
            %v787 = vsel %vm786, %v781, 0.0
            %v788 = vld [vmem:[%s766] sm:$0xf]
            %789 = vrot.lane.b32.xlu0 %v788, 127
            %v790 = vpop.permute.xlu0 %789
            %v791 = vlaneseq
            %v792 = vand.u32 %v791, 127
            %vm793 = vcmp.eq.s32.totalorder %v792, 3
            %v794 = vsel %vm793, %v770, %v790
            %795 = vst [vmem:[%s765] sm:$0xf] %v787
            %796 = vst [vmem:[%s766] sm:$0xf] %v794
            %s797 = smov [#allocation22]
            %s798 = smov [#allocation23]
            %v799 = vld [vmem:[%s798] sm:$0xf]
            %800 = vrot.lane.b32.xlu0 %v799, 1
            %v801 = vpop.permute.xlu0 %800
            %v802 = vld [vmem:[%s797] sm:$0xf]
            %v803 = vld [vmem:[%s797] sm:$0xf]
            %804 = vrot.lane.b32.xlu0 %v803, 1
            %v805 = vpop.permute.xlu0 %804
            %v806 = vlaneseq
            %v807 = vand.u32 %v806, 127
            %vm808 = vcmp.eq.s32.totalorder %v807, 0
            %v809 = vsel %vm808, %v803, %v805
            %v810 = vlaneseq
            %v811 = vand.u32 %v810, 127
            %vm812 = vcmp.eq.s32.totalorder %v811, 1
            %v813 = vsel %vm812, %v801, %v809
            %v814 = vlaneseq
            %v815 = vand.u32 %v814, 127
            %vm816 = vcmp.ge.s32.totalorder %v815, 0
            %vm817 = vcmp.lt.s32.totalorder %v815, 4
            %vm818 = vmand %vm816, %vm817
            %v819 = vsel %vm818, %v813, 0.0
            %v820 = vld [vmem:[%s798] sm:$0xf]
            %821 = vrot.lane.b32.xlu0 %v820, 127
            %v822 = vpop.permute.xlu0 %821
            %v823 = vlaneseq
            %v824 = vand.u32 %v823, 127
            %vm825 = vcmp.eq.s32.totalorder %v824, 3
            %v826 = vsel %vm825, %v802, %v822
            %827 = vst [vmem:[%s797] sm:$0xf] %v819
            %828 = vst [vmem:[%s798] sm:$0xf] %v826
            %s829 = smov [#allocation20]
            %s830 = smov [#allocation22]
            %v831 = vld [vmem:[%s829] ss:$0 sm:$0xff]
            %s833 = scalar_lea.vmem %s829, 4294967295
            %v834 = vld [vmem:[%s833] sm:$0xe]
            %v835 = vlaneseq
            %v836 = vshrl.u32 %v835, 7
            %vm837 = vcmp.eq.s32.totalorder %v836, 0
            %v838 = vsel %vm837, %v831, %v834
            %s839 = scalar_lea.vmem %s829, 3
            %v840 = vld [vmem:[%s839] ss:$0 sm:$0xff]
            %841 = vst [vmem:[%s829] sm:$0xf] %v838
            %v842 = vld [vmem:[%s830] ss:$0 sm:$0xff]
            %s843 = scalar_lea.vmem %s829, 1
            %844 = vst [vmem:[%s843] sm:$0x1] %v842
            %s845 = scalar_lea.vmem %s830, 1
            %v846 = vld [vmem:[%s845] sm:$0x7]
            %v847 = vlaneseq
            %v848 = vshrl.u32 %v847, 7
            %vm849 = vcmp.eq.s32.totalorder %v848, 3
            %v850 = vsel %vm849, %v840, %v846
            %v851 = vld [vmem:[%s830] ss:$0 sm:$0xff]
            %852 = vst [vmem:[%s830] sm:$0xf] %v850
            %s853 = smov [#allocation21]
            %s854 = smov [#allocation23]
            %v855 = vld [vmem:[%s853] ss:$0 sm:$0xff]
            %s857 = scalar_lea.vmem %s853, 4294967295
            %v858 = vld [vmem:[%s857] sm:$0xe]
            %v859 = vlaneseq
            %v860 = vshrl.u32 %v859, 7
            %vm861 = vcmp.eq.s32.totalorder %v860, 0
            %v862 = vsel %vm861, %v855, %v858
            %s863 = scalar_lea.vmem %s853, 3
            %v864 = vld [vmem:[%s863] ss:$0 sm:$0xff]
            %865 = vst [vmem:[%s853] sm:$0xf] %v862
            %v866 = vld [vmem:[%s854] ss:$0 sm:$0xff]
            %s867 = scalar_lea.vmem %s853, 1
            %868 = vst [vmem:[%s867] sm:$0x1] %v866
            %s869 = scalar_lea.vmem %s854, 1
            %v870 = vld [vmem:[%s869] sm:$0x7]
            %v871 = vlaneseq
            %v872 = vshrl.u32 %v871, 7
            %vm873 = vcmp.eq.s32.totalorder %v872, 3
            %v874 = vsel %vm873, %v864, %v870
            %v875 = vld [vmem:[%s854] ss:$0 sm:$0xff]
            %876 = vst [vmem:[%s854] sm:$0xf] %v874
            %s877 = smov [#allocation31]
            %v878 = vld [vmem:[%s877] sm:$0xff]
            %s879 = smov [#allocation32]
            %v880 = vld [vmem:[%s879] sm:$0xff]
            %s881 = smov [#allocation12]
            %s882 = smov [#allocation14]
            %s883 = smov [#allocation16]
            %s884 = smov [#allocation18]
            %v885 = vld [vmem:[%s881] sm:$0xf]
            %v886 = vld [vmem:[%s882] sm:$0xf]
            %v887 = vld [vmem:[%s883] sm:$0xf]
            %v888 = vld [vmem:[%s884] sm:$0xf]
            %v889 = vmul.f32 %v878, %v885
            %v890 = vmul.f32 %v880, %v887
            %v891 = vsub.f32 %v889, %v890
            %v892 = vmul.f32 %v878, %v886
            %v893 = vmul.f32 %v880, %v888
            %v894 = vsub.f32 %v892, %v893
            %v895 = vmul.f32 %v880, %v885
            %v896 = vmul.f32 %v878, %v887
            %v897 = vadd.f32 %v895, %v896
            %v898 = vmul.f32 %v880, %v886
            %v899 = vmul.f32 %v878, %v888
            %v900 = vadd.f32 %v898, %v899
            %901 = vst [vmem:[%s881] sm:$0xf] %v891
            %902 = vst [vmem:[%s882] sm:$0xf] %v894
            %903 = vst [vmem:[%s883] sm:$0xf] %v897
            %904 = vst [vmem:[%s884] sm:$0xf] %v900
            %s905 = smov [#allocation12]
            %s906 = smov [#allocation16]
            %v907 = vld [vmem:[%s905] ss:$0 sm:$0xff]
            %s909 = scalar_lea.vmem %s905, 4294967295
            %v910 = vld [vmem:[%s909] sm:$0xe]
            %v911 = vlaneseq
            %v912 = vshrl.u32 %v911, 7
            %vm913 = vcmp.eq.s32.totalorder %v912, 0
            %v914 = vsel %vm913, %v907, %v910
            %s915 = scalar_lea.vmem %s905, 3
            %v916 = vld [vmem:[%s915] ss:$0 sm:$0xff]
            %917 = vst [vmem:[%s905] sm:$0xf] %v914
            %v918 = vld [vmem:[%s906] ss:$0 sm:$0xff]
            %s919 = scalar_lea.vmem %s905, 1
            %920 = vst [vmem:[%s919] sm:$0x1] %v918
            %s921 = scalar_lea.vmem %s906, 1
            %v922 = vld [vmem:[%s921] sm:$0x7]
            %v923 = vlaneseq
            %v924 = vshrl.u32 %v923, 7
            %vm925 = vcmp.eq.s32.totalorder %v924, 3
            %v926 = vsel %vm925, %v916, %v922
            %v927 = vld [vmem:[%s906] ss:$0 sm:$0xff]
            %928 = vst [vmem:[%s906] sm:$0xf] %v926
            %s929 = smov [#allocation14]
            %s930 = smov [#allocation18]
            %v931 = vld [vmem:[%s929] ss:$0 sm:$0xff]
            %s933 = scalar_lea.vmem %s929, 4294967295
            %v934 = vld [vmem:[%s933] sm:$0xe]
            %v935 = vlaneseq
            %v936 = vshrl.u32 %v935, 7
            %vm937 = vcmp.eq.s32.totalorder %v936, 0
            %v938 = vsel %vm937, %v931, %v934
            %s939 = scalar_lea.vmem %s929, 3
            %v940 = vld [vmem:[%s939] ss:$0 sm:$0xff]
            %941 = vst [vmem:[%s929] sm:$0xf] %v938
            %v942 = vld [vmem:[%s930] ss:$0 sm:$0xff]
            %s943 = scalar_lea.vmem %s929, 1
            %944 = vst [vmem:[%s943] sm:$0x1] %v942
            %s945 = scalar_lea.vmem %s930, 1
            %v946 = vld [vmem:[%s945] sm:$0x7]
            %v947 = vlaneseq
            %v948 = vshrl.u32 %v947, 7
            %vm949 = vcmp.eq.s32.totalorder %v948, 3
            %v950 = vsel %vm949, %v940, %v946
            %v951 = vld [vmem:[%s930] ss:$0 sm:$0xff]
            %952 = vst [vmem:[%s930] sm:$0xf] %v950
          $region152: #{custom-call.22} parent=144 // loop_footer
            %s473 = sadd.s32 1, %s469
          $region153: #{custom-call.22} parent=144 // loop_footer_branch
            %468 = sbr.rel target = $region149
          $region154: #{custom-call.22} parent=144 // loop_exit
            _
          %s953 = sadd.s32 %s371, 1
        $region145: #{custom-call.22} parent=139 // loop_footer
          _
        $region146: #{custom-call.22} parent=139 // loop_footer_branch
          %370 = sbr.rel target = $region142
        $region147: #{custom-call.22} parent=139 // loop_exit
          _
        %s956 = sand.u32 %s17, 7
        %s957 = scalar_lea.vmem [#allocation8], %s956
        %s958 = sand.u32 %s17, 7
        %s959 = scalar_lea.vmem [#allocation10], %s958
        %s960 = smov [#allocation20]
        %s961 = smov %s957
        %v962 = vlaneseq
        %v963 = vand.u32 %v962, 127
        %v964 = vmov %v963
        %v965 = vlaneseq
        %v966 = vshrl.u32 %v965, 7
        %v967 = vmov %v966
        %v968 = vld [vmem:[%s960] sm:$0xf]
        %vm971 = vcmp.eq.s32.totalorder %v967, %v964
        %v972 = vsel %vm971, %v968, 0.0
        %v973 = vrot.slane %v972, 4
        %v974 = vadd.f32 %v972, %v973
        %v975 = vrot.slane %v974, 2
        %v976 = vadd.f32 %v974, %v975
        %v977 = vrot.slane %v976, 1
        %v978 = vadd.f32 %v976, %v977
        %979 = vst [vmem:[%s961] sm:$0x1] %v978
        %s980 = smov [#allocation23]
        %s981 = smov %s959
        %v982 = vlaneseq
        %v983 = vand.u32 %v982, 127
        %v984 = vmov %v983
        %v985 = vlaneseq
        %v986 = vshrl.u32 %v985, 7
        %v987 = vmov %v986
        %v988 = vld [vmem:[%s980] sm:$0xf]
        %vm991 = vcmp.eq.s32.totalorder %v987, %v984
        %v992 = vsel %vm991, %v988, 0.0
        %v993 = vrot.slane %v992, 4
        %v994 = vadd.f32 %v992, %v993
        %v995 = vrot.slane %v994, 2
        %v996 = vadd.f32 %v994, %v995
        %v997 = vrot.slane %v996, 1
        %v998 = vadd.f32 %v996, %v997
        %999 = vst [vmem:[%s981] sm:$0x1] %v998
        %s1001 = ssub.s32 4, 1
        %v1002 = vld [vmem:[#allocation8] sm:%s1001]
        %s1004 = ssub.s32 4, 1
        %1005 = vst [vmem:[%s287] sm:%s1004] %v1002
        %s1007 = ssub.s32 4, 1
        %v1008 = vld [vmem:[#allocation10] sm:%s1007]
        %s1010 = ssub.s32 4, 1
        %1011 = vst [vmem:[%s293] sm:%s1010] %v1008
        %s1013 = ssub.s32 16, 1
        %v1014 = vld [vmem:[#allocation12] sm:%s1013]
        %s1016 = ssub.s32 16, 1
        %1017 = vst [vmem:[%s297] sm:%s1016] %v1014
        %s1019 = ssub.s32 16, 1
        %v1020 = vld [vmem:[#allocation14] sm:%s1019]
        %s1022 = ssub.s32 16, 1
        %1023 = vst [vmem:[%s301] sm:%s1022] %v1020
        %s1025 = ssub.s32 16, 1
        %v1026 = vld [vmem:[#allocation16] sm:%s1025]
        %s1028 = ssub.s32 16, 1
        %1029 = vst [vmem:[%s305] sm:%s1028] %v1026
        %s1031 = ssub.s32 16, 1
        %v1032 = vld [vmem:[#allocation18] sm:%s1031]
        %s1034 = ssub.s32 16, 1
        %1035 = vst [vmem:[%s309] sm:%s1034] %v1032
        %s1036 = sand.u32 %s27, 1
        %s1037 = sand.u32 %s27, 1
        %s1038 = smul.addr %s1037, 2
        %s1039 = scalar_lea.vmem [#allocation9], %s1038
        %s1040 = sand.u32 %s55, 1
        %s1041 = sand.u32 %s55, 1
        %s1042 = smul.addr %s1041, 2
        %s1043 = scalar_lea.vmem [#allocation11], %s1042
        %s1044 = sand.u32 %s17, 1
        %s1045 = sand.u32 %s17, 1
        %s1046 = smul.addr %s1045, 4
        %s1047 = scalar_lea.vmem [#allocation13], %s1046
        %s1048 = sand.u32 %s17, 1
        %s1049 = sand.u32 %s17, 1
        %s1050 = smul.addr %s1049, 4
        %s1051 = scalar_lea.vmem [#allocation15], %s1050
        %s1052 = sand.u32 %s17, 1
        %s1053 = sand.u32 %s17, 1
        %s1054 = smul.addr %s1053, 4
        %s1055 = scalar_lea.vmem [#allocation17], %s1054
        %s1056 = sand.u32 %s17, 1
        %s1057 = sand.u32 %s17, 1
        %s1058 = smul.addr %s1057, 4
        %s1059 = scalar_lea.vmem [#allocation19], %s1058
        // Predicated region
        $region155: #{custom-call.22} parent=139 // pred_check
          %p1060 = pneg %p37
        $region156: #{custom-call.22} parent=139 // pred_check_branch
          %1062 = sbr.rel (%p1060) target = $region158
        $region157: #{custom-call.22} parent=139 // pred_region
          %s1063 = sshrl.u32 %s17, 3
          %s1064 = smul.addr %s1063, 2
          %s1065 = scalar_lea.vmem %s4, %s1064
          // Predicated region
          $region159: #{custom-call.22} parent=157 // pred_check
            _
          $region160: #{custom-call.22} parent=157 // pred_check_branch
            %1067 = sbr.rel (0) target = $region162
          $region161: #{custom-call.22} parent=157 // pred_region
            // Predicated region
            $region163: #{custom-call.22} parent=161 // pred_check
              _
            $region164: #{custom-call.22} parent=161 // pred_check_branch
              %1069 = sbr.rel target = $region166
            $region165: #{custom-call.22} parent=161 // pred_region
              // Predicated region
              $region178: #{custom-call.22} parent=165 // pred_check
                _
              $region179: #{custom-call.22} parent=165 // pred_check_branch
                %1085 = sbr.rel (0) target = $region181
              $region180: #{custom-call.22} parent=165 // pred_region
                %s1087 = ssub.s32 4, 1
                loop: start=0, step=1, limit=1
                $region182: #{custom-call.22} parent=180 // loop_pre_header
                  _
                $region183: #{custom-call.22} parent=180 // loop_header
                  %s1089 = sphi 0, %s1093
                  %p1090 = scmp.ge.s32.totalorder %s1089, 1
                  %s1094 = sphi %s1039, %s1039
                  %s1095 = sphi %s1065, %s1065
                $region184: #{custom-call.22} parent=180 // loop_header_branch
                  %1092 = sbr.rel (%p1090) target = $region188
                $region185: #{custom-call.22} parent=180 // loop_body
                  %v1096 = vld [vmem:[%s1094] sm:%s1087]
                  %1097 = vst [vmem:[%s1095] sm:%s1087] %v1096
                $region186: #{custom-call.22} parent=180 // loop_footer
                  %s1093 = sadd.s32 1, %s1089
                $region187: #{custom-call.22} parent=180 // loop_footer_branch
                  %1088 = sbr.rel target = $region183
                $region188: #{custom-call.22} parent=180 // loop_exit
                  _
              $region181: #{custom-call.22} parent=165 // pred_fallthru
                _
            $region166: #{custom-call.22} parent=161 // pred_fallthru
              _
            // Predicated region
            $region167: #{custom-call.22} parent=161 // pred_check
              _
            $region168: #{custom-call.22} parent=161 // pred_check_branch
              %1071 = sbr.rel (0) target = $region170
            $region169: #{custom-call.22} parent=161 // pred_region
              %s1073 = ssub.s32 4, 1
              loop: start=0, step=1, limit=1
              $region171: #{custom-call.22} parent=169 // loop_pre_header
                _
              $region172: #{custom-call.22} parent=169 // loop_header
                %s1075 = sphi 0, %s1079
                %p1076 = scmp.ge.s32.totalorder %s1075, 1
                %s1080 = sphi %s1039, %s1039
                %s1081 = sphi %s1065, %s1065
              $region173: #{custom-call.22} parent=169 // loop_header_branch
                %1078 = sbr.rel (%p1076) target = $region177
              $region174: #{custom-call.22} parent=169 // loop_body
                %v1082 = vld [vmem:[%s1080] sm:%s1073]
                %1083 = vst [vmem:[%s1081] sm:%s1073] %v1082
              $region175: #{custom-call.22} parent=169 // loop_footer
                %s1079 = sadd.s32 1, %s1075
              $region176: #{custom-call.22} parent=169 // loop_footer_branch
                %1074 = sbr.rel target = $region172
              $region177: #{custom-call.22} parent=169 // loop_exit
                _
            $region170: #{custom-call.22} parent=161 // pred_fallthru
              _
          $region162: #{custom-call.22} parent=157 // pred_fallthru
            _
          %1098 = vnop
        $region158: #{custom-call.22} parent=139 // pred_fallthru
          _
        // Predicated region
        $region189: #{custom-call.22} parent=139 // pred_check
          %p1099 = pneg %p65
        $region190: #{custom-call.22} parent=139 // pred_check_branch
          %1101 = sbr.rel (%p1099) target = $region192
        $region191: #{custom-call.22} parent=139 // pred_region
          %s1102 = sshrl.u32 %s17, 3
          %s1103 = smul.addr %s1102, 2
          %s1104 = scalar_lea.vmem %s5, %s1103
          // Predicated region
          $region193: #{custom-call.22} parent=191 // pred_check
            _
          $region194: #{custom-call.22} parent=191 // pred_check_branch
            %1106 = sbr.rel (0) target = $region196
          $region195: #{custom-call.22} parent=191 // pred_region
            // Predicated region
            $region197: #{custom-call.22} parent=195 // pred_check
              _
            $region198: #{custom-call.22} parent=195 // pred_check_branch
              %1108 = sbr.rel target = $region200
            $region199: #{custom-call.22} parent=195 // pred_region
              // Predicated region
              $region212: #{custom-call.22} parent=199 // pred_check
                _
              $region213: #{custom-call.22} parent=199 // pred_check_branch
                %1124 = sbr.rel (0) target = $region215
              $region214: #{custom-call.22} parent=199 // pred_region
                %s1126 = ssub.s32 4, 1
                loop: start=0, step=1, limit=1
                $region216: #{custom-call.22} parent=214 // loop_pre_header
                  _
                $region217: #{custom-call.22} parent=214 // loop_header
                  %s1128 = sphi 0, %s1132
                  %p1129 = scmp.ge.s32.totalorder %s1128, 1
                  %s1133 = sphi %s1043, %s1043
                  %s1134 = sphi %s1104, %s1104
                $region218: #{custom-call.22} parent=214 // loop_header_branch
                  %1131 = sbr.rel (%p1129) target = $region222
                $region219: #{custom-call.22} parent=214 // loop_body
                  %v1135 = vld [vmem:[%s1133] sm:%s1126]
                  %1136 = vst [vmem:[%s1134] sm:%s1126] %v1135
                $region220: #{custom-call.22} parent=214 // loop_footer
                  %s1132 = sadd.s32 1, %s1128
                $region221: #{custom-call.22} parent=214 // loop_footer_branch
                  %1127 = sbr.rel target = $region217
                $region222: #{custom-call.22} parent=214 // loop_exit
                  _
              $region215: #{custom-call.22} parent=199 // pred_fallthru
                _
            $region200: #{custom-call.22} parent=195 // pred_fallthru
              _
            // Predicated region
            $region201: #{custom-call.22} parent=195 // pred_check
              _
            $region202: #{custom-call.22} parent=195 // pred_check_branch
              %1110 = sbr.rel (0) target = $region204
            $region203: #{custom-call.22} parent=195 // pred_region
              %s1112 = ssub.s32 4, 1
              loop: start=0, step=1, limit=1
              $region205: #{custom-call.22} parent=203 // loop_pre_header
                _
              $region206: #{custom-call.22} parent=203 // loop_header
                %s1114 = sphi 0, %s1118
                %p1115 = scmp.ge.s32.totalorder %s1114, 1
                %s1119 = sphi %s1043, %s1043
                %s1120 = sphi %s1104, %s1104
              $region207: #{custom-call.22} parent=203 // loop_header_branch
                %1117 = sbr.rel (%p1115) target = $region211
              $region208: #{custom-call.22} parent=203 // loop_body
                %v1121 = vld [vmem:[%s1119] sm:%s1112]
                %1122 = vst [vmem:[%s1120] sm:%s1112] %v1121
              $region209: #{custom-call.22} parent=203 // loop_footer
                %s1118 = sadd.s32 1, %s1114
              $region210: #{custom-call.22} parent=203 // loop_footer_branch
                %1113 = sbr.rel target = $region206
              $region211: #{custom-call.22} parent=203 // loop_exit
                _
            $region204: #{custom-call.22} parent=195 // pred_fallthru
              _
          $region196: #{custom-call.22} parent=191 // pred_fallthru
            _
          %1137 = vnop
        $region192: #{custom-call.22} parent=139 // pred_fallthru
          _
        %s1138 = smul.addr %s17, 4
        %s1139 = scalar_lea.vmem %s6, %s1138
        // Predicated region
        $region223: #{custom-call.22} parent=139 // pred_check
          _
        $region224: #{custom-call.22} parent=139 // pred_check_branch
          %1141 = sbr.rel (0) target = $region226
        $region225: #{custom-call.22} parent=139 // pred_region
          // Predicated region
          $region227: #{custom-call.22} parent=225 // pred_check
            _
          $region228: #{custom-call.22} parent=225 // pred_check_branch
            %1143 = sbr.rel target = $region230
          $region229: #{custom-call.22} parent=225 // pred_region
            // Predicated region
            $region242: #{custom-call.22} parent=229 // pred_check
              _
            $region243: #{custom-call.22} parent=229 // pred_check_branch
              %1159 = sbr.rel (0) target = $region245
            $region244: #{custom-call.22} parent=229 // pred_region
              %s1161 = ssub.s32 16, 1
              loop: start=0, step=1, limit=1
              $region246: #{custom-call.22} parent=244 // loop_pre_header
                _
              $region247: #{custom-call.22} parent=244 // loop_header
                %s1163 = sphi 0, %s1167
                %p1164 = scmp.ge.s32.totalorder %s1163, 1
                %s1168 = sphi %s1047, %s1047
                %s1169 = sphi %s1139, %s1139
              $region248: #{custom-call.22} parent=244 // loop_header_branch
                %1166 = sbr.rel (%p1164) target = $region252
              $region249: #{custom-call.22} parent=244 // loop_body
                %v1170 = vld [vmem:[%s1168] sm:%s1161]
                %1171 = vst [vmem:[%s1169] sm:%s1161] %v1170
              $region250: #{custom-call.22} parent=244 // loop_footer
                %s1167 = sadd.s32 1, %s1163
              $region251: #{custom-call.22} parent=244 // loop_footer_branch
                %1162 = sbr.rel target = $region247
              $region252: #{custom-call.22} parent=244 // loop_exit
                _
            $region245: #{custom-call.22} parent=229 // pred_fallthru
              _
          $region230: #{custom-call.22} parent=225 // pred_fallthru
            _
          // Predicated region
          $region231: #{custom-call.22} parent=225 // pred_check
            _
          $region232: #{custom-call.22} parent=225 // pred_check_branch
            %1145 = sbr.rel (0) target = $region234
          $region233: #{custom-call.22} parent=225 // pred_region
            %s1147 = ssub.s32 16, 1
            loop: start=0, step=1, limit=1
            $region235: #{custom-call.22} parent=233 // loop_pre_header
              _
            $region236: #{custom-call.22} parent=233 // loop_header
              %s1149 = sphi 0, %s1153
              %p1150 = scmp.ge.s32.totalorder %s1149, 1
              %s1154 = sphi %s1047, %s1047
              %s1155 = sphi %s1139, %s1139
            $region237: #{custom-call.22} parent=233 // loop_header_branch
              %1152 = sbr.rel (%p1150) target = $region241
            $region238: #{custom-call.22} parent=233 // loop_body
              %v1156 = vld [vmem:[%s1154] sm:%s1147]
              %1157 = vst [vmem:[%s1155] sm:%s1147] %v1156
            $region239: #{custom-call.22} parent=233 // loop_footer
              %s1153 = sadd.s32 1, %s1149
            $region240: #{custom-call.22} parent=233 // loop_footer_branch
              %1148 = sbr.rel target = $region236
            $region241: #{custom-call.22} parent=233 // loop_exit
              _
          $region234: #{custom-call.22} parent=225 // pred_fallthru
            _
        $region226: #{custom-call.22} parent=139 // pred_fallthru
          _
        %1172 = vnop
        %s1173 = smul.addr %s17, 4
        %s1174 = scalar_lea.vmem %s7, %s1173
        // Predicated region
        $region253: #{custom-call.22} parent=139 // pred_check
          _
        $region254: #{custom-call.22} parent=139 // pred_check_branch
          %1176 = sbr.rel (0) target = $region256
        $region255: #{custom-call.22} parent=139 // pred_region
          // Predicated region
          $region257: #{custom-call.22} parent=255 // pred_check
            _
          $region258: #{custom-call.22} parent=255 // pred_check_branch
            %1178 = sbr.rel target = $region260
          $region259: #{custom-call.22} parent=255 // pred_region
            // Predicated region
            $region272: #{custom-call.22} parent=259 // pred_check
              _
            $region273: #{custom-call.22} parent=259 // pred_check_branch
              %1194 = sbr.rel (0) target = $region275
            $region274: #{custom-call.22} parent=259 // pred_region
              %s1196 = ssub.s32 16, 1
              loop: start=0, step=1, limit=1
              $region276: #{custom-call.22} parent=274 // loop_pre_header
                _
              $region277: #{custom-call.22} parent=274 // loop_header
                %s1198 = sphi 0, %s1202
                %p1199 = scmp.ge.s32.totalorder %s1198, 1
                %s1203 = sphi %s1051, %s1051
                %s1204 = sphi %s1174, %s1174
              $region278: #{custom-call.22} parent=274 // loop_header_branch
                %1201 = sbr.rel (%p1199) target = $region282
              $region279: #{custom-call.22} parent=274 // loop_body
                %v1205 = vld [vmem:[%s1203] sm:%s1196]
                %1206 = vst [vmem:[%s1204] sm:%s1196] %v1205
              $region280: #{custom-call.22} parent=274 // loop_footer
                %s1202 = sadd.s32 1, %s1198
              $region281: #{custom-call.22} parent=274 // loop_footer_branch
                %1197 = sbr.rel target = $region277
              $region282: #{custom-call.22} parent=274 // loop_exit
                _
            $region275: #{custom-call.22} parent=259 // pred_fallthru
              _
          $region260: #{custom-call.22} parent=255 // pred_fallthru
            _
          // Predicated region
          $region261: #{custom-call.22} parent=255 // pred_check
            _
          $region262: #{custom-call.22} parent=255 // pred_check_branch
            %1180 = sbr.rel (0) target = $region264
          $region263: #{custom-call.22} parent=255 // pred_region
            %s1182 = ssub.s32 16, 1
            loop: start=0, step=1, limit=1
            $region265: #{custom-call.22} parent=263 // loop_pre_header
              _
            $region266: #{custom-call.22} parent=263 // loop_header
              %s1184 = sphi 0, %s1188
              %p1185 = scmp.ge.s32.totalorder %s1184, 1
              %s1189 = sphi %s1051, %s1051
              %s1190 = sphi %s1174, %s1174
            $region267: #{custom-call.22} parent=263 // loop_header_branch
              %1187 = sbr.rel (%p1185) target = $region271
            $region268: #{custom-call.22} parent=263 // loop_body
              %v1191 = vld [vmem:[%s1189] sm:%s1182]
              %1192 = vst [vmem:[%s1190] sm:%s1182] %v1191
            $region269: #{custom-call.22} parent=263 // loop_footer
              %s1188 = sadd.s32 1, %s1184
            $region270: #{custom-call.22} parent=263 // loop_footer_branch
              %1183 = sbr.rel target = $region266
            $region271: #{custom-call.22} parent=263 // loop_exit
              _
          $region264: #{custom-call.22} parent=255 // pred_fallthru
            _
        $region256: #{custom-call.22} parent=139 // pred_fallthru
          _
        %1207 = vnop
        %s1208 = smul.addr %s17, 4
        %s1209 = scalar_lea.vmem %s8, %s1208
        // Predicated region
        $region283: #{custom-call.22} parent=139 // pred_check
          _
        $region284: #{custom-call.22} parent=139 // pred_check_branch
          %1211 = sbr.rel (0) target = $region286
        $region285: #{custom-call.22} parent=139 // pred_region
          // Predicated region
          $region287: #{custom-call.22} parent=285 // pred_check
            _
          $region288: #{custom-call.22} parent=285 // pred_check_branch
            %1213 = sbr.rel target = $region290
          $region289: #{custom-call.22} parent=285 // pred_region
            // Predicated region
            $region302: #{custom-call.22} parent=289 // pred_check
              _
            $region303: #{custom-call.22} parent=289 // pred_check_branch
              %1229 = sbr.rel (0) target = $region305
            $region304: #{custom-call.22} parent=289 // pred_region
              %s1231 = ssub.s32 16, 1
              loop: start=0, step=1, limit=1
              $region306: #{custom-call.22} parent=304 // loop_pre_header
                _
              $region307: #{custom-call.22} parent=304 // loop_header
                %s1233 = sphi 0, %s1237
                %p1234 = scmp.ge.s32.totalorder %s1233, 1
                %s1238 = sphi %s1055, %s1055
                %s1239 = sphi %s1209, %s1209
              $region308: #{custom-call.22} parent=304 // loop_header_branch
                %1236 = sbr.rel (%p1234) target = $region312
              $region309: #{custom-call.22} parent=304 // loop_body
                %v1240 = vld [vmem:[%s1238] sm:%s1231]
                %1241 = vst [vmem:[%s1239] sm:%s1231] %v1240
              $region310: #{custom-call.22} parent=304 // loop_footer
                %s1237 = sadd.s32 1, %s1233
              $region311: #{custom-call.22} parent=304 // loop_footer_branch
                %1232 = sbr.rel target = $region307
              $region312: #{custom-call.22} parent=304 // loop_exit
                _
            $region305: #{custom-call.22} parent=289 // pred_fallthru
              _
          $region290: #{custom-call.22} parent=285 // pred_fallthru
            _
          // Predicated region
          $region291: #{custom-call.22} parent=285 // pred_check
            _
          $region292: #{custom-call.22} parent=285 // pred_check_branch
            %1215 = sbr.rel (0) target = $region294
          $region293: #{custom-call.22} parent=285 // pred_region
            %s1217 = ssub.s32 16, 1
            loop: start=0, step=1, limit=1
            $region295: #{custom-call.22} parent=293 // loop_pre_header
              _
            $region296: #{custom-call.22} parent=293 // loop_header
              %s1219 = sphi 0, %s1223
              %p1220 = scmp.ge.s32.totalorder %s1219, 1
              %s1224 = sphi %s1055, %s1055
              %s1225 = sphi %s1209, %s1209
            $region297: #{custom-call.22} parent=293 // loop_header_branch
              %1222 = sbr.rel (%p1220) target = $region301
            $region298: #{custom-call.22} parent=293 // loop_body
              %v1226 = vld [vmem:[%s1224] sm:%s1217]
              %1227 = vst [vmem:[%s1225] sm:%s1217] %v1226
            $region299: #{custom-call.22} parent=293 // loop_footer
              %s1223 = sadd.s32 1, %s1219
            $region300: #{custom-call.22} parent=293 // loop_footer_branch
              %1218 = sbr.rel target = $region296
            $region301: #{custom-call.22} parent=293 // loop_exit
              _
          $region294: #{custom-call.22} parent=285 // pred_fallthru
            _
        $region286: #{custom-call.22} parent=139 // pred_fallthru
          _
        %1242 = vnop
        %s1243 = smul.addr %s17, 4
        %s1244 = scalar_lea.vmem %s9, %s1243
        // Predicated region
        $region313: #{custom-call.22} parent=139 // pred_check
          _
        $region314: #{custom-call.22} parent=139 // pred_check_branch
          %1246 = sbr.rel (0) target = $region316
        $region315: #{custom-call.22} parent=139 // pred_region
          // Predicated region
          $region317: #{custom-call.22} parent=315 // pred_check
            _
          $region318: #{custom-call.22} parent=315 // pred_check_branch
            %1248 = sbr.rel target = $region320
          $region319: #{custom-call.22} parent=315 // pred_region
            // Predicated region
            $region332: #{custom-call.22} parent=319 // pred_check
              _
            $region333: #{custom-call.22} parent=319 // pred_check_branch
              %1264 = sbr.rel (0) target = $region335
            $region334: #{custom-call.22} parent=319 // pred_region
              %s1266 = ssub.s32 16, 1
              loop: start=0, step=1, limit=1
              $region336: #{custom-call.22} parent=334 // loop_pre_header
                _
              $region337: #{custom-call.22} parent=334 // loop_header
                %s1268 = sphi 0, %s1272
                %p1269 = scmp.ge.s32.totalorder %s1268, 1
                %s1273 = sphi %s1059, %s1059
                %s1274 = sphi %s1244, %s1244
              $region338: #{custom-call.22} parent=334 // loop_header_branch
                %1271 = sbr.rel (%p1269) target = $region342
              $region339: #{custom-call.22} parent=334 // loop_body
                %v1275 = vld [vmem:[%s1273] sm:%s1266]
                %1276 = vst [vmem:[%s1274] sm:%s1266] %v1275
              $region340: #{custom-call.22} parent=334 // loop_footer
                %s1272 = sadd.s32 1, %s1268
              $region341: #{custom-call.22} parent=334 // loop_footer_branch
                %1267 = sbr.rel target = $region337
              $region342: #{custom-call.22} parent=334 // loop_exit
                _
            $region335: #{custom-call.22} parent=319 // pred_fallthru
              _
          $region320: #{custom-call.22} parent=315 // pred_fallthru
            _
          // Predicated region
          $region321: #{custom-call.22} parent=315 // pred_check
            _
          $region322: #{custom-call.22} parent=315 // pred_check_branch
            %1250 = sbr.rel (0) target = $region324
          $region323: #{custom-call.22} parent=315 // pred_region
            %s1252 = ssub.s32 16, 1
            loop: start=0, step=1, limit=1
            $region325: #{custom-call.22} parent=323 // loop_pre_header
              _
            $region326: #{custom-call.22} parent=323 // loop_header
              %s1254 = sphi 0, %s1258
              %p1255 = scmp.ge.s32.totalorder %s1254, 1
              %s1259 = sphi %s1059, %s1059
              %s1260 = sphi %s1244, %s1244
            $region327: #{custom-call.22} parent=323 // loop_header_branch
              %1257 = sbr.rel (%p1255) target = $region331
            $region328: #{custom-call.22} parent=323 // loop_body
              %v1261 = vld [vmem:[%s1259] sm:%s1252]
              %1262 = vst [vmem:[%s1260] sm:%s1252] %v1261
            $region329: #{custom-call.22} parent=323 // loop_footer
              %s1258 = sadd.s32 1, %s1254
            $region330: #{custom-call.22} parent=323 // loop_footer_branch
              %1253 = sbr.rel target = $region326
            $region331: #{custom-call.22} parent=323 // loop_exit
              _
          $region324: #{custom-call.22} parent=315 // pred_fallthru
            _
        $region316: #{custom-call.22} parent=139 // pred_fallthru
          _
        %1277 = vnop
      $region140: #{custom-call.22} parent=5 // pred_fallthru
        _
      %p1278 = scmp.le.s32.totalorder 2, %s12
      // Predicated region
      $region343: #{custom-call.22} parent=5 // pred_check
        %p1279 = pneg %p1278
      $region344: #{custom-call.22} parent=5 // pred_check_branch
        %1281 = sbr.rel (%p1279) target = $region346
      $region345: #{custom-call.22} parent=5 // pred_region
        %s1282 = ssub.s32 %s12, 2
        // Predicated region
        $region347: #{custom-call.22} parent=345 // pred_check
          %p1283 = pneg %p43
        $region348: #{custom-call.22} parent=345 // pred_check_branch
          %1285 = sbr.rel (%p1283) target = $region350
        $region349: #{custom-call.22} parent=345 // pred_region
          %s1286 = sand.u32 %s28, 1
          %s1287 = sand.u32 %s28, 1
          %s1288 = smul.addr %s1287, 2
          %s1289 = scalar_lea.vmem [#allocation9], %s1288
        $region350: #{custom-call.22} parent=345 // pred_fallthru
          _
        // Predicated region
        $region351: #{custom-call.22} parent=345 // pred_check
          %p1290 = pneg %p71
        $region352: #{custom-call.22} parent=345 // pred_check_branch
          %1292 = sbr.rel (%p1290) target = $region354
        $region353: #{custom-call.22} parent=345 // pred_region
          %s1293 = sand.u32 %s56, 1
          %s1294 = sand.u32 %s56, 1
          %s1295 = smul.addr %s1294, 2
          %s1296 = scalar_lea.vmem [#allocation11], %s1295
        $region354: #{custom-call.22} parent=345 // pred_fallthru
          _
        %s1297 = sand.u32 %s18, 1
        %s1298 = sand.u32 %s18, 1
        %s1299 = smul.addr %s1298, 4
        %s1300 = scalar_lea.vmem [#allocation13], %s1299
        %s1301 = sand.u32 %s18, 1
        %s1302 = sand.u32 %s18, 1
        %s1303 = smul.addr %s1302, 4
        %s1304 = scalar_lea.vmem [#allocation15], %s1303
        %s1305 = sand.u32 %s18, 1
        %s1306 = sand.u32 %s18, 1
        %s1307 = smul.addr %s1306, 4
        %s1308 = scalar_lea.vmem [#allocation17], %s1307
        %s1309 = sand.u32 %s18, 1
        %s1310 = sand.u32 %s18, 1
        %s1311 = smul.addr %s1310, 4
        %s1312 = scalar_lea.vmem [#allocation19], %s1311
      $region346: #{custom-call.22} parent=5 // pred_fallthru
        _
    $region6: #{custom-call.22} parent=1 // loop_footer
      %s16 = sadd.s32 1, %s12
    $region7: #{custom-call.22} parent=1 // loop_footer_branch
      %11 = sbr.rel target = $region3
    $region8: #{custom-call.22} parent=1 // loop_exit
      _

// kernel: custom-call.16
$region0: #{custom-call.16}
  %s0 = inlined_call_operand.vmem [shape: f32[2,8,8], index: 0, kind: input, shape index: {}]
  %s1 = inlined_call_operand.vmem [shape: f32[2,8,8], index: 1, kind: output, shape index: {0}]
  %s2 = inlined_call_operand.vmem [shape: f32[2,8], index: 2, kind: output, shape index: {1}]
  %3 = xla_tuple %s1, %s2
  $region1: #{custom-call.16} parent=0
    #allocation0 [shape = 'u8[8192]{0}', space=vmem, size = 0x2000, scoped, tag = 'operand span for operand 0']
    #allocation1 [shape = 'u8[8192]{0}', space=vmem, size = 0x2000, scoped, tag = 'operand span for operand 1']
    #allocation2 [shape = 'u8[4096]{0}', space=vmem, size = 0x1000, scoped, tag = 'operand span for operand 2']
    #allocation3 [shape = 'u8[2048]{0}', space=vmem, size = 0x800, scoped, tag = 'packed  for operand 2']
    loop: start=0, step=1, limit=4
    $region2: #{custom-call.16} parent=1 // loop_pre_header
      _
    $region3: #{custom-call.16} parent=1 // loop_header
      %s5 = sphi 0, %s9
      %p6 = scmp.ge.s32.totalorder %s5, 4
      %s12 = sphi 0, %s31
      %s13 = sphi 0, %s27
      %s14 = sphi 0, %s23
      %s15 = sphi 0, %s12
      %s16 = sphi 0, %s13
      %s17 = sphi 0, %s14
      %s18 = sphi 0, %s15
      %s19 = sphi 0, %s16
      %s20 = sphi 0, %s17
      %s46 = sphi 0, %s48
      %s49 = sphi 0, %s46
      %s50 = sphi 0, %s49
      %s66 = sphi 0, %s50
    $region4: #{custom-call.16} parent=1 // loop_header_branch
      %8 = sbr.rel (%p6) target = $region8
    $region5: #{custom-call.16} parent=1 // loop_body
      %s10 = ssub.s32 %s5, 1
      %s11 = ssub.s32 %s5, 2
      %s21 = sadd.s32 1, %s14
      %p22 = scmp.ge.s32.totalorder %s21, 1
      %s23 = scalar_select %p22, 0, %s21
      %s24 = sadd.s32 1, %s13
      %s25 = scalar_select %p22, %s24, %s13
      %p26 = scmp.ge.s32.totalorder %s25, 1
      %s27 = scalar_select %p26, 0, %s25
      %s28 = sadd.s32 1, %s12
      %s29 = scalar_select %p26, %s28, %s12
      %p30 = scmp.ge.s32.totalorder %s29, 2
      %s31 = scalar_select %p30, 0, %s29
      %p32 = scmp.lt.s32.totalorder %s12, 0
      %s33 = ssub.s32 0, %s12
      %s34 = scalar_select %p32, %s33, %s12
      %s35 = sshrl.u32 %s34, 3
      %s36 = ssub.s32 0, %s35
      %s37 = scalar_select %p32, %s36, %s35
      %p38 = scmp.lt.s32.totalorder %s31, 0
      %s39 = ssub.s32 0, %s31
      %s40 = scalar_select %p38, %s39, %s31
      %s41 = sshrl.u32 %s40, 3
      %s42 = ssub.s32 0, %s41
      %s43 = scalar_select %p38, %s42, %s41
      %s44 = ssub.s32 %s37, %s43
      %p45 = scmp.eq.s32.totalorder %s44, 0
      %s47 = sadd.s32 %s46, 1
      %s48 = scalar_select %p45, %s46, %s47
      %p51 = pneg %p45
      %p52 = scmp.eq.s32.totalorder %s5, 1
      %p53 = por %p51, %p52
      %p54 = scmp.ne.s32.totalorder %s46, %s49
      %p55 = scmp.eq.s32.totalorder %s5, 0
      %p56 = por %p54, %p55
      %p57 = scmp.ne.s32.totalorder %s46, %s49
      %p58 = scmp.eq.s32.totalorder %s10, 1
      %p59 = por %p57, %p58
      %p60 = scmp.ne.s32.totalorder %s49, %s50
      %p61 = scmp.eq.s32.totalorder %s10, 0
      %p62 = por %p60, %p61
      %p63 = scmp.ne.s32.totalorder %s49, %s50
      %p64 = scmp.eq.s32.totalorder %s11, 1
      %p65 = por %p63, %p64
      %p67 = scmp.ne.s32.totalorder %s50, %s66
      %p68 = scmp.eq.s32.totalorder %s11, 0
      %p69 = por %p67, %p68
      %p70 = scmp.le.s32.totalorder 1, %s5
      %p71 = scmp.lt.s32.totalorder %s5, 3
      %p72 = pnand %p70, %p71
      %p73 = pneg %p72
      // Predicated region
      $region9: #{custom-call.16} parent=5 // pred_check
        _
      $region10: #{custom-call.16} parent=5 // pred_check_branch
        %75 = sbr.rel (%p72) target = $region12
      $region11: #{custom-call.16} parent=5 // pred_region
        %s76 = ssub.s32 %s5, 1
      $region12: #{custom-call.16} parent=5 // pred_fallthru
        _
      %p77 = scmp.lt.s32.totalorder %s5, 2
      // Predicated region
      $region13: #{custom-call.16} parent=5 // pred_check
        %p78 = pneg %p77
      $region14: #{custom-call.16} parent=5 // pred_check_branch
        %80 = sbr.rel (%p78) target = $region16
      $region15: #{custom-call.16} parent=5 // pred_region
        %s81 = sand.u32 %s5, 1
        %s82 = sand.u32 %s5, 1
        %s83 = smul.addr %s82, 8
        %s84 = scalar_lea.vmem [#allocation0], %s83
        %s85 = sadd.s32 %s14, %s13
        %s86 = sadd.s32 %s85, %s12
        %s87 = smul.addr %s86, 8
        %s88 = scalar_lea.vmem %s0, %s87
        // Predicated region
        $region17: #{custom-call.16} parent=15 // pred_check
          _
        $region18: #{custom-call.16} parent=15 // pred_check_branch
          %90 = sbr.rel (0) target = $region20
        $region19: #{custom-call.16} parent=15 // pred_region
          // Predicated region
          $region21: #{custom-call.16} parent=19 // pred_check
            _
          $region22: #{custom-call.16} parent=19 // pred_check_branch
            %92 = sbr.rel (0) target = $region24
          $region23: #{custom-call.16} parent=19 // pred_region
            // Predicated region
            $region36: #{custom-call.16} parent=23 // pred_check
              _
            $region37: #{custom-call.16} parent=23 // pred_check_branch
              %108 = sbr.rel (0) target = $region39
            $region38: #{custom-call.16} parent=23 // pred_region
              loop: start=0, step=1, limit=1
              $region40: #{custom-call.16} parent=38 // loop_pre_header
                _
              $region41: #{custom-call.16} parent=38 // loop_header
                %s110 = sphi 0, %s114
                %p111 = scmp.ge.s32.totalorder %s110, 1
                %s115 = sphi %s88, %s88
                %s116 = sphi %s84, %s84
              $region42: #{custom-call.16} parent=38 // loop_header_branch
                %113 = sbr.rel (%p111) target = $region46
              $region43: #{custom-call.16} parent=38 // loop_body
                %v117 = vld [vmem:[%s115] sm:$0xff]
                %118 = vst [vmem:[%s116] sm:$0xff] %v117
              $region44: #{custom-call.16} parent=38 // loop_footer
                %s114 = sadd.s32 1, %s110
              $region45: #{custom-call.16} parent=38 // loop_footer_branch
                %109 = sbr.rel target = $region41
              $region46: #{custom-call.16} parent=38 // loop_exit
                _
            $region39: #{custom-call.16} parent=23 // pred_fallthru
              _
            // Predicated region
            $region47: #{custom-call.16} parent=23 // pred_check
              _
            $region48: #{custom-call.16} parent=23 // pred_check_branch
              %120 = sbr.rel target = $region50
            $region49: #{custom-call.16} parent=23 // pred_region
              _
            $region50: #{custom-call.16} parent=23 // pred_fallthru
              _
          $region24: #{custom-call.16} parent=19 // pred_fallthru
            _
          // Predicated region
          $region25: #{custom-call.16} parent=19 // pred_check
            _
          $region26: #{custom-call.16} parent=19 // pred_check_branch
            %94 = sbr.rel target = $region28
          $region27: #{custom-call.16} parent=19 // pred_region
            %s96 = ssub.s32 256, 1
            loop: start=0, step=1, limit=1
            $region29: #{custom-call.16} parent=27 // loop_pre_header
              _
            $region30: #{custom-call.16} parent=27 // loop_header
              %s98 = sphi 0, %s102
              %p99 = scmp.ge.s32.totalorder %s98, 1
              %s103 = sphi %s88, %s88
              %s104 = sphi %s84, %s84
            $region31: #{custom-call.16} parent=27 // loop_header_branch
              %101 = sbr.rel (%p99) target = $region35
            $region32: #{custom-call.16} parent=27 // loop_body
              %v105 = vld [vmem:[%s103] sm:%s96]
              %106 = vst [vmem:[%s104] sm:%s96] %v105
            $region33: #{custom-call.16} parent=27 // loop_footer
              %s102 = sadd.s32 1, %s98
            $region34: #{custom-call.16} parent=27 // loop_footer_branch
              %97 = sbr.rel target = $region30
            $region35: #{custom-call.16} parent=27 // loop_exit
              _
          $region28: #{custom-call.16} parent=19 // pred_fallthru
            _
        $region20: #{custom-call.16} parent=15 // pred_fallthru
          _
        %121 = vnop
      $region16: #{custom-call.16} parent=5 // pred_fallthru
        _
      %p122 = scmp.le.s32.totalorder 1, %s5
      %p123 = scmp.lt.s32.totalorder %s5, 3
      %p124 = pnand %p122, %p123
      %p125 = pneg %p124
      // Predicated region
      $region51: #{custom-call.16} parent=5 // pred_check
        _
      $region52: #{custom-call.16} parent=5 // pred_check_branch
        %127 = sbr.rel (%p124) target = $region54
      $region53: #{custom-call.16} parent=5 // pred_region
        #allocation4 [shape = 'f32[8,128]{1,0}', space=vmem, size = 0x1000, scoped, tag = 'scratch for Householder reflectors']
        %s128 = ssub.s32 %s5, 1
        %s129 = sand.u32 %s10, 1
        %s130 = sand.u32 %s10, 1
        %s131 = smul.addr %s130, 8
        %s132 = scalar_lea.vmem [#allocation0], %s131
        %s133 = sand.u32 %s10, 1
        %s134 = sand.u32 %s10, 1
        %s135 = smul.addr %s134, 8
        %s136 = scalar_lea.vmem [#allocation0], %s135
        %s137 = sand.u32 %s10, 1
        %s138 = sand.u32 %s10, 1
        %s139 = smul.addr %s138, 8
        %s140 = scalar_lea.vmem [#allocation1], %s139
        %p141 = pneg %p62
        %p142 = pneg %p59
        %s143 = sand.u32 %s49, 1
        %s144 = sand.u32 %s49, 1
        %s145 = smul.addr %s144, 2
        %s146 = scalar_lea.vmem [#allocation3], %s145
        %p147 = scmp.lt.s32.totalorder %s15, 0
        %s148 = ssub.s32 0, %s15
        %s149 = scalar_select %p147, %s148, %s15
        %s150 = sshrl.u32 %s149, 3
        %s151 = ssub.s32 0, %s150
        %s152 = scalar_select %p147, %s151, %s150
        %s153 = sand.u32 %s15, 7
        %s154 = scalar_lea.vmem [#allocation2], %s153
        %v155 = vld [vmem:[%s132] sm:$0xff]
        %156 = vst [vmem:[%s140] sm:$0xff] %v155
        %157 = vst [vmem:[%s154] sm:$0x1] 0.0
        loop: start=0, step=1, limit=8
        $region55: #{custom-call.16} parent=53 // loop_pre_header
          _
        $region56: #{custom-call.16} parent=53 // loop_header
          %s159 = sphi 0, %s163
          %p160 = scmp.ge.s32.totalorder %s159, 8
        $region57: #{custom-call.16} parent=53 // loop_header_branch
          %162 = sbr.rel (%p160) target = $region61
        $region58: #{custom-call.16} parent=53 // loop_body
          %v164 = vld [vmem:[%s140] sm:$0xff]
          %v165 = vlaneseq
          %v166 = vshrl.u32 %v165, 7
          %v168 = vstv %s159
          %vm169 = vcmp.gt.s32.totalorder %v166, %v168
          %vm170 = vcmp.lt.s32.totalorder %v166, 8
          %vm171 = vmand %vm169, %vm170
          %v172 = vsel %vm171, %v164, 0.0
          %v173 = vmul.f32 %v172, %v172
          %v174 = vrot.slane %v173, 4
          %v175 = vadd.f32 %v173, %v174
          %v176 = vrot.slane %v175, 2
          %v177 = vadd.f32 %v175, %v176
          %v178 = vrot.slane %v177, 1
          %v179 = vadd.f32 %v177, %v178
          %v180 = vrsqrt.pop %v179
          %v181 = vmul.f32 %v180, %v179
          %v182 = vmul.f32 %v181, %v180
          %v183 = vmul.f32 0.5, %v182
          %v184 = vsub.f32 1.5, %v183
          %v185 = vmul.f32 %v180, %v184
          %v186 = vmul.f32 %v179, %v185
          %vm187 = vcmp.eq.f32.partialorder %v179, inf
          %v188 = vsel %vm187, %v179, %v186
          %vm189 = vcmp.eq.f32.partialorder %v179, 0.0
          %v190 = vand.u32 %v179, 2147483648
          %v191 = vsel %vm189, %v190, %v188
          %vm192 = vcmp.eq.f32.partialorder %v179, 0.0
          %s193 = sshrl.u32 %s159, 3
          %s194 = sand.u32 %s159, 7
          %s195 = smul.addr %s193, 8
          %s196 = sadd.s32 %s194, %s195
          %s197 = scalar_lea.vmem %s140, %s196 [#allocation1]
          %v198 = vld [vmem:[%s197] ss:$0 sm:$0xff]
          %v199 = vand.u32 2147483647, %v198
          %v200 = vmax.f32 %v199, 0.0
          %v201 = vand.u32 2147483647, %v191
          %v202 = vmax.f32 %v200, %v201
          %v203 = vrcp.pop %v202
          %v204 = vmul.f32 %v202, %v203
          %v205 = vsub.f32 1.0, %v204
          %v206 = vmul.f32 %v203, %v205
          %v207 = vadd.f32 %v203, %v206
          %vm208 = vweird.f32 %v202
          %vm209 = vweird.f32 %v203
          %vm210 = vmor %vm208, %vm209
          %v211 = vsel %vm210, %v203, %v207
          %v212 = vand.u32 2147483647, %v202
          %vm213 = vcmp.eq.f32.partialorder %v212, 8.507059e+37
          %v214 = vand.u32 %v202, 2147483648
          %v215 = vor.u32 1.1754944e-38, %v214
          %v216 = vsel %vm213, %v215, %v211
          %v217 = vmul.f32 %v199, %v216
          %v218 = vmul.f32 %v217, %v217
          %v219 = vrcp.pop %v202
          %v220 = vmul.f32 %v202, %v219
          %v221 = vsub.f32 1.0, %v220
          %v222 = vmul.f32 %v219, %v221
          %v223 = vadd.f32 %v219, %v222
          %vm224 = vweird.f32 %v202
          %vm225 = vweird.f32 %v219
          %vm226 = vmor %vm224, %vm225
          %v227 = vsel %vm226, %v219, %v223
          %v228 = vand.u32 2147483647, %v202
          %vm229 = vcmp.eq.f32.partialorder %v228, 8.507059e+37
          %v230 = vand.u32 %v202, 2147483648
          %v231 = vor.u32 1.1754944e-38, %v230
          %v232 = vsel %vm229, %v231, %v227
          %v233 = vmul.f32 0.0, %v232
          %v234 = vmul.f32 %v233, %v233
          %v235 = vadd.f32 %v218, %v234
          %v236 = vrcp.pop %v202
          %v237 = vmul.f32 %v202, %v236
          %v238 = vsub.f32 1.0, %v237
          %v239 = vmul.f32 %v236, %v238
          %v240 = vadd.f32 %v236, %v239
          %vm241 = vweird.f32 %v202
          %vm242 = vweird.f32 %v236
          %vm243 = vmor %vm241, %vm242
          %v244 = vsel %vm243, %v236, %v240
          %v245 = vand.u32 2147483647, %v202
          %vm246 = vcmp.eq.f32.partialorder %v245, 8.507059e+37
          %v247 = vand.u32 %v202, 2147483648
          %v248 = vor.u32 1.1754944e-38, %v247
          %v249 = vsel %vm246, %v248, %v244
          %v250 = vmul.f32 %v201, %v249
          %v251 = vmul.f32 %v250, %v250
          %v252 = vadd.f32 %v235, %v251
          %vm253 = vcmp.eq.f32.partialorder %v202, 0.0
          %v254 = vrsqrt.pop %v252
          %v255 = vmul.f32 %v254, %v252
          %v256 = vmul.f32 %v255, %v254
          %v257 = vmul.f32 0.5, %v256
          %v258 = vsub.f32 1.5, %v257
          %v259 = vmul.f32 %v254, %v258
          %v260 = vmul.f32 %v252, %v259
          %vm261 = vcmp.eq.f32.partialorder %v252, inf
          %v262 = vsel %vm261, %v252, %v260
          %vm263 = vcmp.eq.f32.partialorder %v252, 0.0
          %v264 = vand.u32 %v252, 2147483648
          %v265 = vsel %vm263, %v264, %v262
          %v266 = vmul.f32 %v202, %v265
          %v267 = vsel %vm253, 0.0, %v266
          %vm268 = vcmp.lt.f32.partialorder %v198, 0.0
          %v269 = vxor.u32 %v267, 2147483648
          %v270 = vsel %vm268, %v267, %v269
          %v271 = vsub.f32 %v270, %v198
          %v272 = vrcp.pop %v270
          %v273 = vmul.f32 %v270, %v272
          %v274 = vsub.f32 1.0, %v273
          %v275 = vmul.f32 %v272, %v274
          %v276 = vadd.f32 %v272, %v275
          %vm277 = vweird.f32 %v270
          %vm278 = vweird.f32 %v272
          %vm279 = vmor %vm277, %vm278
          %v280 = vsel %vm279, %v272, %v276
          %v281 = vand.u32 2147483647, %v270
          %vm282 = vcmp.eq.f32.partialorder %v281, 8.507059e+37
          %v283 = vand.u32 %v270, 2147483648
          %v284 = vor.u32 1.1754944e-38, %v283
          %v285 = vsel %vm282, %v284, %v280
          %v286 = vmul.f32 %v271, %v285
          %v287 = vsel %vm192, %v198, %v270
          %v288 = vsel %vm192, 0.0, %v286
          %v289 = vsub.f32 %v198, %v287
          %s290 = smov %s140
          %v291 = vlaneseq
          %v292 = vshrl.u32 %v291, 7
          %v293 = vmov %v292
          %v294 = vld [vmem:[%s290] sm:$0xff]
          %v296 = vstv %s159
          %vm297 = vcmp.gt.s32.totalorder %v293, %v296
          %vm298 = vcmp.lt.s32.totalorder %v293, 8
          %vm299 = vmand %vm297, %vm298
          %v300 = vsel %vm299, %v294, 0.0
          %v301 = vrcp.pop %v289
          %v302 = vmul.f32 %v289, %v301
          %v303 = vsub.f32 1.0, %v302
          %v304 = vmul.f32 %v301, %v303
          %v305 = vadd.f32 %v301, %v304
          %vm306 = vweird.f32 %v289
          %vm307 = vweird.f32 %v301
          %vm308 = vmor %vm306, %vm307
          %v309 = vsel %vm308, %v301, %v305
          %v310 = vand.u32 2147483647, %v289
          %vm311 = vcmp.eq.f32.partialorder %v310, 8.507059e+37
          %v312 = vand.u32 %v289, 2147483648
          %v313 = vor.u32 1.1754944e-38, %v312
          %v314 = vsel %vm311, %v313, %v309
          %v315 = vmul.f32 %v300, %v314
          %v316 = vsel %vm192, 0.0, %v315
          %v317 = vstv %s159
          %v318 = vlaneseq
          %v319 = vand.u32 %v318, 127
          %vm320 = vcmp.eq.s32.totalorder %v319, %v317
          %v321 = vsel %vm320, %v316, 0.0
          %322 = vadd.xlane.f32.xlu0 %v321
          %v323 = vpop.xlane.xlu0 %322
          %324 = vst [vmem:[#allocation4] sm:$0xff] %v323
          %s325 = scalar_lea.vmem [#allocation4], %s159
          %326 = vst [vmem:[%s325] sm:$0x1] 1.0
          %v327 = vstv %s159
          %v328 = vlaneseq
          %v329 = vand.u32 %v328, 127
          %vm330 = vcmp.eq.s32.totalorder %v329, %v327
          %v331 = vsel %vm330, %v288, 0.0
          %332 = vadd.xlane.f32.xlu0 %v331
          %v333 = vpop.xlane.xlu0 %332
          %v334 = vstv %s159
          %v335 = vlaneseq
          %v336 = vand.u32 %v335, 127
          %vm337 = vcmp.eq.s32.totalorder %v336, %v334
          %v338 = vld [vmem:[%s154] ss:$0 sm:$0xff]
          %v339 = vsel %vm337, %v333, %v338
          %340 = vst [vmem:[%s154] sm:$0x1] %v339
          %s341 = smov %s140
          %s342 = smov [#allocation4]
          %v343 = vlaneseq
          %v344 = vshrl.u32 %v343, 7
          %v345 = vmov %v344
          %v347 = vld [vmem:[%s342] sm:$0xff]
          %v348 = vld [vmem:[%s341] sm:$0xff]
          %v349 = vmul.f32 %v347, %v348
          %vm350 = vcmp.lt.s32.totalorder %v345, 8
          %v351 = vsel %vm350, %v349, 0.0
          %v352 = vrot.slane %v351, 4
          %v353 = vadd.f32 %v351, %v352
          %v354 = vrot.slane %v353, 2
          %v355 = vadd.f32 %v353, %v354
          %v356 = vrot.slane %v355, 1
          %v357 = vadd.f32 %v355, %v356
          %s358 = smov %s341
          %s359 = smov %s342
          %v360 = vlaneseq
          %v361 = vshrl.u32 %v360, 7
          %v362 = vmov %v361
          %v363 = vmul.f32 %v357, %v333
          %v365 = vlaneseq
          %v366 = vand.u32 %v365, 127
          %v367 = vld [vmem:[%s359] sm:$0xff]
          %v368 = vmul.f32 %v367, %v363
          %v369 = vld [vmem:[%s358] sm:$0xff]
          %v370 = vstv %s159
          %vm371 = vcmp.gt.s32.totalorder %v366, %v370
          %v372 = vsub.f32 %v369, %v368
          %v373 = vsel %vm371, %v372, %v369
          %v374 = vstv %s159
          %v375 = vlaneseq
          %v376 = vand.u32 %v375, 127
          %vm377 = vcmp.eq.s32.totalorder %v376, %v374
          %v378 = vstv %s159
          %vm379 = vcmp.ge.s32.totalorder %v362, %v378
          %vm380 = vmand %vm377, %vm379
          %v381 = vsel %vm380, %v367, %v373
          %382 = vst [vmem:[%s358] sm:$0xff] %v381
          %s383 = scalar_lea.vmem %s358, %s159
          %v384 = vld [vmem:[%s383] ss:$0 sm:$0xff]
          %v385 = vstv %s159
          %v386 = vlaneseq
          %v387 = vand.u32 %v386, 127
          %vm388 = vcmp.eq.s32.totalorder %v387, %v385
          %v389 = vsel %vm388, %v287, %v384
          %390 = vst [vmem:[%s383] sm:$0x1] %v389
        $region59: #{custom-call.16} parent=53 // loop_footer
          %s163 = sadd.s32 1, %s159
        $region60: #{custom-call.16} parent=53 // loop_footer_branch
          %158 = sbr.rel target = $region56
        $region61: #{custom-call.16} parent=53 // loop_exit
          _
        %s392 = ssub.s32 4, 1
        %v393 = vld [vmem:[#allocation2] sm:%s392]
        %s395 = ssub.s32 4, 1
        %396 = vst [vmem:[%s146] sm:%s395] %v393
        %s397 = sand.u32 %s10, 1
        %s398 = sand.u32 %s10, 1
        %s399 = smul.addr %s398, 8
        %s400 = scalar_lea.vmem [#allocation1], %s399
        %s401 = sand.u32 %s49, 1
        %s402 = sand.u32 %s49, 1
        %s403 = smul.addr %s402, 2
        %s404 = scalar_lea.vmem [#allocation3], %s403
        %s405 = sadd.s32 %s17, %s16
        %s406 = sadd.s32 %s405, %s15
        %s407 = smul.addr %s406, 8
        %s408 = scalar_lea.vmem %s1, %s407
        // Predicated region
        $region62: #{custom-call.16} parent=53 // pred_check
          _
        $region63: #{custom-call.16} parent=53 // pred_check_branch
          %410 = sbr.rel (0) target = $region65
        $region64: #{custom-call.16} parent=53 // pred_region
          // Predicated region
          $region66: #{custom-call.16} parent=64 // pred_check
            _
          $region67: #{custom-call.16} parent=64 // pred_check_branch
            %412 = sbr.rel (0) target = $region69
          $region68: #{custom-call.16} parent=64 // pred_region
            // Predicated region
            $region81: #{custom-call.16} parent=68 // pred_check
              _
            $region82: #{custom-call.16} parent=68 // pred_check_branch
              %428 = sbr.rel (0) target = $region84
            $region83: #{custom-call.16} parent=68 // pred_region
              loop: start=0, step=1, limit=1
              $region85: #{custom-call.16} parent=83 // loop_pre_header
                _
              $region86: #{custom-call.16} parent=83 // loop_header
                %s430 = sphi 0, %s434
                %p431 = scmp.ge.s32.totalorder %s430, 1
                %s435 = sphi %s400, %s400
                %s436 = sphi %s408, %s408
              $region87: #{custom-call.16} parent=83 // loop_header_branch
                %433 = sbr.rel (%p431) target = $region91
              $region88: #{custom-call.16} parent=83 // loop_body
                %v437 = vld [vmem:[%s435] sm:$0xff]
                %438 = vst [vmem:[%s436] sm:$0xff] %v437
              $region89: #{custom-call.16} parent=83 // loop_footer
                %s434 = sadd.s32 1, %s430
              $region90: #{custom-call.16} parent=83 // loop_footer_branch
                %429 = sbr.rel target = $region86
              $region91: #{custom-call.16} parent=83 // loop_exit
                _
            $region84: #{custom-call.16} parent=68 // pred_fallthru
              _
            // Predicated region
            $region92: #{custom-call.16} parent=68 // pred_check
              _
            $region93: #{custom-call.16} parent=68 // pred_check_branch
              %440 = sbr.rel target = $region95
            $region94: #{custom-call.16} parent=68 // pred_region
              _
            $region95: #{custom-call.16} parent=68 // pred_fallthru
              _
          $region69: #{custom-call.16} parent=64 // pred_fallthru
            _
          // Predicated region
          $region70: #{custom-call.16} parent=64 // pred_check
            _
          $region71: #{custom-call.16} parent=64 // pred_check_branch
            %414 = sbr.rel target = $region73
          $region72: #{custom-call.16} parent=64 // pred_region
            %s416 = ssub.s32 256, 1
            loop: start=0, step=1, limit=1
            $region74: #{custom-call.16} parent=72 // loop_pre_header
              _
            $region75: #{custom-call.16} parent=72 // loop_header
              %s418 = sphi 0, %s422
              %p419 = scmp.ge.s32.totalorder %s418, 1
              %s423 = sphi %s400, %s400
              %s424 = sphi %s408, %s408
            $region76: #{custom-call.16} parent=72 // loop_header_branch
              %421 = sbr.rel (%p419) target = $region80
            $region77: #{custom-call.16} parent=72 // loop_body
              %v425 = vld [vmem:[%s423] sm:%s416]
              %426 = vst [vmem:[%s424] sm:%s416] %v425
            $region78: #{custom-call.16} parent=72 // loop_footer
              %s422 = sadd.s32 1, %s418
            $region79: #{custom-call.16} parent=72 // loop_footer_branch
              %417 = sbr.rel target = $region75
            $region80: #{custom-call.16} parent=72 // loop_exit
              _
          $region73: #{custom-call.16} parent=64 // pred_fallthru
            _
        $region65: #{custom-call.16} parent=53 // pred_fallthru
          _
        %441 = vnop
        // Predicated region
        $region96: #{custom-call.16} parent=53 // pred_check
          %p442 = pneg %p59
        $region97: #{custom-call.16} parent=53 // pred_check_branch
          %444 = sbr.rel (%p442) target = $region99
        $region98: #{custom-call.16} parent=53 // pred_region
          %p445 = scmp.lt.s32.totalorder %s15, 0
          %s446 = ssub.s32 0, %s15
          %s447 = scalar_select %p445, %s446, %s15
          %s448 = sshrl.u32 %s447, 3
          %s449 = ssub.s32 0, %s448
          %s450 = scalar_select %p445, %s449, %s448
          %s451 = smul.addr %s450, 2
          %s452 = scalar_lea.vmem %s2, %s451
          // Predicated region
          $region100: #{custom-call.16} parent=98 // pred_check
            _
          $region101: #{custom-call.16} parent=98 // pred_check_branch
            %454 = sbr.rel (0) target = $region103
          $region102: #{custom-call.16} parent=98 // pred_region
            // Predicated region
            $region104: #{custom-call.16} parent=102 // pred_check
              _
            $region105: #{custom-call.16} parent=102 // pred_check_branch
              %456 = sbr.rel target = $region107
            $region106: #{custom-call.16} parent=102 // pred_region
              // Predicated region
              $region119: #{custom-call.16} parent=106 // pred_check
                _
              $region120: #{custom-call.16} parent=106 // pred_check_branch
                %472 = sbr.rel (0) target = $region122
              $region121: #{custom-call.16} parent=106 // pred_region
                %s474 = ssub.s32 4, 1
                loop: start=0, step=1, limit=1
                $region123: #{custom-call.16} parent=121 // loop_pre_header
                  _
                $region124: #{custom-call.16} parent=121 // loop_header
                  %s476 = sphi 0, %s480
                  %p477 = scmp.ge.s32.totalorder %s476, 1
                  %s481 = sphi %s404, %s404
                  %s482 = sphi %s452, %s452
                $region125: #{custom-call.16} parent=121 // loop_header_branch
                  %479 = sbr.rel (%p477) target = $region129
                $region126: #{custom-call.16} parent=121 // loop_body
                  %v483 = vld [vmem:[%s481] sm:%s474]
                  %484 = vst [vmem:[%s482] sm:%s474] %v483
                $region127: #{custom-call.16} parent=121 // loop_footer
                  %s480 = sadd.s32 1, %s476
                $region128: #{custom-call.16} parent=121 // loop_footer_branch
                  %475 = sbr.rel target = $region124
                $region129: #{custom-call.16} parent=121 // loop_exit
                  _
              $region122: #{custom-call.16} parent=106 // pred_fallthru
                _
            $region107: #{custom-call.16} parent=102 // pred_fallthru
              _
            // Predicated region
            $region108: #{custom-call.16} parent=102 // pred_check
              _
            $region109: #{custom-call.16} parent=102 // pred_check_branch
              %458 = sbr.rel (0) target = $region111
            $region110: #{custom-call.16} parent=102 // pred_region
              %s460 = ssub.s32 4, 1
              loop: start=0, step=1, limit=1
              $region112: #{custom-call.16} parent=110 // loop_pre_header
                _
              $region113: #{custom-call.16} parent=110 // loop_header
                %s462 = sphi 0, %s466
                %p463 = scmp.ge.s32.totalorder %s462, 1
                %s467 = sphi %s404, %s404
                %s468 = sphi %s452, %s452
              $region114: #{custom-call.16} parent=110 // loop_header_branch
                %465 = sbr.rel (%p463) target = $region118
              $region115: #{custom-call.16} parent=110 // loop_body
                %v469 = vld [vmem:[%s467] sm:%s460]
                %470 = vst [vmem:[%s468] sm:%s460] %v469
              $region116: #{custom-call.16} parent=110 // loop_footer
                %s466 = sadd.s32 1, %s462
              $region117: #{custom-call.16} parent=110 // loop_footer_branch
                %461 = sbr.rel target = $region113
              $region118: #{custom-call.16} parent=110 // loop_exit
                _
            $region111: #{custom-call.16} parent=102 // pred_fallthru
              _
          $region103: #{custom-call.16} parent=98 // pred_fallthru
            _
          %485 = vnop
        $region99: #{custom-call.16} parent=53 // pred_fallthru
          _
      $region54: #{custom-call.16} parent=5 // pred_fallthru
        _
      %p486 = scmp.le.s32.totalorder 2, %s5
      // Predicated region
      $region130: #{custom-call.16} parent=5 // pred_check
        %p487 = pneg %p486
      $region131: #{custom-call.16} parent=5 // pred_check_branch
        %489 = sbr.rel (%p487) target = $region133
      $region132: #{custom-call.16} parent=5 // pred_region
        %s490 = ssub.s32 %s5, 2
        %s491 = sand.u32 %s11, 1
        %s492 = sand.u32 %s11, 1
        %s493 = smul.addr %s492, 8
        %s494 = scalar_lea.vmem [#allocation1], %s493
        // Predicated region
        $region134: #{custom-call.16} parent=132 // pred_check
          %p495 = pneg %p65
        $region135: #{custom-call.16} parent=132 // pred_check_branch
          %497 = sbr.rel (%p495) target = $region137
        $region136: #{custom-call.16} parent=132 // pred_region
          %s498 = sand.u32 %s50, 1
          %s499 = sand.u32 %s50, 1
          %s500 = smul.addr %s499, 2
          %s501 = scalar_lea.vmem [#allocation3], %s500
        $region137: #{custom-call.16} parent=132 // pred_fallthru
          _
      $region133: #{custom-call.16} parent=5 // pred_fallthru
        _
    $region6: #{custom-call.16} parent=1 // loop_footer
      %s9 = sadd.s32 1, %s5
    $region7: #{custom-call.16} parent=1 // loop_footer_branch
      %4 = sbr.rel target = $region3
    $region8: #{custom-call.16} parent=1 // loop_exit
      _

// kernel: _lambda_.1
$region0: #{_lambda_.1}
  #allocation0 [shape = 'u32[]', space=smem, size = 0x4, offset = 0x4, fixed_abs, tag = 'smem constant byte address 0x4 - core index']
  #allocation1 [shape = 'u32[72,128]{1,0:T(1,128)}', space=vmem, size = 0x9000, scoped, tag = 'internal scratch']
  %s0 = inlined_call_operand.vmem [shape: f32[2,8,8], index: 0, kind: input, shape index: {}]
  %s1 = inlined_call_operand.vmem [shape: f32[2,8,3], index: 1, kind: input, shape index: {}]
  %s2 = inlined_call_operand.vmem [shape: f32[8,128], index: 2, kind: input, shape index: {}]
  %s3 = inlined_call_operand.hbm [shape: f32[2,8,8], index: 3, kind: output, shape index: {}]
  %s4 = sld [smem:[#allocation0]]
  $region22: #{_lambda_.1} parent=0
    _
  %s6 = ssub.s32 1, %s4
  %s7 = scalar_select 0, %s6, %s4
  $region1: #{_lambda_.1} parent=0
    #allocation2 [shape = 'u8[8192]{0}', space=vmem, size = 0x2000, scoped, tag = 'output window, operand 0, single buffered']
    #allocation3 [shape = 's32[1]{0}', space=sflag, size = 0x4, scoped, tag = 'scoped memory for _lambda_.1']
    %8 = vsyncpa [#allocation3], 0
    // Predicated region
    $region2: #{_lambda_.1} parent=1 // pred_check
      _
    $region3: #{_lambda_.1} parent=1 // pred_check_branch
      %10 = sbr.rel (0) target = $region5
    $region4: #{_lambda_.1} parent=1 // pred_region
      _
    $region5: #{_lambda_.1} parent=1 // pred_fallthru
      _
    // Predicated region
    $region6: #{_lambda_.1} parent=1 // pred_check
      _
    $region7: #{_lambda_.1} parent=1 // pred_check_branch
      %12 = sbr.rel (0) target = $region9
    $region8: #{_lambda_.1} parent=1 // pred_region
      _
    $region9: #{_lambda_.1} parent=1 // pred_fallthru
      _
    // Predicated region
    $region10: #{_lambda_.1} parent=1 // pred_check
      _
    $region11: #{_lambda_.1} parent=1 // pred_check_branch
      %14 = sbr.rel (0) target = $region13
    $region12: #{_lambda_.1} parent=1 // pred_region
      _
    $region13: #{_lambda_.1} parent=1 // pred_fallthru
      _
    %v15 = vld [vmem:[%s0] sm:$0xff]
    %v16 = vld [vmem:[%s0 + $0x8] sm:$0xff]
    %v17 = vld [vmem:[%s1] sm:$0xff]
    %v18 = vld [vmem:[%s1 + $0x8] sm:$0xff]
    %v19 = vld [vmem:[%s2] sm:$0xff]
    %vm20 = vcmask 64512
    %v21 = vsel %vm20, %v15, -inf
    %22 = vmax.xlane.f32.xlu0 %v21
    %v23 = vpop.xlane.xlu0 %22
    %v24 = vsel %vm20, %v16, -inf
    %25 = vmax.xlane.f32.xlu0 %v24
    %v26 = vpop.xlane.xlu0 %25
    %v27 = vsel %vm20, %v15, inf
    %28 = vmin.xlane.f32.xlu0 %v27
    %v29 = vpop.xlane.xlu0 %28
    %v30 = vsel %vm20, %v16, inf
    %31 = vmin.xlane.f32.xlu0 %v30
    %v32 = vpop.xlane.xlu0 %31
    %v33 = vperm.slane %v19, 0
    %v34 = vmul.f32 %v23, %v33
    %v35 = vmul.f32 %v26, %v33
    %v36 = vperm.slane %v19, 5
    %v37 = vadd.f32 %v36, %v34
    %v38 = vadd.f32 %v36, %v35
    %v39 = vperm.slane %v19, 1
    %v40 = vmul.f32 %v29, %v39
    %v41 = vmul.f32 %v32, %v39
    %v42 = vadd.f32 %v37, %v40
    %v43 = vadd.f32 %v38, %v41
    %45 = vset.pattern.permute.xlu0 0
    %46 = vperm.xlu0 %45, %v17
    %v47 = vpop.permute.xlu0 %46
    %50 = vset.pattern.permute.xlu0 0
    %51 = vperm.xlu0 %50, %v18
    %v52 = vpop.permute.xlu0 %51
    %v54 = vperm.slane %v19, 2
    %v55 = vmul.f32 %v47, %v54
    %v56 = vmul.f32 %v52, %v54
    %v57 = vadd.f32 %v42, %v55
    %v58 = vadd.f32 %v43, %v56
    %59 = vset.pattern.permute.xlu0 1
    %60 = vperm.xlu0 %59, %v17
    %v61 = vpop.permute.xlu0 %60
    %63 = vset.pattern.permute.xlu0 1
    %64 = vperm.xlu0 %63, %v18
    %v65 = vpop.permute.xlu0 %64
    %v67 = vperm.slane %v19, 3
    %v68 = vmul.f32 %v61, %v67
    %v69 = vmul.f32 %v65, %v67
    %v70 = vadd.f32 %v57, %v68
    %v71 = vadd.f32 %v58, %v69
    %72 = vset.pattern.permute.xlu0 2
    %73 = vperm.xlu0 %72, %v17
    %v74 = vpop.permute.xlu0 %73
    %76 = vset.pattern.permute.xlu0 2
    %77 = vperm.xlu0 %76, %v18
    %v78 = vpop.permute.xlu0 %77
    %v80 = vperm.slane %v19, 4
    %v81 = vmul.f32 %v74, %v80
    %v82 = vmul.f32 %v78, %v80
    %v83 = vadd.f32 %v70, %v81
    %v84 = vadd.f32 %v71, %v82
    %v85 = vsub.f32 0.0, %v83
    %v86 = vsub.f32 0.0, %v84
    %v87 = vmul.f32 %v85, 1.442695
    %v88 = vpow.pop %v87
    %v89 = vmul.f32 %v86, 1.442695
    %v90 = vpow.pop %v89
    %v91 = vadd.f32 %v88, 1.0
    %v92 = vadd.f32 %v90, 1.0
    %v93 = vrcp.pop %v91
    %v94 = vmul.f32 %v91, %v93
    %v95 = vsub.f32 1.0, %v94
    %v96 = vmul.f32 %v93, %v95
    %v97 = vadd.f32 %v93, %v96
    %vm98 = vweird.f32 %v91
    %vm99 = vweird.f32 %v93
    %vm100 = vmor %vm98, %vm99
    %v101 = vsel %vm100, %v93, %v97
    %v102 = vand.u32 2147483647, %v91
    %vm103 = vcmp.eq.f32.partialorder %v102, 8.507059e+37
    %v104 = vand.u32 %v91, 2147483648
    %v105 = vor.u32 1.1754944e-38, %v104
    %v106 = vsel %vm103, %v105, %v101
    %v107 = vmul.f32 1.0, %v106
    %v108 = vrcp.pop %v92
    %v109 = vmul.f32 %v92, %v108
    %v110 = vsub.f32 1.0, %v109
    %v111 = vmul.f32 %v108, %v110
    %v112 = vadd.f32 %v108, %v111
    %vm113 = vweird.f32 %v92
    %vm114 = vweird.f32 %v108
    %vm115 = vmor %vm113, %vm114
    %v116 = vsel %vm115, %v108, %v112
    %v117 = vand.u32 2147483647, %v92
    %vm118 = vcmp.eq.f32.partialorder %v117, 8.507059e+37
    %v119 = vand.u32 %v92, 2147483648
    %v120 = vor.u32 1.1754944e-38, %v119
    %v121 = vsel %vm118, %v120, %v116
    %v122 = vmul.f32 1.0, %v121
    %v123 = vperm.slane %v19, 6
    %v124 = vmul.f32 %v107, %v123
    %v125 = vmul.f32 %v122, %v123
    %vm126 = vcmask 162816
    %v127 = vsel %vm126, %v124, 0.0
    %128 = vadd.xlane.f32.xlu0 %v127
    %v129 = vpop.xlane.xlu0 %128
    %v130 = vsel %vm126, %v125, 0.0
    %131 = vadd.xlane.f32.xlu0 %v130
    %v132 = vpop.xlane.xlu0 %131
    %v133 = vperm.slane %v19, 7
    %v134 = vadd.f32 %v129, %v133
    %v135 = vadd.f32 %v132, %v133
    %v136 = vlaneseq
    %v137 = vshrl.u32 %v136, 7
    %v138 = vlaneseq
    %v139 = vand.u32 %v138, 127
    %vm140 = vcmp.eq.s32.totalorder %v137, %v139
    %v141 = vsel %vm140, 1, 0
    %v142 = vcvt.s32.f32 %v141
    %144 = vset.pattern.permute.xlu0 0
    %145 = vperm.xlu0 %144, %v134
    %v146 = vpop.permute.xlu0 %145
    %149 = vset.pattern.permute.xlu0 0
    %150 = vperm.xlu0 %149, %v135
    %v151 = vpop.permute.xlu0 %150
    %v153 = vmul.f32 %v146, %v142
    %v154 = vmul.f32 %v151, %v142
    %v155 = vsel %vm20, %v153, 0.0
    %v156 = vrot.slane %v155, 4
    %v157 = vadd.f32 %v155, %v156
    %v158 = vrot.slane %v157, 2
    %v159 = vadd.f32 %v157, %v158
    %v160 = vrot.slane %v159, 1
    %v161 = vadd.f32 %v159, %v160
    %v162 = vsel %vm20, %v154, 0.0
    %v163 = vrot.slane %v162, 4
    %v164 = vadd.f32 %v162, %v163
    %v165 = vrot.slane %v164, 2
    %v166 = vadd.f32 %v164, %v165
    %v167 = vrot.slane %v166, 1
    %v168 = vadd.f32 %v166, %v167
    %vm169 = vcmp.lt.f32.partialorder %v146, %v161
    %vm170 = vcmp.lt.f32.partialorder %v151, %v168
    %v171 = vsel %vm169, 1, 0
    %v172 = vsel %vm170, 1, 0
    %v173 = vsel %vm20, %v171, 0
    %v174 = vrot.slane %v173, 4
    %v175 = vadd.s32 %v173, %v174
    %v176 = vrot.slane %v175, 2
    %v177 = vadd.s32 %v175, %v176
    %v178 = vrot.slane %v177, 1
    %v179 = vadd.s32 %v177, %v178
    %v180 = vsel %vm20, %v172, 0
    %v181 = vrot.slane %v180, 4
    %v182 = vadd.s32 %v180, %v181
    %v183 = vrot.slane %v182, 2
    %v184 = vadd.s32 %v182, %v183
    %v185 = vrot.slane %v184, 1
    %v186 = vadd.s32 %v184, %v185
    %vm187 = vcmp.lt.f32.partialorder %v161, %v146
    %vm188 = vcmp.lt.f32.partialorder %v168, %v151
    %v189 = vsel %vm187, 1, 0
    %v190 = vsel %vm188, 1, 0
    %v191 = vsel %vm20, %v189, 0
    %v192 = vand.u32 %v191, 65535
    %v193 = vshrl.u32 %v191, 16
    %v194 = vcvt.s32.f32 %v192
    %v195 = vcvt.s32.f32 %v193
    %196 = vadd.xlane.f32.xlu0 %v194
    %v197 = vpop.xlane.xlu0 %196
    %198 = vadd.xlane.f32.xlu0 %v195
    %v199 = vpop.xlane.xlu0 %198
    %v200 = vcvt.f32.s32 %v197
    %v201 = vcvt.f32.s32 %v199
    %v202 = vshll.u32 %v201, 16
    %v203 = vadd.s32 %v202, %v200
    %v204 = vsel %vm20, %v190, 0
    %v205 = vand.u32 %v204, 65535
    %v206 = vshrl.u32 %v204, 16
    %v207 = vcvt.s32.f32 %v205
    %v208 = vcvt.s32.f32 %v206
    %209 = vadd.xlane.f32.xlu0 %v207
    %v210 = vpop.xlane.xlu0 %209
    %211 = vadd.xlane.f32.xlu0 %v208
    %v212 = vpop.xlane.xlu0 %211
    %v213 = vcvt.f32.s32 %v210
    %v214 = vcvt.f32.s32 %v212
    %v215 = vshll.u32 %v214, 16
    %v216 = vadd.s32 %v215, %v213
    %v217 = vcvt.s32.f32 %v179
    %v218 = vcvt.s32.f32 %v186
    %v219 = vadd.f32 %v161, %v217
    %v220 = vadd.f32 %v168, %v218
    %v221 = vcvt.s32.f32 %v203
    %v222 = vcvt.s32.f32 %v216
    %v223 = vadd.f32 %v134, %v221
    %v224 = vadd.f32 %v135, %v222
    %v225 = vsub.s32 7, %v137
    %vm226 = vcmp.eq.s32.totalorder %v179, %v225
    %vm227 = vcmp.eq.s32.totalorder %v186, %v225
    %v228 = vsel %vm226, 1, 0
    %v229 = vsel %vm227, 1, 0
    %v230 = vcvt.s32.f32 %v228
    %v231 = vcvt.s32.f32 %v229
    %v232 = vsub.s32 7, %v139
    %vm233 = vcmp.eq.s32.totalorder %v203, %v232
    %vm234 = vcmp.eq.s32.totalorder %v216, %v232
    %v235 = vsel %vm233, 1, 0
    %v236 = vsel %vm234, 1, 0
    %v237 = vcvt.s32.f32 %v235
    %v238 = vcvt.s32.f32 %v236
    %v239 = vmul.f32 %v230, %v219
    %v240 = vmul.f32 %v231, %v220
    %v241 = vsel %vm20, %v239, 0.0
    %242 = vadd.xlane.f32.xlu0 %v241
    %v243 = vpop.xlane.xlu0 %242
    %v244 = vsel %vm20, %v240, 0.0
    %245 = vadd.xlane.f32.xlu0 %v244
    %v246 = vpop.xlane.xlu0 %245
    %248 = vset.pattern.permute.xlu0 0
    %249 = vperm.xlu0 %248, %v223
    %v250 = vpop.permute.xlu0 %249
    %253 = vset.pattern.permute.xlu0 0
    %254 = vperm.xlu0 %253, %v224
    %v255 = vpop.permute.xlu0 %254
    %v257 = vmul.f32 %v237, %v250
    %v258 = vmul.f32 %v238, %v255
    %v259 = vsel %vm20, %v257, 0.0
    %v260 = vrot.slane %v259, 4
    %v261 = vadd.f32 %v259, %v260
    %v262 = vrot.slane %v261, 2
    %v263 = vadd.f32 %v261, %v262
    %v264 = vrot.slane %v263, 1
    %v265 = vadd.f32 %v263, %v264
    %v266 = vsel %vm20, %v258, 0.0
    %v267 = vrot.slane %v266, 4
    %v268 = vadd.f32 %v266, %v267
    %v269 = vrot.slane %v268, 2
    %v270 = vadd.f32 %v268, %v269
    %v271 = vrot.slane %v270, 1
    %v272 = vadd.f32 %v270, %v271
    %v273 = vsub.f32 %v219, %v243
    %v274 = vsub.f32 %v220, %v246
    %v275 = vmul.f32 %v273, %v273
    %v276 = vmul.f32 %v274, %v274
    %v277 = vmul.f32 %v275, -1.0
    %v278 = vmul.f32 %v276, -1.0
    %v279 = vsel %vm20, %v277, -inf
    %280 = vmax.xlane.f32.xlu0 %v279
    %v281 = vpop.xlane.xlu0 %280
    %v282 = vsel %vm20, %v278, -inf
    %283 = vmax.xlane.f32.xlu0 %v282
    %v284 = vpop.xlane.xlu0 %283
    %v285 = vsub.f32 %v277, %v281
    %v286 = vsub.f32 %v278, %v284
    %v287 = vmul.f32 %v285, 1.442695
    %v288 = vpow.pop %v287
    %v289 = vmul.f32 %v286, 1.442695
    %v290 = vpow.pop %v289
    %v291 = vsel %vm20, %v288, 0.0
    %292 = vadd.xlane.f32.xlu0 %v291
    %v293 = vpop.xlane.xlu0 %292
    %v294 = vsel %vm20, %v290, 0.0
    %295 = vadd.xlane.f32.xlu0 %v294
    %v296 = vpop.xlane.xlu0 %295
    %v297 = vrcp.pop %v293
    %v298 = vmul.f32 %v293, %v297
    %v299 = vsub.f32 1.0, %v298
    %v300 = vmul.f32 %v297, %v299
    %v301 = vadd.f32 %v297, %v300
    %vm302 = vweird.f32 %v293
    %vm303 = vweird.f32 %v297
    %vm304 = vmor %vm302, %vm303
    %v305 = vsel %vm304, %v297, %v301
    %v306 = vand.u32 2147483647, %v293
    %vm307 = vcmp.eq.f32.partialorder %v306, 8.507059e+37
    %v308 = vand.u32 %v293, 2147483648
    %v309 = vor.u32 1.1754944e-38, %v308
    %v310 = vsel %vm307, %v309, %v305
    %v311 = vmul.f32 %v288, %v310
    %v312 = vrcp.pop %v296
    %v313 = vmul.f32 %v296, %v312
    %v314 = vsub.f32 1.0, %v313
    %v315 = vmul.f32 %v312, %v314
    %v316 = vadd.f32 %v312, %v315
    %vm317 = vweird.f32 %v296
    %vm318 = vweird.f32 %v312
    %vm319 = vmor %vm317, %vm318
    %v320 = vsel %vm319, %v312, %v316
    %v321 = vand.u32 2147483647, %v296
    %vm322 = vcmp.eq.f32.partialorder %v321, 8.507059e+37
    %v323 = vand.u32 %v296, 2147483648
    %v324 = vor.u32 1.1754944e-38, %v323
    %v325 = vsel %vm322, %v324, %v320
    %v326 = vmul.f32 %v290, %v325
    %v327 = vsub.f32 %v250, %v265
    %v328 = vsub.f32 %v255, %v272
    %v329 = vmul.f32 %v327, %v327
    %v330 = vmul.f32 %v328, %v328
    %v331 = vmul.f32 %v329, -1.0
    %v332 = vmul.f32 %v330, -1.0
    %v333 = vsel %vm20, %v331, -inf
    %v334 = vrot.slane %v333, 4
    %v335 = vmax.f32 %v333, %v334
    %v336 = vrot.slane %v335, 2
    %v337 = vmax.f32 %v335, %v336
    %v338 = vrot.slane %v337, 1
    %v339 = vmax.f32 %v337, %v338
    %v340 = vsel %vm20, %v332, -inf
    %v341 = vrot.slane %v340, 4
    %v342 = vmax.f32 %v340, %v341
    %v343 = vrot.slane %v342, 2
    %v344 = vmax.f32 %v342, %v343
    %v345 = vrot.slane %v344, 1
    %v346 = vmax.f32 %v344, %v345
    %v347 = vsub.f32 %v331, %v339
    %v348 = vsub.f32 %v332, %v346
    %v349 = vmul.f32 %v347, 1.442695
    %v350 = vpow.pop %v349
    %v351 = vmul.f32 %v348, 1.442695
    %v352 = vpow.pop %v351
    %v353 = vsel %vm20, %v350, 0.0
    %v354 = vrot.slane %v353, 4
    %v355 = vadd.f32 %v353, %v354
    %v356 = vrot.slane %v355, 2
    %v357 = vadd.f32 %v355, %v356
    %v358 = vrot.slane %v357, 1
    %v359 = vadd.f32 %v357, %v358
    %v360 = vsel %vm20, %v352, 0.0
    %v361 = vrot.slane %v360, 4
    %v362 = vadd.f32 %v360, %v361
    %v363 = vrot.slane %v362, 2
    %v364 = vadd.f32 %v362, %v363
    %v365 = vrot.slane %v364, 1
    %v366 = vadd.f32 %v364, %v365
    %v367 = vrcp.pop %v359
    %v368 = vmul.f32 %v359, %v367
    %v369 = vsub.f32 1.0, %v368
    %v370 = vmul.f32 %v367, %v369
    %v371 = vadd.f32 %v367, %v370
    %vm372 = vweird.f32 %v359
    %vm373 = vweird.f32 %v367
    %vm374 = vmor %vm372, %vm373
    %v375 = vsel %vm374, %v367, %v371
    %v376 = vand.u32 2147483647, %v359
    %vm377 = vcmp.eq.f32.partialorder %v376, 8.507059e+37
    %v378 = vand.u32 %v359, 2147483648
    %v379 = vor.u32 1.1754944e-38, %v378
    %v380 = vsel %vm377, %v379, %v375
    %v381 = vmul.f32 %v350, %v380
    %v382 = vrcp.pop %v366
    %v383 = vmul.f32 %v366, %v382
    %v384 = vsub.f32 1.0, %v383
    %v385 = vmul.f32 %v382, %v384
    %v386 = vadd.f32 %v382, %v385
    %vm387 = vweird.f32 %v366
    %vm388 = vweird.f32 %v382
    %vm389 = vmor %vm387, %vm388
    %v390 = vsel %vm389, %v382, %v386
    %v391 = vand.u32 2147483647, %v366
    %vm392 = vcmp.eq.f32.partialorder %v391, 8.507059e+37
    %v393 = vand.u32 %v366, 2147483648
    %v394 = vor.u32 1.1754944e-38, %v393
    %v395 = vsel %vm392, %v394, %v390
    %v396 = vmul.f32 %v352, %v395
    %398 = vset.pattern.permute.xlu0 0
    %399 = vperm.xlu0 %398, %v311
    %v400 = vpop.permute.xlu0 %399
    %403 = vset.pattern.permute.xlu0 0
    %404 = vperm.xlu0 %403, %v326
    %v405 = vpop.permute.xlu0 %404
    %v407 = vperm.slane %v15, 0
    %v408 = vperm.slane %v16, 0
    %v409 = vmul.f32 %v400, %v407
    %v410 = vmul.f32 %v405, %v408
    %v411 = vadd.f32 %v409, 0.0
    %v412 = vadd.f32 %v410, 0.0
    %413 = vset.pattern.permute.xlu0 1
    %414 = vperm.xlu0 %413, %v311
    %v415 = vpop.permute.xlu0 %414
    %417 = vset.pattern.permute.xlu0 1
    %418 = vperm.xlu0 %417, %v326
    %v419 = vpop.permute.xlu0 %418
    %v421 = vperm.slane %v15, 1
    %v422 = vperm.slane %v16, 1
    %v423 = vmul.f32 %v415, %v421
    %v424 = vmul.f32 %v419, %v422
    %v425 = vadd.f32 %v411, %v423
    %v426 = vadd.f32 %v412, %v424
    %427 = vset.pattern.permute.xlu0 2
    %428 = vperm.xlu0 %427, %v311
    %v429 = vpop.permute.xlu0 %428
    %431 = vset.pattern.permute.xlu0 2
    %432 = vperm.xlu0 %431, %v326
    %v433 = vpop.permute.xlu0 %432
    %v435 = vperm.slane %v15, 2
    %v436 = vperm.slane %v16, 2
    %v437 = vmul.f32 %v429, %v435
    %v438 = vmul.f32 %v433, %v436
    %v439 = vadd.f32 %v425, %v437
    %v440 = vadd.f32 %v426, %v438
    %441 = vset.pattern.permute.xlu0 3
    %442 = vperm.xlu0 %441, %v311
    %v443 = vpop.permute.xlu0 %442
    %445 = vset.pattern.permute.xlu0 3
    %446 = vperm.xlu0 %445, %v326
    %v447 = vpop.permute.xlu0 %446
    %v449 = vperm.slane %v15, 3
    %v450 = vperm.slane %v16, 3
    %v451 = vmul.f32 %v443, %v449
    %v452 = vmul.f32 %v447, %v450
    %v453 = vadd.f32 %v439, %v451
    %v454 = vadd.f32 %v440, %v452
    %455 = vset.pattern.permute.xlu0 4
    %456 = vperm.xlu0 %455, %v311
    %v457 = vpop.permute.xlu0 %456
    %459 = vset.pattern.permute.xlu0 4
    %460 = vperm.xlu0 %459, %v326
    %v461 = vpop.permute.xlu0 %460
    %v463 = vperm.slane %v15, 4
    %v464 = vperm.slane %v16, 4
    %v465 = vmul.f32 %v457, %v463
    %v466 = vmul.f32 %v461, %v464
    %v467 = vadd.f32 %v453, %v465
    %v468 = vadd.f32 %v454, %v466
    %469 = vset.pattern.permute.xlu0 5
    %470 = vperm.xlu0 %469, %v311
    %v471 = vpop.permute.xlu0 %470
    %473 = vset.pattern.permute.xlu0 5
    %474 = vperm.xlu0 %473, %v326
    %v475 = vpop.permute.xlu0 %474
    %v477 = vperm.slane %v15, 5
    %v478 = vperm.slane %v16, 5
    %v479 = vmul.f32 %v471, %v477
    %v480 = vmul.f32 %v475, %v478
    %v481 = vadd.f32 %v467, %v479
    %v482 = vadd.f32 %v468, %v480
    %483 = vset.pattern.permute.xlu0 6
    %484 = vperm.xlu0 %483, %v311
    %v485 = vpop.permute.xlu0 %484
    %487 = vset.pattern.permute.xlu0 6
    %488 = vperm.xlu0 %487, %v326
    %v489 = vpop.permute.xlu0 %488
    %v491 = vperm.slane %v15, 6
    %v492 = vperm.slane %v16, 6
    %v493 = vmul.f32 %v485, %v491
    %v494 = vmul.f32 %v489, %v492
    %v495 = vadd.f32 %v481, %v493
    %v496 = vadd.f32 %v482, %v494
    %497 = vset.pattern.permute.xlu0 7
    %498 = vperm.xlu0 %497, %v311
    %v499 = vpop.permute.xlu0 %498
    %501 = vset.pattern.permute.xlu0 7
    %502 = vperm.xlu0 %501, %v326
    %v503 = vpop.permute.xlu0 %502
    %v505 = vperm.slane %v15, 7
    %v506 = vperm.slane %v16, 7
    %v507 = vmul.f32 %v499, %v505
    %v508 = vmul.f32 %v503, %v506
    %v509 = vadd.f32 %v495, %v507
    %v510 = vadd.f32 %v496, %v508
    %v511 = vsel %vm20, %v509, -inf
    %512 = vmax.xlane.f32.xlu0 %v511
    %v513 = vpop.xlane.xlu0 %512
    %v514 = vsel %vm20, %v510, -inf
    %515 = vmax.xlane.f32.xlu0 %v514
    %v516 = vpop.xlane.xlu0 %515
    %v517 = vsub.f32 %v509, %v513
    %v518 = vsub.f32 %v510, %v516
    %v519 = vmul.f32 %v517, 1.442695
    %v520 = vpow.pop %v519
    %v521 = vmul.f32 %v518, 1.442695
    %v522 = vpow.pop %v521
    %vm523 = vcmp.eq.s32.totalorder %v137, 0
    %v524 = vsel %vm523, 1, 0
    %v525 = vcvt.s32.f32 %v524
    %vm526 = vcmask 57344
    %v527 = vsel %vm526, %v520, 0.0
    %528 = vadd.xlane.f32.xlu0 %v527
    %v529 = vpop.xlane.xlu0 %528
    %v530 = vsel %vm526, %v522, 0.0
    %531 = vadd.xlane.f32.xlu0 %v530
    %v532 = vpop.xlane.xlu0 %531
    %v533 = vadd.f32 %v529, 1e-30
    %v534 = vadd.f32 %v532, 1e-30
    %v535 = vrcp.pop %v533
    %v536 = vrcp.pop %v534
    %v537 = vmul.f32 %v520, %v535
    %v538 = vmul.f32 %v522, %v536
    %v539 = vperm.slane %v537, 0
    %v540 = vperm.slane %v538, 0
    %v541 = vmul.f32 %v525, %v539
    %v542 = vmul.f32 %v525, %v540
    %v543 = vadd.f32 %v541, 0.0
    %v544 = vadd.f32 %v542, 0.0
    %v545 = vsub.f32 1.0, %v537
    %v546 = vsub.f32 1.0, %v538
    %vm547 = vcmp.eq.s32.totalorder %v137, 1
    %v548 = vsel %vm547, 1, 0
    %v549 = vcvt.s32.f32 %v548
    %v552 = vrot.slane %v520, 1
    %v553 = vrot.slane %v522, 1
    %v556 = vmul.f32 %v545, %v552
    %v557 = vmul.f32 %v546, %v553
    %v558 = vsel %vm526, %v556, 0.0
    %559 = vadd.xlane.f32.xlu0 %v558
    %v560 = vpop.xlane.xlu0 %559
    %v561 = vsel %vm526, %v557, 0.0
    %562 = vadd.xlane.f32.xlu0 %v561
    %v563 = vpop.xlane.xlu0 %562
    %v564 = vadd.f32 %v560, 1e-30
    %v565 = vadd.f32 %v563, 1e-30
    %v566 = vrcp.pop %v564
    %v567 = vrcp.pop %v565
    %v568 = vmul.f32 %v556, %v566
    %v569 = vmul.f32 %v557, %v567
    %v570 = vperm.slane %v568, 0
    %v571 = vperm.slane %v569, 0
    %v572 = vmul.f32 %v549, %v570
    %v573 = vmul.f32 %v549, %v571
    %v574 = vadd.f32 %v543, %v572
    %v575 = vadd.f32 %v544, %v573
    %v576 = vsub.f32 1.0, %v568
    %v577 = vsub.f32 1.0, %v569
    %v578 = vmul.f32 %v545, %v576
    %v579 = vmul.f32 %v546, %v577
    %vm580 = vcmp.eq.s32.totalorder %v137, 2
    %v581 = vsel %vm580, 1, 0
    %v582 = vcvt.s32.f32 %v581
    %v583 = vrot.slane %v520, 2
    %v584 = vrot.slane %v522, 2
    %v587 = vmul.f32 %v578, %v583
    %v588 = vmul.f32 %v579, %v584
    %v589 = vsel %vm526, %v587, 0.0
    %590 = vadd.xlane.f32.xlu0 %v589
    %v591 = vpop.xlane.xlu0 %590
    %v592 = vsel %vm526, %v588, 0.0
    %593 = vadd.xlane.f32.xlu0 %v592
    %v594 = vpop.xlane.xlu0 %593
    %v595 = vadd.f32 %v591, 1e-30
    %v596 = vadd.f32 %v594, 1e-30
    %v597 = vrcp.pop %v595
    %v598 = vrcp.pop %v596
    %v599 = vmul.f32 %v587, %v597
    %v600 = vmul.f32 %v588, %v598
    %v601 = vperm.slane %v599, 0
    %v602 = vperm.slane %v600, 0
    %v603 = vmul.f32 %v582, %v601
    %v604 = vmul.f32 %v582, %v602
    %v605 = vadd.f32 %v574, %v603
    %v606 = vadd.f32 %v575, %v604
    %v607 = vsub.f32 1.0, %v599
    %v608 = vsub.f32 1.0, %v600
    %v609 = vmul.f32 %v578, %v607
    %v610 = vmul.f32 %v579, %v608
    %vm611 = vcmp.eq.s32.totalorder %v137, 3
    %v612 = vsel %vm611, 1, 0
    %v613 = vcvt.s32.f32 %v612
    %v614 = vrot.slane %v520, 3
    %v615 = vrot.slane %v522, 3
    %v618 = vmul.f32 %v609, %v614
    %v619 = vmul.f32 %v610, %v615
    %v620 = vsel %vm526, %v618, 0.0
    %621 = vadd.xlane.f32.xlu0 %v620
    %v622 = vpop.xlane.xlu0 %621
    %v623 = vsel %vm526, %v619, 0.0
    %624 = vadd.xlane.f32.xlu0 %v623
    %v625 = vpop.xlane.xlu0 %624
    %v626 = vadd.f32 %v622, 1e-30
    %v627 = vadd.f32 %v625, 1e-30
    %v628 = vrcp.pop %v626
    %v629 = vrcp.pop %v627
    %v630 = vmul.f32 %v618, %v628
    %v631 = vmul.f32 %v619, %v629
    %v632 = vperm.slane %v630, 0
    %v633 = vperm.slane %v631, 0
    %v634 = vmul.f32 %v613, %v632
    %v635 = vmul.f32 %v613, %v633
    %v636 = vadd.f32 %v605, %v634
    %v637 = vadd.f32 %v606, %v635
    %v638 = vsub.f32 1.0, %v630
    %v639 = vsub.f32 1.0, %v631
    %v640 = vmul.f32 %v609, %v638
    %v641 = vmul.f32 %v610, %v639
    %vm642 = vcmp.eq.s32.totalorder %v137, 4
    %v643 = vsel %vm642, 1, 0
    %v644 = vcvt.s32.f32 %v643
    %v645 = vrot.slane %v520, 4
    %v646 = vrot.slane %v522, 4
    %v649 = vmul.f32 %v640, %v645
    %v650 = vmul.f32 %v641, %v646
    %v651 = vsel %vm526, %v649, 0.0
    %652 = vadd.xlane.f32.xlu0 %v651
    %v653 = vpop.xlane.xlu0 %652
    %v654 = vsel %vm526, %v650, 0.0
    %655 = vadd.xlane.f32.xlu0 %v654
    %v656 = vpop.xlane.xlu0 %655
    %v657 = vadd.f32 %v653, 1e-30
    %v658 = vadd.f32 %v656, 1e-30
    %v659 = vrcp.pop %v657
    %v660 = vrcp.pop %v658
    %v661 = vmul.f32 %v649, %v659
    %v662 = vmul.f32 %v650, %v660
    %v663 = vperm.slane %v661, 0
    %v664 = vperm.slane %v662, 0
    %v665 = vmul.f32 %v644, %v663
    %v666 = vmul.f32 %v644, %v664
    %v667 = vadd.f32 %v636, %v665
    %v668 = vadd.f32 %v637, %v666
    %v669 = vsub.f32 1.0, %v661
    %v670 = vsub.f32 1.0, %v662
    %v671 = vmul.f32 %v640, %v669
    %v672 = vmul.f32 %v641, %v670
    %vm673 = vcmp.eq.s32.totalorder %v137, 5
    %v674 = vsel %vm673, 1, 0
    %v675 = vcvt.s32.f32 %v674
    %v676 = vrot.slane %v520, 5
    %v677 = vrot.slane %v522, 5
    %v680 = vmul.f32 %v671, %v676
    %v681 = vmul.f32 %v672, %v677
    %v682 = vsel %vm526, %v680, 0.0
    %683 = vadd.xlane.f32.xlu0 %v682
    %v684 = vpop.xlane.xlu0 %683
    %v685 = vsel %vm526, %v681, 0.0
    %686 = vadd.xlane.f32.xlu0 %v685
    %v687 = vpop.xlane.xlu0 %686
    %v688 = vadd.f32 %v684, 1e-30
    %v689 = vadd.f32 %v687, 1e-30
    %v690 = vrcp.pop %v688
    %v691 = vrcp.pop %v689
    %v692 = vmul.f32 %v680, %v690
    %v693 = vmul.f32 %v681, %v691
    %v694 = vperm.slane %v692, 0
    %v695 = vperm.slane %v693, 0
    %v696 = vmul.f32 %v675, %v694
    %v697 = vmul.f32 %v675, %v695
    %v698 = vadd.f32 %v667, %v696
    %v699 = vadd.f32 %v668, %v697
    %v700 = vsub.f32 1.0, %v692
    %v701 = vsub.f32 1.0, %v693
    %v702 = vmul.f32 %v671, %v700
    %v703 = vmul.f32 %v672, %v701
    %vm704 = vcmp.eq.s32.totalorder %v137, 6
    %v705 = vsel %vm704, 1, 0
    %v706 = vcvt.s32.f32 %v705
    %v707 = vrot.slane %v520, 6
    %v708 = vrot.slane %v522, 6
    %v711 = vmul.f32 %v702, %v707
    %v712 = vmul.f32 %v703, %v708
    %v713 = vsel %vm526, %v711, 0.0
    %714 = vadd.xlane.f32.xlu0 %v713
    %v715 = vpop.xlane.xlu0 %714
    %v716 = vsel %vm526, %v712, 0.0
    %717 = vadd.xlane.f32.xlu0 %v716
    %v718 = vpop.xlane.xlu0 %717
    %v719 = vadd.f32 %v715, 1e-30
    %v720 = vadd.f32 %v718, 1e-30
    %v721 = vrcp.pop %v719
    %v722 = vrcp.pop %v720
    %v723 = vmul.f32 %v711, %v721
    %v724 = vmul.f32 %v712, %v722
    %v725 = vperm.slane %v723, 0
    %v726 = vperm.slane %v724, 0
    %v727 = vmul.f32 %v706, %v725
    %v728 = vmul.f32 %v706, %v726
    %v729 = vadd.f32 %v698, %v727
    %v730 = vadd.f32 %v699, %v728
    %v731 = vsub.f32 1.0, %v723
    %v732 = vsub.f32 1.0, %v724
    %v733 = vmul.f32 %v702, %v731
    %v734 = vmul.f32 %v703, %v732
    %vm735 = vcmp.eq.s32.totalorder %v137, 7
    %v736 = vsel %vm735, 1, 0
    %v737 = vcvt.s32.f32 %v736
    %v738 = vrot.slane %v520, 7
    %v739 = vrot.slane %v522, 7
    %v742 = vmul.f32 %v733, %v738
    %v743 = vmul.f32 %v734, %v739
    %v744 = vsel %vm526, %v742, 0.0
    %745 = vadd.xlane.f32.xlu0 %v744
    %v746 = vpop.xlane.xlu0 %745
    %v747 = vsel %vm526, %v743, 0.0
    %748 = vadd.xlane.f32.xlu0 %v747
    %v749 = vpop.xlane.xlu0 %748
    %v750 = vadd.f32 %v746, 1e-30
    %v751 = vadd.f32 %v749, 1e-30
    %v752 = vrcp.pop %v750
    %v753 = vrcp.pop %v751
    %v754 = vmul.f32 %v742, %v752
    %v755 = vmul.f32 %v743, %v753
    %v756 = vperm.slane %v754, 0
    %v757 = vperm.slane %v755, 0
    %v758 = vmul.f32 %v737, %v756
    %v759 = vmul.f32 %v737, %v757
    %v760 = vadd.f32 %v729, %v758
    %v761 = vadd.f32 %v730, %v759
    %763 = vset.pattern.permute.xlu0 0
    %764 = vperm.xlu0 %763, %v381
    %v765 = vpop.permute.xlu0 %764
    %768 = vset.pattern.permute.xlu0 0
    %769 = vperm.xlu0 %768, %v396
    %v770 = vpop.permute.xlu0 %769
    %v772 = vperm.slane %v760, 0
    %v773 = vperm.slane %v761, 0
    %v774 = vmul.f32 %v765, %v772
    %v775 = vmul.f32 %v770, %v773
    %v776 = vadd.f32 %v774, 0.0
    %v777 = vadd.f32 %v775, 0.0
    %778 = vset.pattern.permute.xlu0 1
    %779 = vperm.xlu0 %778, %v381
    %v780 = vpop.permute.xlu0 %779
    %782 = vset.pattern.permute.xlu0 1
    %783 = vperm.xlu0 %782, %v396
    %v784 = vpop.permute.xlu0 %783
    %v786 = vperm.slane %v760, 1
    %v787 = vperm.slane %v761, 1
    %v788 = vmul.f32 %v780, %v786
    %v789 = vmul.f32 %v784, %v787
    %v790 = vadd.f32 %v776, %v788
    %v791 = vadd.f32 %v777, %v789
    %792 = vset.pattern.permute.xlu0 2
    %793 = vperm.xlu0 %792, %v381
    %v794 = vpop.permute.xlu0 %793
    %796 = vset.pattern.permute.xlu0 2
    %797 = vperm.xlu0 %796, %v396
    %v798 = vpop.permute.xlu0 %797
    %v800 = vperm.slane %v760, 2
    %v801 = vperm.slane %v761, 2
    %v802 = vmul.f32 %v794, %v800
    %v803 = vmul.f32 %v798, %v801
    %v804 = vadd.f32 %v790, %v802
    %v805 = vadd.f32 %v791, %v803
    %806 = vset.pattern.permute.xlu0 3
    %807 = vperm.xlu0 %806, %v381
    %v808 = vpop.permute.xlu0 %807
    %810 = vset.pattern.permute.xlu0 3
    %811 = vperm.xlu0 %810, %v396
    %v812 = vpop.permute.xlu0 %811
    %v814 = vperm.slane %v760, 3
    %v815 = vperm.slane %v761, 3
    %v816 = vmul.f32 %v808, %v814
    %v817 = vmul.f32 %v812, %v815
    %v818 = vadd.f32 %v804, %v816
    %v819 = vadd.f32 %v805, %v817
    %820 = vset.pattern.permute.xlu0 4
    %821 = vperm.xlu0 %820, %v381
    %v822 = vpop.permute.xlu0 %821
    %824 = vset.pattern.permute.xlu0 4
    %825 = vperm.xlu0 %824, %v396
    %v826 = vpop.permute.xlu0 %825
    %v828 = vperm.slane %v760, 4
    %v829 = vperm.slane %v761, 4
    %v830 = vmul.f32 %v822, %v828
    %v831 = vmul.f32 %v826, %v829
    %v832 = vadd.f32 %v818, %v830
    %v833 = vadd.f32 %v819, %v831
    %834 = vset.pattern.permute.xlu0 5
    %835 = vperm.xlu0 %834, %v381
    %v836 = vpop.permute.xlu0 %835
    %838 = vset.pattern.permute.xlu0 5
    %839 = vperm.xlu0 %838, %v396
    %v840 = vpop.permute.xlu0 %839
    %v842 = vperm.slane %v760, 5
    %v843 = vperm.slane %v761, 5
    %v844 = vmul.f32 %v836, %v842
    %v845 = vmul.f32 %v840, %v843
    %v846 = vadd.f32 %v832, %v844
    %v847 = vadd.f32 %v833, %v845
    %848 = vset.pattern.permute.xlu0 6
    %849 = vperm.xlu0 %848, %v381
    %v850 = vpop.permute.xlu0 %849
    %852 = vset.pattern.permute.xlu0 6
    %853 = vperm.xlu0 %852, %v396
    %v854 = vpop.permute.xlu0 %853
    %v856 = vperm.slane %v760, 6
    %v857 = vperm.slane %v761, 6
    %v858 = vmul.f32 %v850, %v856
    %v859 = vmul.f32 %v854, %v857
    %v860 = vadd.f32 %v846, %v858
    %v861 = vadd.f32 %v847, %v859
    %862 = vset.pattern.permute.xlu0 7
    %863 = vperm.xlu0 %862, %v381
    %v864 = vpop.permute.xlu0 %863
    %866 = vset.pattern.permute.xlu0 7
    %867 = vperm.xlu0 %866, %v396
    %v868 = vpop.permute.xlu0 %867
    %v870 = vperm.slane %v760, 7
    %v871 = vperm.slane %v761, 7
    %v872 = vmul.f32 %v864, %v870
    %v873 = vmul.f32 %v868, %v871
    %v874 = vadd.f32 %v860, %v872
    %v875 = vadd.f32 %v861, %v873
    %v876 = vsel %vm20, %v874, 0.0
    %v877 = vrot.slane %v876, 4
    %v878 = vadd.f32 %v876, %v877
    %v879 = vrot.slane %v878, 2
    %v880 = vadd.f32 %v878, %v879
    %v881 = vrot.slane %v880, 1
    %v882 = vadd.f32 %v880, %v881
    %v883 = vsel %vm20, %v875, 0.0
    %v884 = vrot.slane %v883, 4
    %v885 = vadd.f32 %v883, %v884
    %v886 = vrot.slane %v885, 2
    %v887 = vadd.f32 %v885, %v886
    %v888 = vrot.slane %v887, 1
    %v889 = vadd.f32 %v887, %v888
    %v890 = vrcp.pop %v882
    %v891 = vmul.f32 %v882, %v890
    %v892 = vsub.f32 1.0, %v891
    %v893 = vmul.f32 %v890, %v892
    %v894 = vadd.f32 %v890, %v893
    %vm895 = vweird.f32 %v882
    %vm896 = vweird.f32 %v890
    %vm897 = vmor %vm895, %vm896
    %v898 = vsel %vm897, %v890, %v894
    %v899 = vand.u32 2147483647, %v882
    %vm900 = vcmp.eq.f32.partialorder %v899, 8.507059e+37
    %v901 = vand.u32 %v882, 2147483648
    %v902 = vor.u32 1.1754944e-38, %v901
    %v903 = vsel %vm900, %v902, %v898
    %v904 = vmul.f32 %v874, %v903
    %v905 = vrcp.pop %v889
    %v906 = vmul.f32 %v889, %v905
    %v907 = vsub.f32 1.0, %v906
    %v908 = vmul.f32 %v905, %v907
    %v909 = vadd.f32 %v905, %v908
    %vm910 = vweird.f32 %v889
    %vm911 = vweird.f32 %v905
    %vm912 = vmor %vm910, %vm911
    %v913 = vsel %vm912, %v905, %v909
    %v914 = vand.u32 2147483647, %v889
    %vm915 = vcmp.eq.f32.partialorder %v914, 8.507059e+37
    %v916 = vand.u32 %v889, 2147483648
    %v917 = vor.u32 1.1754944e-38, %v916
    %v918 = vsel %vm915, %v917, %v913
    %v919 = vmul.f32 %v875, %v918
    %920 = vst.msk [vmem:[#allocation2] sm:$0xff] %vm20, %v904
    %921 = vst.msk [vmem:[#allocation2 + $0x8] sm:$0xff] %vm20, %v919
    // Predicated region
    $region14: #{_lambda_.1} parent=1 // pred_check
      _
    $region15: #{_lambda_.1} parent=1 // pred_check_branch
      %923 = sbr.rel (0) target = $region17
    $region16: #{_lambda_.1} parent=1 // pred_region
      %925 = vsyncadd [#allocation3], 0
      %s926 = sshll.u32 [#allocation2], 4
      %s927 = int_to_ptr.vmem [resolvable:$true] %s926
      %s928 = sshll.u32 %s3, 4
      %s929 = int_to_ptr.hbm [resolvable:$true] %s928
      %934 = dma.vmem_to_hbm [thread:$0]  %s927, 256, %s929, [#allocation3], 128, 128, 8
    $region17: #{_lambda_.1} parent=1 // pred_fallthru
      _
    // Predicated region
    $region18: #{_lambda_.1} parent=1 // pred_check
      _
    $region19: #{_lambda_.1} parent=1 // pred_check_branch
      %936 = sbr.rel (0) target = $region21
    $region20: #{_lambda_.1} parent=1 // pred_region
      %938 = dma.done [#allocation3], 256
    $region21: #{_lambda_.1} parent=1 // pred_fallthru
      _
    %939 = vsyncpa [#allocation3], 1

</llo_original>
